<compile_context>
chip_gen: v7x
topology: tpu7x:2x2x1
jax: 0.10.0
libtpu: 0.0.40
codegen_flags: <defaults>
</compile_context>

<pallas_src>
import jax
import jax.numpy as jnp
import numpy as np
from jax import lax
from jax.experimental import pallas as pl
from jax.experimental.pallas import tpu as pltpu


# ----------------------------------------------------------------------------
# Tile-size helpers
# ----------------------------------------------------------------------------
def _pick_batch_tile(b, cap):
    """Largest divisor of b that is <= min(cap, b//2) (>=2 grid steps if B>=2)."""
    cap = max(1, min(cap, b // 2 if b >= 2 else 1))
    best = 1
    for t in range(1, cap + 1):
        if b % t == 0:
            best = t
    return best


def _pick_fc_batch_tile(b, cap):
    """b is small (<=8) or a multiple of 8; return a multiple-of-8 tile (or b)
    so the (TB, F) block's sublane dim is always legal."""
    cap = max(1, min(cap, b // 2 if b >= 2 else 1))
    best = None
    for t in range(8, cap + 1, 8):
        if b % t == 0:
            best = t
    return best if best is not None else b


# ----------------------------------------------------------------------------
# Fused conv-stack kernel: whole batch tile as one flat (TB*L0, C) slab
# ----------------------------------------------------------------------------
def _make_conv_stack_kernel(num_layers, ksize, tb, l0, lf, compute_dtype):
    def kernel(*refs):
        x_ref = refs[0]                          # (tb*l0, Cin) flat channels-last slab
        wb_refs = refs[1:1 + 2 * num_layers]     # per layer: (K,Cin,Cout), (1,Cout)
        o_ref = refs[1 + 2 * num_layers]         # (tb, lf, Cf)

        h = x_ref[...].astype(compute_dtype)     # whole tile, one 2-D slab
        n = tb * l0                              # current slab length (rows)
        for li in range(num_layers):
            w_ref = wb_refs[2 * li]
            bias = wb_refs[2 * li + 1][...].astype(jnp.float32)   # (1, Cout)
            m = n - (ksize - 1)
            # One full-tile MXU matmul per tap, accumulated in f32 (accumulator
            # is initialized by tap 0 — no zeros+add).  Rows that straddle
            # batch-element boundaries produce garbage that no valid row reads.
            acc = jnp.dot(h[0:m, :], w_ref[0],
                          preferred_element_type=jnp.float32)
            for k in range(1, ksize):
                acc = acc + jnp.dot(h[k:k + m, :], w_ref[k],
                                    preferred_element_type=jnp.float32)
            h = jnp.maximum(acc + bias, 0.0)      # bias+ReLU in f32, once/layer
            if li < num_layers - 1:
                h = h.astype(compute_dtype)
            n = m
        # Element i's valid rows are [i*l0, i*l0+lf); starts are 8-aligned since
        # l0 % 8 == 0, so the writeback is tb cheap aligned slice-stores.
        for i in range(tb):
            o_ref[i] = h[i * l0:i * l0 + lf, :].astype(o_ref.dtype)

    return kernel


def conv_stack(x_nlc, conv_wb, *, compute_dtype=jnp.float32):
    """x_nlc: (B, L0, Cin) channels-last. conv_wb: list of (w (Cout,Cin,K), b (Cout,))."""
    B, L0, Cin = x_nlc.shape
    num_layers = len(conv_wb)
    K = conv_wb[0][0].shape[2]
    Lf = L0 - num_layers * (K - 1)
    Cf = conv_wb[-1][0].shape[0]

    cap = 32 if np.dtype(compute_dtype).itemsize >= 4 else 64
    TB = _pick_batch_tile(B, cap)

    x2d = x_nlc.reshape(B * L0, Cin)             # free HBM-level reshape
    args = [x2d]
    in_specs = [pl.BlockSpec((TB * L0, Cin), lambda b: (b, 0))]
    for (w, bias) in conv_wb:
        cout, cin, ksz = w.shape
        args.append(jnp.transpose(w, (2, 1, 0)).astype(compute_dtype))  # (K,Cin,Cout)
        args.append(bias.reshape(1, cout).astype(jnp.float32))
        in_specs.append(pl.BlockSpec((ksz, cin, cout), lambda b: (0, 0, 0)))
        in_specs.append(pl.BlockSpec((1, cout), lambda b: (0, 0)))

    return pl.pallas_call(
        _make_conv_stack_kernel(num_layers, K, TB, L0, Lf, compute_dtype),
        out_shape=jax.ShapeDtypeStruct((B, Lf, Cf), compute_dtype),
        grid_spec=pltpu.PrefetchScalarGridSpec(
            num_scalar_prefetch=0,
            grid=(B // TB,),
            in_specs=in_specs,
            out_specs=pl.BlockSpec((TB, Lf, Cf), lambda b: (b, 0, 0)),
        ),
        compiler_params=pltpu.CompilerParams(
            dimension_semantics=("parallel",),
            vmem_limit_bytes=48 * 1024 * 1024),
    )(*args)


# ----------------------------------------------------------------------------
# FC + LogSoftmax kernel: VMEM-resident weight, one matmul per batch tile
# ----------------------------------------------------------------------------
def _fc_logsoftmax_kernel(x_ref, w_ref, b_ref, logit_ref, lsm_ref):
    logits = jnp.dot(x_ref[...], w_ref[...],
                     preferred_element_type=jnp.float32) + b_ref[...]
    m = jnp.max(logits, axis=1, keepdims=True)
    lse = jnp.log(jnp.sum(jnp.exp(logits - m), axis=1, keepdims=True)) + m
    logit_ref[...] = logits.astype(logit_ref.dtype)
    lsm_ref[...] = (logits - lse).astype(lsm_ref.dtype)


def fc_logsoftmax(x_bf, w_fc, b_c):
    """x_bf: (B, F) channels-last flat features; w_fc: (F, C) permuted weight."""
    B, F = x_bf.shape
    C = w_fc.shape[1]

    # Pad large, non-multiple-of-8 batches so the (TB, F) block stays legal and
    # bounded (the old TB=B fallback could blow VMEM for odd large batches).
    Bp = B if (B <= 8 or B % 8 == 0) else ((B + 7) // 8) * 8
    if Bp != B:
        x_bf = jnp.pad(x_bf, ((0, Bp - B), (0, 0)))
    TB = _pick_fc_batch_tile(Bp, 64)

    b_1c = b_c.reshape(1, C).astype(jnp.float32)
    logits, log_probs = pl.pallas_call(
        _fc_logsoftmax_kernel,
        out_shape=(jax.ShapeDtypeStruct((Bp, C), jnp.float32),
                   jax.ShapeDtypeStruct((Bp, C), jnp.float32)),
        grid_spec=pltpu.PrefetchScalarGridSpec(
            num_scalar_prefetch=0,
            grid=(Bp // TB,),
            in_specs=[
                pl.BlockSpec((TB, F), lambda b: (b, 0)),
                pl.BlockSpec((F, C), lambda b: (0, 0)),   # constant -> VMEM-resident
                pl.BlockSpec((1, C), lambda b: (0, 0)),
            ],
            out_specs=[
                pl.BlockSpec((TB, C), lambda b: (b, 0)),
                pl.BlockSpec((TB, C), lambda b: (b, 0)),
            ],
        ),
        compiler_params=pltpu.CompilerParams(
            dimension_semantics=("parallel",),
            vmem_limit_bytes=48 * 1024 * 1024),
    )(x_bf, w_fc, b_1c)
    if Bp != B:
        logits, log_probs = logits[:B], log_probs[:B]
    return logits, log_probs


# ----------------------------------------------------------------------------
# Forward
# ----------------------------------------------------------------------------
def cnn_c_forward(params, x_ncl, is_lrcn=False, compute_dtype=jnp.float32):
    """x_ncl: (B, num_channels, L) — same layout as the PyTorch module.
    compute_dtype=jnp.bfloat16 casts MXU operands / intermediate activations to
    bf16 (recommended on v6e/v7x); accumulation and softmax stay f32."""
    conv_wb = [(params[f"conv{i}_w"], params[f"conv{i}_b"]) for i in range(1, 7)]
    x_nlc = jnp.transpose(x_ncl, (0, 2, 1))                  # NCL -> NLC (tiny input)
    h = conv_stack(x_nlc, conv_wb, compute_dtype=compute_dtype)   # (B, 188, 128)
    B, Lf, Cf = h.shape

    if is_lrcn:
        # torch.flatten(x, 1) on (B, C, L) flattens channel-major.
        return jnp.transpose(h, (0, 2, 1)).reshape(B, Cf * Lf)

    # One-time fc1 column permutation so the channels-last flatten (a free
    # contiguous reshape) matches torch's (channel, length) flatten order.
    classes = params["fc1_w"].shape[0]
    w_fc = jnp.transpose(params["fc1_w"].reshape(classes, Cf, Lf),
                         (2, 1, 0)).reshape(Lf * Cf, classes)     # (F, classes)
    flat = h.reshape(B, Lf * Cf)                              # free contiguous reshape
    logits, log_probs = fc_logsoftmax(flat, w_fc.astype(h.dtype), params["fc1_b"])
    return logits, log_probs


# ----------------------------------------------------------------------------
# Pure-JAX reference (for verification)
# ----------------------------------------------------------------------------
def _conv1d_relu_ref(x_ncl, w, b):
    y = lax.conv_general_dilated(x_ncl, w, window_strides=(1,), padding="VALID",
                                 dimension_numbers=("NCH", "OIH", "NCH"))
    return jnp.maximum(y + b[None, :, None], 0.0)


def cnn_c_reference(params, x_ncl):
    h = x_ncl
    for i in range(1, 7):
        h = _conv1d_relu_ref(h, params[f"conv{i}_w"], params[f"conv{i}_b"])
    flat = h.reshape(h.shape[0], -1)                          # channel-major flatten
    logits = flat @ params["fc1_w"].T + params["fc1_b"]
    log_probs = logits - jax.scipy.special.logsumexp(logits, axis=1, keepdims=True)
    return logits, log_probs


# ----------------------------------------------------------------------------
# Deterministic parameter init (torch-like shapes, synthetic values)
# ----------------------------------------------------------------------------
def init_params(key, num_channels, classes):
    ks = jax.random.split(key, 14)
    chans = [num_channels, 32, 32, 64, 64, 128, 128]
    p = {}
    for i in range(6):
        cin, cout = chans[i], chans[i + 1]
        scale = 1.0 / np.sqrt(cin * 3)
        p[f"conv{i+1}_w"] = jax.random.uniform(ks[2 * i], (cout, cin, 3),
                                               jnp.float32, -scale, scale)
        p[f"conv{i+1}_b"] = jax.random.uniform(ks[2 * i + 1], (cout,),
                                               jnp.float32, -scale, scale)
    fin = 128 * 188
    fscale = 1.0 / np.sqrt(fin)
    p["fc1_w"] = jax.random.uniform(ks[12], (classes, fin), jnp.float32,
                                    -fscale, fscale)
    p["fc1_b"] = jax.random.uniform(ks[13], (classes,), jnp.float32,
                                    -fscale, fscale)
    return p


if __name__ == "__main__":
    key = jax.random.PRNGKey(0)
    k_param, k_x = jax.random.split(key)

    batch, num_channels, classes = 2, 4, 8
    seq_len = 200  # 6 valid k=3 convs: 200 -> 188 == fc1 in_features / 128

    params = init_params(k_param, num_channels, classes)
    x = jax.random.normal(k_x, (batch, num_channels, seq_len), jnp.float32)

    ref_logits, ref_log_probs = cnn_c_reference(params, x)
    ref_logits = jax.block_until_ready(ref_logits)

    # Default f32 path: tight numerical check.
    logits, log_probs = cnn_c_forward(params, x, is_lrcn=False)
    logits = jax.block_until_ready(logits)
    log_probs = jax.block_until_ready(log_probs)
    np.testing.assert_allclose(np.asarray(logits), np.asarray(ref_logits),
                               rtol=2e-3, atol=3e-4)
    np.testing.assert_allclose(np.asarray(log_probs), np.asarray(ref_log_probs),
                               rtol=2e-3, atol=3e-4)

    # bf16 MXU-operand path (recommended on v6e/v7x): loose sanity check.
    logits_bf, log_probs_bf = cnn_c_forward(params, x, is_lrcn=False,
                                            compute_dtype=jnp.bfloat16)
    logits_bf = jax.block_until_ready(logits_bf)
    log_probs_bf = jax.block_until_ready(log_probs_bf)
    np.testing.assert_allclose(np.asarray(logits_bf), np.asarray(ref_logits),
                               rtol=1e-1, atol=1e-1)
    np.testing.assert_allclose(np.asarray(log_probs_bf), np.asarray(ref_log_probs),
                               rtol=1e-1, atol=1e-1)

    print("KERNEL_OK")
</pallas_src>

<mosaic_0001>
module attributes {stable_mosaic.version = 11 : i64} {
  func.func @kernel(%arg0: i32, %arg1: memref<200x4xf32, #tpu.memory_space<vmem>>, %arg2: memref<3x4x32xf32, #tpu.memory_space<vmem>>, %arg3: memref<1x32xf32, #tpu.memory_space<vmem>>, %arg4: memref<3x32x32xf32, #tpu.memory_space<vmem>>, %arg5: memref<1x32xf32, #tpu.memory_space<vmem>>, %arg6: memref<3x32x64xf32, #tpu.memory_space<vmem>>, %arg7: memref<1x64xf32, #tpu.memory_space<vmem>>, %arg8: memref<3x64x64xf32, #tpu.memory_space<vmem>>, %arg9: memref<1x64xf32, #tpu.memory_space<vmem>>, %arg10: memref<3x64x128xf32, #tpu.memory_space<vmem>>, %arg11: memref<1x128xf32, #tpu.memory_space<vmem>>, %arg12: memref<3x128x128xf32, #tpu.memory_space<vmem>>, %arg13: memref<1x128xf32, #tpu.memory_space<vmem>>, %arg14: memref<1x188x128xf32, #tpu.memory_space<vmem>>) attributes {dimension_semantics = [#tpu.dimension_semantics<parallel>], iteration_bounds = array<i64: 2>, scalar_prefetch = 0 : i64, scratch_operands = 0 : i64, tpu.core_type = #tpu.core_type<tc>, window_params = [{transform_indices = @transform_0, window_bounds = array<i64: 200, 4>}, {pipeline_mode = #tpu.pipeline_mode<synchronous>, transform_indices = @transform_1, window_bounds = array<i64: 3, 4, 32>}, {pipeline_mode = #tpu.pipeline_mode<synchronous>, transform_indices = @transform_2, window_bounds = array<i64: 1, 32>}, {pipeline_mode = #tpu.pipeline_mode<synchronous>, transform_indices = @transform_3, window_bounds = array<i64: 3, 32, 32>}, {pipeline_mode = #tpu.pipeline_mode<synchronous>, transform_indices = @transform_4, window_bounds = array<i64: 1, 32>}, {pipeline_mode = #tpu.pipeline_mode<synchronous>, transform_indices = @transform_5, window_bounds = array<i64: 3, 32, 64>}, {pipeline_mode = #tpu.pipeline_mode<synchronous>, transform_indices = @transform_6, window_bounds = array<i64: 1, 64>}, {pipeline_mode = #tpu.pipeline_mode<synchronous>, transform_indices = @transform_7, window_bounds = array<i64: 3, 64, 64>}, {pipeline_mode = #tpu.pipeline_mode<synchronous>, transform_indices = @transform_8, window_bounds = array<i64: 1, 64>}, {pipeline_mode = #tpu.pipeline_mode<synchronous>, transform_indices = @transform_9, window_bounds = array<i64: 3, 64, 128>}, {pipeline_mode = #tpu.pipeline_mode<synchronous>, transform_indices = @transform_10, window_bounds = array<i64: 1, 128>}, {pipeline_mode = #tpu.pipeline_mode<synchronous>, transform_indices = @transform_11, window_bounds = array<i64: 3, 128, 128>}, {pipeline_mode = #tpu.pipeline_mode<synchronous>, transform_indices = @transform_12, window_bounds = array<i64: 1, 128>}, {transform_indices = @transform_13, window_bounds = array<i64: 1, 188, 128>}]} {
    %c0 = arith.constant 0 : index
    %c0_0 = arith.constant 0 : index
    %0 = vector.load %arg1[%c0, %c0_0] : memref<200x4xf32, #tpu.memory_space<vmem>>, vector<200x4xf32>
    %c0_1 = arith.constant 0 : index
    %c0_2 = arith.constant 0 : index
    %1 = vector.load %arg3[%c0_1, %c0_2] : memref<1x32xf32, #tpu.memory_space<vmem>>, vector<1x32xf32>
    %2 = vector.extract_strided_slice %0 {offsets = [0, 0], sizes = [198, 4], strides = [1, 1]} : vector<200x4xf32> to vector<198x4xf32>
    %c0_3 = arith.constant 0 : index
    %c0_4 = arith.constant 0 : index
    %c0_5 = arith.constant 0 : index
    %3 = vector.load %arg2[%c0_3, %c0_4, %c0_5] : memref<3x4x32xf32, #tpu.memory_space<vmem>>, vector<1x4x32xf32>
    %4 = vector.shape_cast %3 : vector<1x4x32xf32> to vector<4x32xf32>
    %cst = arith.constant dense<0.000000e+00> : vector<198x32xf32>
    %5 = tpu.matmul %2, %4, %cst {dimension_numbers = #tpu.dot_dimension_numbers<[1], [0], [0], [1], [0, 0, 1, 1], [], []>} : vector<198x4xf32>, vector<4x32xf32>, vector<198x32xf32> -> vector<198x32xf32>
    %6 = vector.extract_strided_slice %0 {offsets = [1, 0], sizes = [198, 4], strides = [1, 1]} : vector<200x4xf32> to vector<198x4xf32>
    %c1 = arith.constant 1 : index
    %c0_6 = arith.constant 0 : index
    %c0_7 = arith.constant 0 : index
    %7 = vector.load %arg2[%c1, %c0_6, %c0_7] : memref<3x4x32xf32, #tpu.memory_space<vmem>>, vector<1x4x32xf32>
    %8 = vector.shape_cast %7 : vector<1x4x32xf32> to vector<4x32xf32>
    %cst_8 = arith.constant dense<0.000000e+00> : vector<198x32xf32>
    %9 = tpu.matmul %6, %8, %cst_8 {dimension_numbers = #tpu.dot_dimension_numbers<[1], [0], [0], [1], [0, 0, 1, 1], [], []>} : vector<198x4xf32>, vector<4x32xf32>, vector<198x32xf32> -> vector<198x32xf32>
    %10 = arith.addf %5, %9 : vector<198x32xf32>
    %11 = vector.extract_strided_slice %0 {offsets = [2, 0], sizes = [198, 4], strides = [1, 1]} : vector<200x4xf32> to vector<198x4xf32>
    %c2 = arith.constant 2 : index
    %c0_9 = arith.constant 0 : index
    %c0_10 = arith.constant 0 : index
    %12 = vector.load %arg2[%c2, %c0_9, %c0_10] : memref<3x4x32xf32, #tpu.memory_space<vmem>>, vector<1x4x32xf32>
    %13 = vector.shape_cast %12 : vector<1x4x32xf32> to vector<4x32xf32>
    %cst_11 = arith.constant dense<0.000000e+00> : vector<198x32xf32>
    %14 = tpu.matmul %11, %13, %cst_11 {dimension_numbers = #tpu.dot_dimension_numbers<[1], [0], [0], [1], [0, 0, 1, 1], [], []>} : vector<198x4xf32>, vector<4x32xf32>, vector<198x32xf32> -> vector<198x32xf32>
    %15 = arith.addf %10, %14 : vector<198x32xf32>
    %16 = vector.broadcast %1 : vector<1x32xf32> to vector<198x32xf32>
    %17 = arith.addf %15, %16 : vector<198x32xf32>
    %cst_12 = arith.constant 0.000000e+00 : f32
    %18 = vector.broadcast %cst_12 : f32 to vector<198x32xf32>
    %19 = arith.maximumf %17, %18 : vector<198x32xf32>
    %c0_13 = arith.constant 0 : index
    %c0_14 = arith.constant 0 : index
    %20 = vector.load %arg5[%c0_13, %c0_14] : memref<1x32xf32, #tpu.memory_space<vmem>>, vector<1x32xf32>
    %21 = vector.extract_strided_slice %19 {offsets = [0, 0], sizes = [196, 32], strides = [1, 1]} : vector<198x32xf32> to vector<196x32xf32>
    %c0_15 = arith.constant 0 : index
    %c0_16 = arith.constant 0 : index
    %c0_17 = arith.constant 0 : index
    %22 = vector.load %arg4[%c0_15, %c0_16, %c0_17] : memref<3x32x32xf32, #tpu.memory_space<vmem>>, vector<1x32x32xf32>
    %23 = vector.shape_cast %22 : vector<1x32x32xf32> to vector<32x32xf32>
    %cst_18 = arith.constant dense<0.000000e+00> : vector<196x32xf32>
    %24 = tpu.matmul %21, %23, %cst_18 {dimension_numbers = #tpu.dot_dimension_numbers<[1], [0], [0], [1], [0, 0, 1, 1], [], []>} : vector<196x32xf32>, vector<32x32xf32>, vector<196x32xf32> -> vector<196x32xf32>
    %25 = vector.extract_strided_slice %19 {offsets = [1, 0], sizes = [196, 32], strides = [1, 1]} : vector<198x32xf32> to vector<196x32xf32>
    %c1_19 = arith.constant 1 : index
    %c0_20 = arith.constant 0 : index
    %c0_21 = arith.constant 0 : index
    %26 = vector.load %arg4[%c1_19, %c0_20, %c0_21] : memref<3x32x32xf32, #tpu.memory_space<vmem>>, vector<1x32x32xf32>
    %27 = vector.shape_cast %26 : vector<1x32x32xf32> to vector<32x32xf32>
    %cst_22 = arith.constant dense<0.000000e+00> : vector<196x32xf32>
    %28 = tpu.matmul %25, %27, %cst_22 {dimension_numbers = #tpu.dot_dimension_numbers<[1], [0], [0], [1], [0, 0, 1, 1], [], []>} : vector<196x32xf32>, vector<32x32xf32>, vector<196x32xf32> -> vector<196x32xf32>
    %29 = arith.addf %24, %28 : vector<196x32xf32>
    %30 = vector.extract_strided_slice %19 {offsets = [2, 0], sizes = [196, 32], strides = [1, 1]} : vector<198x32xf32> to vector<196x32xf32>
    %c2_23 = arith.constant 2 : index
    %c0_24 = arith.constant 0 : index
    %c0_25 = arith.constant 0 : index
    %31 = vector.load %arg4[%c2_23, %c0_24, %c0_25] : memref<3x32x32xf32, #tpu.memory_space<vmem>>, vector<1x32x32xf32>
    %32 = vector.shape_cast %31 : vector<1x32x32xf32> to vector<32x32xf32>
    %cst_26 = arith.constant dense<0.000000e+00> : vector<196x32xf32>
    %33 = tpu.matmul %30, %32, %cst_26 {dimension_numbers = #tpu.dot_dimension_numbers<[1], [0], [0], [1], [0, 0, 1, 1], [], []>} : vector<196x32xf32>, vector<32x32xf32>, vector<196x32xf32> -> vector<196x32xf32>
    %34 = arith.addf %29, %33 : vector<196x32xf32>
    %35 = vector.broadcast %20 : vector<1x32xf32> to vector<196x32xf32>
    %36 = arith.addf %34, %35 : vector<196x32xf32>
    %cst_27 = arith.constant 0.000000e+00 : f32
    %37 = vector.broadcast %cst_27 : f32 to vector<196x32xf32>
    %38 = arith.maximumf %36, %37 : vector<196x32xf32>
    %c0_28 = arith.constant 0 : index
    %c0_29 = arith.constant 0 : index
    %39 = vector.load %arg7[%c0_28, %c0_29] : memref<1x64xf32, #tpu.memory_space<vmem>>, vector<1x64xf32>
    %40 = vector.extract_strided_slice %38 {offsets = [0, 0], sizes = [194, 32], strides = [1, 1]} : vector<196x32xf32> to vector<194x32xf32>
    %c0_30 = arith.constant 0 : index
    %c0_31 = arith.constant 0 : index
    %c0_32 = arith.constant 0 : index
    %41 = vector.load %arg6[%c0_30, %c0_31, %c0_32] : memref<3x32x64xf32, #tpu.memory_space<vmem>>, vector<1x32x64xf32>
    %42 = vector.shape_cast %41 : vector<1x32x64xf32> to vector<32x64xf32>
    %cst_33 = arith.constant dense<0.000000e+00> : vector<194x64xf32>
    %43 = tpu.matmul %40, %42, %cst_33 {dimension_numbers = #tpu.dot_dimension_numbers<[1], [0], [0], [1], [0, 0, 1, 1], [], []>} : vector<194x32xf32>, vector<32x64xf32>, vector<194x64xf32> -> vector<194x64xf32>
    %44 = vector.extract_strided_slice %38 {offsets = [1, 0], sizes = [194, 32], strides = [1, 1]} : vector<196x32xf32> to vector<194x32xf32>
    %c1_34 = arith.constant 1 : index
    %c0_35 = arith.constant 0 : index
    %c0_36 = arith.constant 0 : index
    %45 = vector.load %arg6[%c1_34, %c0_35, %c0_36] : memref<3x32x64xf32, #tpu.memory_space<vmem>>, vector<1x32x64xf32>
    %46 = vector.shape_cast %45 : vector<1x32x64xf32> to vector<32x64xf32>
    %cst_37 = arith.constant dense<0.000000e+00> : vector<194x64xf32>
    %47 = tpu.matmul %44, %46, %cst_37 {dimension_numbers = #tpu.dot_dimension_numbers<[1], [0], [0], [1], [0, 0, 1, 1], [], []>} : vector<194x32xf32>, vector<32x64xf32>, vector<194x64xf32> -> vector<194x64xf32>
    %48 = arith.addf %43, %47 : vector<194x64xf32>
    %49 = vector.extract_strided_slice %38 {offsets = [2, 0], sizes = [194, 32], strides = [1, 1]} : vector<196x32xf32> to vector<194x32xf32>
    %c2_38 = arith.constant 2 : index
    %c0_39 = arith.constant 0 : index
    %c0_40 = arith.constant 0 : index
    %50 = vector.load %arg6[%c2_38, %c0_39, %c0_40] : memref<3x32x64xf32, #tpu.memory_space<vmem>>, vector<1x32x64xf32>
    %51 = vector.shape_cast %50 : vector<1x32x64xf32> to vector<32x64xf32>
    %cst_41 = arith.constant dense<0.000000e+00> : vector<194x64xf32>
    %52 = tpu.matmul %49, %51, %cst_41 {dimension_numbers = #tpu.dot_dimension_numbers<[1], [0], [0], [1], [0, 0, 1, 1], [], []>} : vector<194x32xf32>, vector<32x64xf32>, vector<194x64xf32> -> vector<194x64xf32>
    %53 = arith.addf %48, %52 : vector<194x64xf32>
    %54 = vector.broadcast %39 : vector<1x64xf32> to vector<194x64xf32>
    %55 = arith.addf %53, %54 : vector<194x64xf32>
    %cst_42 = arith.constant 0.000000e+00 : f32
    %56 = vector.broadcast %cst_42 : f32 to vector<194x64xf32>
    %57 = arith.maximumf %55, %56 : vector<194x64xf32>
    %c0_43 = arith.constant 0 : index
    %c0_44 = arith.constant 0 : index
    %58 = vector.load %arg9[%c0_43, %c0_44] : memref<1x64xf32, #tpu.memory_space<vmem>>, vector<1x64xf32>
    %59 = vector.extract_strided_slice %57 {offsets = [0, 0], sizes = [192, 64], strides = [1, 1]} : vector<194x64xf32> to vector<192x64xf32>
    %c0_45 = arith.constant 0 : index
    %c0_46 = arith.constant 0 : index
    %c0_47 = arith.constant 0 : index
    %60 = vector.load %arg8[%c0_45, %c0_46, %c0_47] : memref<3x64x64xf32, #tpu.memory_space<vmem>>, vector<1x64x64xf32>
    %61 = vector.shape_cast %60 : vector<1x64x64xf32> to vector<64x64xf32>
    %cst_48 = arith.constant dense<0.000000e+00> : vector<192x64xf32>
    %62 = tpu.matmul %59, %61, %cst_48 {dimension_numbers = #tpu.dot_dimension_numbers<[1], [0], [0], [1], [0, 0, 1, 1], [], []>} : vector<192x64xf32>, vector<64x64xf32>, vector<192x64xf32> -> vector<192x64xf32>
    %63 = vector.extract_strided_slice %57 {offsets = [1, 0], sizes = [192, 64], strides = [1, 1]} : vector<194x64xf32> to vector<192x64xf32>
    %c1_49 = arith.constant 1 : index
    %c0_50 = arith.constant 0 : index
    %c0_51 = arith.constant 0 : index
    %64 = vector.load %arg8[%c1_49, %c0_50, %c0_51] : memref<3x64x64xf32, #tpu.memory_space<vmem>>, vector<1x64x64xf32>
    %65 = vector.shape_cast %64 : vector<1x64x64xf32> to vector<64x64xf32>
    %cst_52 = arith.constant dense<0.000000e+00> : vector<192x64xf32>
    %66 = tpu.matmul %63, %65, %cst_52 {dimension_numbers = #tpu.dot_dimension_numbers<[1], [0], [0], [1], [0, 0, 1, 1], [], []>} : vector<192x64xf32>, vector<64x64xf32>, vector<192x64xf32> -> vector<192x64xf32>
    %67 = arith.addf %62, %66 : vector<192x64xf32>
    %68 = vector.extract_strided_slice %57 {offsets = [2, 0], sizes = [192, 64], strides = [1, 1]} : vector<194x64xf32> to vector<192x64xf32>
    %c2_53 = arith.constant 2 : index
    %c0_54 = arith.constant 0 : index
    %c0_55 = arith.constant 0 : index
    %69 = vector.load %arg8[%c2_53, %c0_54, %c0_55] : memref<3x64x64xf32, #tpu.memory_space<vmem>>, vector<1x64x64xf32>
    %70 = vector.shape_cast %69 : vector<1x64x64xf32> to vector<64x64xf32>
    %cst_56 = arith.constant dense<0.000000e+00> : vector<192x64xf32>
    %71 = tpu.matmul %68, %70, %cst_56 {dimension_numbers = #tpu.dot_dimension_numbers<[1], [0], [0], [1], [0, 0, 1, 1], [], []>} : vector<192x64xf32>, vector<64x64xf32>, vector<192x64xf32> -> vector<192x64xf32>
    %72 = arith.addf %67, %71 : vector<192x64xf32>
    %73 = vector.broadcast %58 : vector<1x64xf32> to vector<192x64xf32>
    %74 = arith.addf %72, %73 : vector<192x64xf32>
    %cst_57 = arith.constant 0.000000e+00 : f32
    %75 = vector.broadcast %cst_57 : f32 to vector<192x64xf32>
    %76 = arith.maximumf %74, %75 : vector<192x64xf32>
    %c0_58 = arith.constant 0 : index
    %c0_59 = arith.constant 0 : index
    %77 = vector.load %arg11[%c0_58, %c0_59] : memref<1x128xf32, #tpu.memory_space<vmem>>, vector<1x128xf32>
    %78 = vector.extract_strided_slice %76 {offsets = [0, 0], sizes = [190, 64], strides = [1, 1]} : vector<192x64xf32> to vector<190x64xf32>
    %c0_60 = arith.constant 0 : index
    %c0_61 = arith.constant 0 : index
    %c0_62 = arith.constant 0 : index
    %79 = vector.load %arg10[%c0_60, %c0_61, %c0_62] : memref<3x64x128xf32, #tpu.memory_space<vmem>>, vector<1x64x128xf32>
    %80 = vector.shape_cast %79 : vector<1x64x128xf32> to vector<64x128xf32>
    %cst_63 = arith.constant dense<0.000000e+00> : vector<190x128xf32>
    %81 = tpu.matmul %78, %80, %cst_63 {dimension_numbers = #tpu.dot_dimension_numbers<[1], [0], [0], [1], [0, 0, 1, 1], [], []>} : vector<190x64xf32>, vector<64x128xf32>, vector<190x128xf32> -> vector<190x128xf32>
    %82 = vector.extract_strided_slice %76 {offsets = [1, 0], sizes = [190, 64], strides = [1, 1]} : vector<192x64xf32> to vector<190x64xf32>
    %c1_64 = arith.constant 1 : index
    %c0_65 = arith.constant 0 : index
    %c0_66 = arith.constant 0 : index
    %83 = vector.load %arg10[%c1_64, %c0_65, %c0_66] : memref<3x64x128xf32, #tpu.memory_space<vmem>>, vector<1x64x128xf32>
    %84 = vector.shape_cast %83 : vector<1x64x128xf32> to vector<64x128xf32>
    %cst_67 = arith.constant dense<0.000000e+00> : vector<190x128xf32>
    %85 = tpu.matmul %82, %84, %cst_67 {dimension_numbers = #tpu.dot_dimension_numbers<[1], [0], [0], [1], [0, 0, 1, 1], [], []>} : vector<190x64xf32>, vector<64x128xf32>, vector<190x128xf32> -> vector<190x128xf32>
    %86 = arith.addf %81, %85 : vector<190x128xf32>
    %87 = vector.extract_strided_slice %76 {offsets = [2, 0], sizes = [190, 64], strides = [1, 1]} : vector<192x64xf32> to vector<190x64xf32>
    %c2_68 = arith.constant 2 : index
    %c0_69 = arith.constant 0 : index
    %c0_70 = arith.constant 0 : index
    %88 = vector.load %arg10[%c2_68, %c0_69, %c0_70] : memref<3x64x128xf32, #tpu.memory_space<vmem>>, vector<1x64x128xf32>
    %89 = vector.shape_cast %88 : vector<1x64x128xf32> to vector<64x128xf32>
    %cst_71 = arith.constant dense<0.000000e+00> : vector<190x128xf32>
    %90 = tpu.matmul %87, %89, %cst_71 {dimension_numbers = #tpu.dot_dimension_numbers<[1], [0], [0], [1], [0, 0, 1, 1], [], []>} : vector<190x64xf32>, vector<64x128xf32>, vector<190x128xf32> -> vector<190x128xf32>
    %91 = arith.addf %86, %90 : vector<190x128xf32>
    %92 = vector.broadcast %77 : vector<1x128xf32> to vector<190x128xf32>
    %93 = arith.addf %91, %92 : vector<190x128xf32>
    %cst_72 = arith.constant 0.000000e+00 : f32
    %94 = vector.broadcast %cst_72 : f32 to vector<190x128xf32>
    %95 = arith.maximumf %93, %94 : vector<190x128xf32>
    %c0_73 = arith.constant 0 : index
    %c0_74 = arith.constant 0 : index
    %96 = vector.load %arg13[%c0_73, %c0_74] : memref<1x128xf32, #tpu.memory_space<vmem>>, vector<1x128xf32>
    %97 = vector.extract_strided_slice %95 {offsets = [0, 0], sizes = [188, 128], strides = [1, 1]} : vector<190x128xf32> to vector<188x128xf32>
    %c0_75 = arith.constant 0 : index
    %c0_76 = arith.constant 0 : index
    %c0_77 = arith.constant 0 : index
    %98 = vector.load %arg12[%c0_75, %c0_76, %c0_77] : memref<3x128x128xf32, #tpu.memory_space<vmem>>, vector<1x128x128xf32>
    %99 = vector.shape_cast %98 : vector<1x128x128xf32> to vector<128x128xf32>
    %cst_78 = arith.constant dense<0.000000e+00> : vector<188x128xf32>
    %100 = tpu.matmul %97, %99, %cst_78 {dimension_numbers = #tpu.dot_dimension_numbers<[1], [0], [0], [1], [0, 0, 1, 1], [], []>} : vector<188x128xf32>, vector<128x128xf32>, vector<188x128xf32> -> vector<188x128xf32>
    %101 = vector.extract_strided_slice %95 {offsets = [1, 0], sizes = [188, 128], strides = [1, 1]} : vector<190x128xf32> to vector<188x128xf32>
    %c1_79 = arith.constant 1 : index
    %c0_80 = arith.constant 0 : index
    %c0_81 = arith.constant 0 : index
    %102 = vector.load %arg12[%c1_79, %c0_80, %c0_81] : memref<3x128x128xf32, #tpu.memory_space<vmem>>, vector<1x128x128xf32>
    %103 = vector.shape_cast %102 : vector<1x128x128xf32> to vector<128x128xf32>
    %cst_82 = arith.constant dense<0.000000e+00> : vector<188x128xf32>
    %104 = tpu.matmul %101, %103, %cst_82 {dimension_numbers = #tpu.dot_dimension_numbers<[1], [0], [0], [1], [0, 0, 1, 1], [], []>} : vector<188x128xf32>, vector<128x128xf32>, vector<188x128xf32> -> vector<188x128xf32>
    %105 = arith.addf %100, %104 : vector<188x128xf32>
    %106 = vector.extract_strided_slice %95 {offsets = [2, 0], sizes = [188, 128], strides = [1, 1]} : vector<190x128xf32> to vector<188x128xf32>
    %c2_83 = arith.constant 2 : index
    %c0_84 = arith.constant 0 : index
    %c0_85 = arith.constant 0 : index
    %107 = vector.load %arg12[%c2_83, %c0_84, %c0_85] : memref<3x128x128xf32, #tpu.memory_space<vmem>>, vector<1x128x128xf32>
    %108 = vector.shape_cast %107 : vector<1x128x128xf32> to vector<128x128xf32>
    %cst_86 = arith.constant dense<0.000000e+00> : vector<188x128xf32>
    %109 = tpu.matmul %106, %108, %cst_86 {dimension_numbers = #tpu.dot_dimension_numbers<[1], [0], [0], [1], [0, 0, 1, 1], [], []>} : vector<188x128xf32>, vector<128x128xf32>, vector<188x128xf32> -> vector<188x128xf32>
    %110 = arith.addf %105, %109 : vector<188x128xf32>
    %111 = vector.broadcast %96 : vector<1x128xf32> to vector<188x128xf32>
    %112 = arith.addf %110, %111 : vector<188x128xf32>
    %cst_87 = arith.constant 0.000000e+00 : f32
    %113 = vector.broadcast %cst_87 : f32 to vector<188x128xf32>
    %114 = arith.maximumf %112, %113 : vector<188x128xf32>
    %c0_88 = arith.constant 0 : index
    %c0_89 = arith.constant 0 : index
    %c0_90 = arith.constant 0 : index
    %115 = vector.load %arg14[%c0_88, %c0_89, %c0_90] : memref<1x188x128xf32, #tpu.memory_space<vmem>>, vector<1x188x128xf32>
    %116 = vector.shape_cast %115 : vector<1x188x128xf32> to vector<188x128xf32>
    %117 = vector.shape_cast %114 : vector<188x128xf32> to vector<1x188x128xf32>
    tpu.vector_store %arg14[%c0_88, %c0_89, %c0_90], %117 {strides = array<i32>} : memref<1x188x128xf32, #tpu.memory_space<vmem>>, vector<1x188x128xf32>,
    return
  }
  func.func @transform_0(%arg0: i32) -> (i32, i32) {
    %c0_i32 = arith.constant 0 : i32
    %c0_i32_0 = arith.constant 0 : i32
    return %arg0, %c0_i32 : i32, i32
  }
  func.func @transform_1(%arg0: i32) -> (i32, i32, i32) {
    %c0_i32 = arith.constant 0 : i32
    %c0_i32_0 = arith.constant 0 : i32
    %c0_i32_1 = arith.constant 0 : i32
    %c0_i32_2 = arith.constant 0 : i32
    return %c0_i32, %c0_i32_0, %c0_i32_1 : i32, i32, i32
  }
  func.func @transform_2(%arg0: i32) -> (i32, i32) {
    %c0_i32 = arith.constant 0 : i32
    %c0_i32_0 = arith.constant 0 : i32
    %c0_i32_1 = arith.constant 0 : i32
    return %c0_i32, %c0_i32_0 : i32, i32
  }
  func.func @transform_3(%arg0: i32) -> (i32, i32, i32) {
    %c0_i32 = arith.constant 0 : i32
    %c0_i32_0 = arith.constant 0 : i32
    %c0_i32_1 = arith.constant 0 : i32
    %c0_i32_2 = arith.constant 0 : i32
    return %c0_i32, %c0_i32_0, %c0_i32_1 : i32, i32, i32
  }
  func.func @transform_4(%arg0: i32) -> (i32, i32) {
    %c0_i32 = arith.constant 0 : i32
    %c0_i32_0 = arith.constant 0 : i32
    %c0_i32_1 = arith.constant 0 : i32
    return %c0_i32, %c0_i32_0 : i32, i32
  }
  func.func @transform_5(%arg0: i32) -> (i32, i32, i32) {
    %c0_i32 = arith.constant 0 : i32
    %c0_i32_0 = arith.constant 0 : i32
    %c0_i32_1 = arith.constant 0 : i32
    %c0_i32_2 = arith.constant 0 : i32
    return %c0_i32, %c0_i32_0, %c0_i32_1 : i32, i32, i32
  }
  func.func @transform_6(%arg0: i32) -> (i32, i32) {
    %c0_i32 = arith.constant 0 : i32
    %c0_i32_0 = arith.constant 0 : i32
    %c0_i32_1 = arith.constant 0 : i32
    return %c0_i32, %c0_i32_0 : i32, i32
  }
  func.func @transform_7(%arg0: i32) -> (i32, i32, i32) {
    %c0_i32 = arith.constant 0 : i32
    %c0_i32_0 = arith.constant 0 : i32
    %c0_i32_1 = arith.constant 0 : i32
    %c0_i32_2 = arith.constant 0 : i32
    return %c0_i32, %c0_i32_0, %c0_i32_1 : i32, i32, i32
  }
  func.func @transform_8(%arg0: i32) -> (i32, i32) {
    %c0_i32 = arith.constant 0 : i32
    %c0_i32_0 = arith.constant 0 : i32
    %c0_i32_1 = arith.constant 0 : i32
    return %c0_i32, %c0_i32_0 : i32, i32
  }
  func.func @transform_9(%arg0: i32) -> (i32, i32, i32) {
    %c0_i32 = arith.constant 0 : i32
    %c0_i32_0 = arith.constant 0 : i32
    %c0_i32_1 = arith.constant 0 : i32
    %c0_i32_2 = arith.constant 0 : i32
    return %c0_i32, %c0_i32_0, %c0_i32_1 : i32, i32, i32
  }
  func.func @transform_10(%arg0: i32) -> (i32, i32) {
    %c0_i32 = arith.constant 0 : i32
    %c0_i32_0 = arith.constant 0 : i32
    %c0_i32_1 = arith.constant 0 : i32
    return %c0_i32, %c0_i32_0 : i32, i32
  }
  func.func @transform_11(%arg0: i32) -> (i32, i32, i32) {
    %c0_i32 = arith.constant 0 : i32
    %c0_i32_0 = arith.constant 0 : i32
    %c0_i32_1 = arith.constant 0 : i32
    %c0_i32_2 = arith.constant 0 : i32
    return %c0_i32, %c0_i32_0, %c0_i32_1 : i32, i32, i32
  }
  func.func @transform_12(%arg0: i32) -> (i32, i32) {
    %c0_i32 = arith.constant 0 : i32
    %c0_i32_0 = arith.constant 0 : i32
    %c0_i32_1 = arith.constant 0 : i32
    return %c0_i32, %c0_i32_0 : i32, i32
  }
  func.func @transform_13(%arg0: i32) -> (i32, i32, i32) {
    %c0_i32 = arith.constant 0 : i32
    %c0_i32_0 = arith.constant 0 : i32
    %c0_i32_1 = arith.constant 0 : i32
    return %arg0, %c0_i32, %c0_i32_0 : i32, i32, i32
  }
}

</mosaic_0001>

<llo_original>
// kernel: tpu_custom_call.1
$region0: #{tpu_custom_call.1}
  #allocation0 [shape = 'u32[]', space=smem, size = 0x4, offset = 0x4, fixed_abs, tag = 'smem constant byte address 0x4 - core index']
  #allocation1 [shape = 'u32[144,128]{1,0:T(1,128)}', space=vmem, size = 0x12000, scoped, tag = 'internal scratch']
  %s0 = inlined_call_operand.vmem [shape: f32[400,4], index: 0, kind: input, shape index: {}]
  %s1 = inlined_call_operand.vmem [shape: f32[3,4,32], index: 1, kind: input, shape index: {}]
  %s2 = inlined_call_operand.vmem [shape: f32[1,32], index: 2, kind: input, shape index: {}]
  %s3 = inlined_call_operand.hbm [shape: f32[3,32,32], index: 3, kind: input, shape index: {}]
  %s4 = inlined_call_operand.vmem [shape: f32[1,32], index: 4, kind: input, shape index: {}]
  %s5 = inlined_call_operand.hbm [shape: f32[3,32,64], index: 5, kind: input, shape index: {}]
  %s6 = inlined_call_operand.vmem [shape: f32[1,64], index: 6, kind: input, shape index: {}]
  %s7 = inlined_call_operand.hbm [shape: f32[3,64,64], index: 7, kind: input, shape index: {}]
  %s8 = inlined_call_operand.vmem [shape: f32[1,64], index: 8, kind: input, shape index: {}]
  %s9 = inlined_call_operand.hbm [shape: f32[3,64,128], index: 9, kind: input, shape index: {}]
  %s10 = inlined_call_operand.vmem [shape: f32[1,128], index: 10, kind: input, shape index: {}]
  %s11 = inlined_call_operand.vmem [shape: f32[3,128,128], index: 11, kind: input, shape index: {}]
  %s12 = inlined_call_operand.vmem [shape: f32[1,128], index: 12, kind: input, shape index: {}]
  %s13 = inlined_call_operand.vmem [shape: f32[2,188,128], index: 13, kind: output, shape index: {}]
  %s14 = sld [smem:[#allocation0]]
  $region101: #{tpu_custom_call.1} parent=0
    _
  %s16 = ssub.s32 1, %s14
  %s17 = scalar_select 0, %s16, %s14
  $region1: #{tpu_custom_call.1} parent=0
    #allocation2 [shape = 'u8[49152]{0}', space=vmem, size = 0xc000, scoped, tag = 'input window, operand 3, single buffered']
    #allocation3 [shape = 's32[2]{0}', space=sflag, size = 0x8, scoped, tag = 'scoped memory for tpu_custom_call.1']
    #allocation4 [shape = 'u8[49152]{0}', space=vmem, size = 0xc000, scoped, tag = 'input window, operand 5, single buffered']
    #allocation5 [shape = 's32[1]{0}', space=sflag, size = 0x4, scoped, tag = 'scoped memory for tpu_custom_call.1']
    #allocation6 [shape = 'u8[98304]{0}', space=vmem, size = 0x18000, scoped, tag = 'input window, operand 7, single buffered']
    #allocation7 [shape = 'u8[98304]{0}', space=vmem, size = 0x18000, scoped, tag = 'input window, operand 9, single buffered']
    #allocation8 [shape = 's32[1]{0}', space=sflag, size = 0x4, scoped, tag = 'scoped memory for tpu_custom_call.1']
    %18 = vsyncpa [#allocation3], 0
    %19 = vsyncpa [#allocation5], 0
    %20 = vsyncpa [#allocation8], 0
    loop: start=0, step=1, limit=4
    $region2: #{tpu_custom_call.1} parent=1 // loop_pre_header
      _
    $region3: #{tpu_custom_call.1} parent=1 // loop_header
      %s22 = sphi 0, %s26
      %p23 = scmp.ge.s32.totalorder %s22, 4
      %s32 = sphi 0, %s34
      %s35 = sphi 0, %s32
      %s36 = sphi 0, %s35
      %s52 = sphi 0, %s36
      %s56 = sphi 0, %s56
      %s58 = sphi 0, %s56
      %s59 = sphi 0, %s58
      %s73 = sphi 0, %s59
      %s77 = sphi 0, %s77
      %s79 = sphi 0, %s77
      %s80 = sphi 0, %s79
      %s94 = sphi 0, %s80
      %s98 = sphi 0, %s98
      %s100 = sphi 0, %s98
      %s101 = sphi 0, %s100
      %s115 = sphi 0, %s101
      %s119 = sphi 0, %s119
      %s121 = sphi 0, %s119
      %s122 = sphi 0, %s121
      %s136 = sphi 0, %s122
      %s140 = sphi 0, %s140
      %s142 = sphi 0, %s140
      %s143 = sphi 0, %s142
      %s157 = sphi 0, %s143
      %s161 = sphi 0, %s161
      %s163 = sphi 0, %s161
      %s164 = sphi 0, %s163
      %s178 = sphi 0, %s164
      %s182 = sphi 0, %s182
      %s184 = sphi 0, %s182
      %s185 = sphi 0, %s184
      %s199 = sphi 0, %s185
      %s203 = sphi 0, %s203
      %s205 = sphi 0, %s203
      %s206 = sphi 0, %s205
      %s220 = sphi 0, %s206
      %s224 = sphi 0, %s224
      %s226 = sphi 0, %s224
      %s227 = sphi 0, %s226
      %s241 = sphi 0, %s227
      %s245 = sphi 0, %s245
      %s247 = sphi 0, %s245
      %s248 = sphi 0, %s247
      %s262 = sphi 0, %s248
      %s266 = sphi 0, %s266
      %s268 = sphi 0, %s266
      %s269 = sphi 0, %s268
      %s283 = sphi 0, %s269
      %s287 = sphi 0, %s287
      %s289 = sphi 0, %s287
      %s290 = sphi 0, %s289
      %s304 = sphi 0, %s290
      %s310 = sphi 0, %s312
      %s313 = sphi 0, %s310
      %s314 = sphi 0, %s313
      %s330 = sphi 0, %s314
    $region4: #{tpu_custom_call.1} parent=1 // loop_header_branch
      %25 = sbr.rel (%p23) target = $region8
    $region5: #{tpu_custom_call.1} parent=1 // loop_body
      %s27 = ssub.s32 %s22, 1
      %s28 = ssub.s32 %s22, 2
      %s29 = sadd.s32 %s22, 1
      %s30 = ssub.s32 %s22, %s29
      %p31 = scmp.eq.s32.totalorder %s30, 0
      %s33 = sadd.s32 %s32, 1
      %s34 = scalar_select %p31, %s32, %s33
      %p37 = pneg %p31
      %p38 = scmp.eq.s32.totalorder %s22, 1
      %p39 = por %p37, %p38
      %p40 = scmp.ne.s32.totalorder %s32, %s35
      %p41 = scmp.eq.s32.totalorder %s22, 0
      %p42 = por %p40, %p41
      %p43 = scmp.ne.s32.totalorder %s32, %s35
      %p44 = scmp.eq.s32.totalorder %s27, 1
      %p45 = por %p43, %p44
      %p46 = scmp.ne.s32.totalorder %s35, %s36
      %p47 = scmp.eq.s32.totalorder %s27, 0
      %p48 = por %p46, %p47
      %p49 = scmp.ne.s32.totalorder %s35, %s36
      %p50 = scmp.eq.s32.totalorder %s28, 1
      %p51 = por %p49, %p50
      %p53 = scmp.ne.s32.totalorder %s36, %s52
      %p54 = scmp.eq.s32.totalorder %s28, 0
      %p55 = por %p53, %p54
      %s57 = sadd.s32 %s56, 1
      %p60 = scmp.eq.s32.totalorder %s22, 1
      %p61 = scmp.ne.s32.totalorder %s56, %s58
      %p62 = scmp.eq.s32.totalorder %s22, 0
      %p63 = por %p61, %p62
      %p64 = scmp.ne.s32.totalorder %s56, %s58
      %p65 = scmp.eq.s32.totalorder %s27, 1
      %p66 = por %p64, %p65
      %p67 = scmp.ne.s32.totalorder %s58, %s59
      %p68 = scmp.eq.s32.totalorder %s27, 0
      %p69 = por %p67, %p68
      %p70 = scmp.ne.s32.totalorder %s58, %s59
      %p71 = scmp.eq.s32.totalorder %s28, 1
      %p72 = por %p70, %p71
      %p74 = scmp.ne.s32.totalorder %s59, %s73
      %p75 = scmp.eq.s32.totalorder %s28, 0
      %p76 = por %p74, %p75
      %s78 = sadd.s32 %s77, 1
      %p81 = scmp.eq.s32.totalorder %s22, 1
      %p82 = scmp.ne.s32.totalorder %s77, %s79
      %p83 = scmp.eq.s32.totalorder %s22, 0
      %p84 = por %p82, %p83
      %p85 = scmp.ne.s32.totalorder %s77, %s79
      %p86 = scmp.eq.s32.totalorder %s27, 1
      %p87 = por %p85, %p86
      %p88 = scmp.ne.s32.totalorder %s79, %s80
      %p89 = scmp.eq.s32.totalorder %s27, 0
      %p90 = por %p88, %p89
      %p91 = scmp.ne.s32.totalorder %s79, %s80
      %p92 = scmp.eq.s32.totalorder %s28, 1
      %p93 = por %p91, %p92
      %p95 = scmp.ne.s32.totalorder %s80, %s94
      %p96 = scmp.eq.s32.totalorder %s28, 0
      %p97 = por %p95, %p96
      %s99 = sadd.s32 %s98, 1
      %p102 = scmp.eq.s32.totalorder %s22, 1
      %p103 = scmp.ne.s32.totalorder %s98, %s100
      %p104 = scmp.eq.s32.totalorder %s22, 0
      %p105 = por %p103, %p104
      %p106 = scmp.ne.s32.totalorder %s98, %s100
      %p107 = scmp.eq.s32.totalorder %s27, 1
      %p108 = por %p106, %p107
      %p109 = scmp.ne.s32.totalorder %s100, %s101
      %p110 = scmp.eq.s32.totalorder %s27, 0
      %p111 = por %p109, %p110
      %p112 = scmp.ne.s32.totalorder %s100, %s101
      %p113 = scmp.eq.s32.totalorder %s28, 1
      %p114 = por %p112, %p113
      %p116 = scmp.ne.s32.totalorder %s101, %s115
      %p117 = scmp.eq.s32.totalorder %s28, 0
      %p118 = por %p116, %p117
      %s120 = sadd.s32 %s119, 1
      %p123 = scmp.eq.s32.totalorder %s22, 1
      %p124 = scmp.ne.s32.totalorder %s119, %s121
      %p125 = scmp.eq.s32.totalorder %s22, 0
      %p126 = por %p124, %p125
      %p127 = scmp.ne.s32.totalorder %s119, %s121
      %p128 = scmp.eq.s32.totalorder %s27, 1
      %p129 = por %p127, %p128
      %p130 = scmp.ne.s32.totalorder %s121, %s122
      %p131 = scmp.eq.s32.totalorder %s27, 0
      %p132 = por %p130, %p131
      %p133 = scmp.ne.s32.totalorder %s121, %s122
      %p134 = scmp.eq.s32.totalorder %s28, 1
      %p135 = por %p133, %p134
      %p137 = scmp.ne.s32.totalorder %s122, %s136
      %p138 = scmp.eq.s32.totalorder %s28, 0
      %p139 = por %p137, %p138
      %s141 = sadd.s32 %s140, 1
      %p144 = scmp.eq.s32.totalorder %s22, 1
      %p145 = scmp.ne.s32.totalorder %s140, %s142
      %p146 = scmp.eq.s32.totalorder %s22, 0
      %p147 = por %p145, %p146
      %p148 = scmp.ne.s32.totalorder %s140, %s142
      %p149 = scmp.eq.s32.totalorder %s27, 1
      %p150 = por %p148, %p149
      %p151 = scmp.ne.s32.totalorder %s142, %s143
      %p152 = scmp.eq.s32.totalorder %s27, 0
      %p153 = por %p151, %p152
      %p154 = scmp.ne.s32.totalorder %s142, %s143
      %p155 = scmp.eq.s32.totalorder %s28, 1
      %p156 = por %p154, %p155
      %p158 = scmp.ne.s32.totalorder %s143, %s157
      %p159 = scmp.eq.s32.totalorder %s28, 0
      %p160 = por %p158, %p159
      %s162 = sadd.s32 %s161, 1
      %p165 = scmp.eq.s32.totalorder %s22, 1
      %p166 = scmp.ne.s32.totalorder %s161, %s163
      %p167 = scmp.eq.s32.totalorder %s22, 0
      %p168 = por %p166, %p167
      %p169 = scmp.ne.s32.totalorder %s161, %s163
      %p170 = scmp.eq.s32.totalorder %s27, 1
      %p171 = por %p169, %p170
      %p172 = scmp.ne.s32.totalorder %s163, %s164
      %p173 = scmp.eq.s32.totalorder %s27, 0
      %p174 = por %p172, %p173
      %p175 = scmp.ne.s32.totalorder %s163, %s164
      %p176 = scmp.eq.s32.totalorder %s28, 1
      %p177 = por %p175, %p176
      %p179 = scmp.ne.s32.totalorder %s164, %s178
      %p180 = scmp.eq.s32.totalorder %s28, 0
      %p181 = por %p179, %p180
      %s183 = sadd.s32 %s182, 1
      %p186 = scmp.eq.s32.totalorder %s22, 1
      %p187 = scmp.ne.s32.totalorder %s182, %s184
      %p188 = scmp.eq.s32.totalorder %s22, 0
      %p189 = por %p187, %p188
      %p190 = scmp.ne.s32.totalorder %s182, %s184
      %p191 = scmp.eq.s32.totalorder %s27, 1
      %p192 = por %p190, %p191
      %p193 = scmp.ne.s32.totalorder %s184, %s185
      %p194 = scmp.eq.s32.totalorder %s27, 0
      %p195 = por %p193, %p194
      %p196 = scmp.ne.s32.totalorder %s184, %s185
      %p197 = scmp.eq.s32.totalorder %s28, 1
      %p198 = por %p196, %p197
      %p200 = scmp.ne.s32.totalorder %s185, %s199
      %p201 = scmp.eq.s32.totalorder %s28, 0
      %p202 = por %p200, %p201
      %s204 = sadd.s32 %s203, 1
      %p207 = scmp.eq.s32.totalorder %s22, 1
      %p208 = scmp.ne.s32.totalorder %s203, %s205
      %p209 = scmp.eq.s32.totalorder %s22, 0
      %p210 = por %p208, %p209
      %p211 = scmp.ne.s32.totalorder %s203, %s205
      %p212 = scmp.eq.s32.totalorder %s27, 1
      %p213 = por %p211, %p212
      %p214 = scmp.ne.s32.totalorder %s205, %s206
      %p215 = scmp.eq.s32.totalorder %s27, 0
      %p216 = por %p214, %p215
      %p217 = scmp.ne.s32.totalorder %s205, %s206
      %p218 = scmp.eq.s32.totalorder %s28, 1
      %p219 = por %p217, %p218
      %p221 = scmp.ne.s32.totalorder %s206, %s220
      %p222 = scmp.eq.s32.totalorder %s28, 0
      %p223 = por %p221, %p222
      %s225 = sadd.s32 %s224, 1
      %p228 = scmp.eq.s32.totalorder %s22, 1
      %p229 = scmp.ne.s32.totalorder %s224, %s226
      %p230 = scmp.eq.s32.totalorder %s22, 0
      %p231 = por %p229, %p230
      %p232 = scmp.ne.s32.totalorder %s224, %s226
      %p233 = scmp.eq.s32.totalorder %s27, 1
      %p234 = por %p232, %p233
      %p235 = scmp.ne.s32.totalorder %s226, %s227
      %p236 = scmp.eq.s32.totalorder %s27, 0
      %p237 = por %p235, %p236
      %p238 = scmp.ne.s32.totalorder %s226, %s227
      %p239 = scmp.eq.s32.totalorder %s28, 1
      %p240 = por %p238, %p239
      %p242 = scmp.ne.s32.totalorder %s227, %s241
      %p243 = scmp.eq.s32.totalorder %s28, 0
      %p244 = por %p242, %p243
      %s246 = sadd.s32 %s245, 1
      %p249 = scmp.eq.s32.totalorder %s22, 1
      %p250 = scmp.ne.s32.totalorder %s245, %s247
      %p251 = scmp.eq.s32.totalorder %s22, 0
      %p252 = por %p250, %p251
      %p253 = scmp.ne.s32.totalorder %s245, %s247
      %p254 = scmp.eq.s32.totalorder %s27, 1
      %p255 = por %p253, %p254
      %p256 = scmp.ne.s32.totalorder %s247, %s248
      %p257 = scmp.eq.s32.totalorder %s27, 0
      %p258 = por %p256, %p257
      %p259 = scmp.ne.s32.totalorder %s247, %s248
      %p260 = scmp.eq.s32.totalorder %s28, 1
      %p261 = por %p259, %p260
      %p263 = scmp.ne.s32.totalorder %s248, %s262
      %p264 = scmp.eq.s32.totalorder %s28, 0
      %p265 = por %p263, %p264
      %s267 = sadd.s32 %s266, 1
      %p270 = scmp.eq.s32.totalorder %s22, 1
      %p271 = scmp.ne.s32.totalorder %s266, %s268
      %p272 = scmp.eq.s32.totalorder %s22, 0
      %p273 = por %p271, %p272
      %p274 = scmp.ne.s32.totalorder %s266, %s268
      %p275 = scmp.eq.s32.totalorder %s27, 1
      %p276 = por %p274, %p275
      %p277 = scmp.ne.s32.totalorder %s268, %s269
      %p278 = scmp.eq.s32.totalorder %s27, 0
      %p279 = por %p277, %p278
      %p280 = scmp.ne.s32.totalorder %s268, %s269
      %p281 = scmp.eq.s32.totalorder %s28, 1
      %p282 = por %p280, %p281
      %p284 = scmp.ne.s32.totalorder %s269, %s283
      %p285 = scmp.eq.s32.totalorder %s28, 0
      %p286 = por %p284, %p285
      %s288 = sadd.s32 %s287, 1
      %p291 = scmp.eq.s32.totalorder %s22, 1
      %p292 = scmp.ne.s32.totalorder %s287, %s289
      %p293 = scmp.eq.s32.totalorder %s22, 0
      %p294 = por %p292, %p293
      %p295 = scmp.ne.s32.totalorder %s287, %s289
      %p296 = scmp.eq.s32.totalorder %s27, 1
      %p297 = por %p295, %p296
      %p298 = scmp.ne.s32.totalorder %s289, %s290
      %p299 = scmp.eq.s32.totalorder %s27, 0
      %p300 = por %p298, %p299
      %p301 = scmp.ne.s32.totalorder %s289, %s290
      %p302 = scmp.eq.s32.totalorder %s28, 1
      %p303 = por %p301, %p302
      %p305 = scmp.ne.s32.totalorder %s290, %s304
      %p306 = scmp.eq.s32.totalorder %s28, 0
      %p307 = por %p305, %p306
      %s308 = ssub.s32 %s22, %s29
      %p309 = scmp.eq.s32.totalorder %s308, 0
      %s311 = sadd.s32 %s310, 1
      %s312 = scalar_select %p309, %s310, %s311
      %p315 = pneg %p309
      %p316 = scmp.eq.s32.totalorder %s22, 1
      %p317 = por %p315, %p316
      %p318 = scmp.ne.s32.totalorder %s310, %s313
      %p319 = scmp.eq.s32.totalorder %s22, 0
      %p320 = por %p318, %p319
      %p321 = scmp.ne.s32.totalorder %s310, %s313
      %p322 = scmp.eq.s32.totalorder %s27, 1
      %p323 = por %p321, %p322
      %p324 = scmp.ne.s32.totalorder %s313, %s314
      %p325 = scmp.eq.s32.totalorder %s27, 0
      %p326 = por %p324, %p325
      %p327 = scmp.ne.s32.totalorder %s313, %s314
      %p328 = scmp.eq.s32.totalorder %s28, 1
      %p329 = por %p327, %p328
      %p331 = scmp.ne.s32.totalorder %s314, %s330
      %p332 = scmp.eq.s32.totalorder %s28, 0
      %p333 = por %p331, %p332
      %p334 = scmp.le.s32.totalorder 1, %s22
      %p335 = scmp.lt.s32.totalorder %s22, 3
      %p336 = pnand %p334, %p335
      %p337 = pneg %p336
      // Predicated region
      $region9: #{tpu_custom_call.1} parent=5 // pred_check
        _
      $region10: #{tpu_custom_call.1} parent=5 // pred_check_branch
        %339 = sbr.rel (%p336) target = $region12
      $region11: #{tpu_custom_call.1} parent=5 // pred_region
        %s340 = ssub.s32 %s22, 1
        // Predicated region
        $region13: #{tpu_custom_call.1} parent=11 // pred_check
          %p341 = pneg %p69
        $region14: #{tpu_custom_call.1} parent=11 // pred_check_branch
          %343 = sbr.rel (%p341) target = $region16
        $region15: #{tpu_custom_call.1} parent=11 // pred_region
          _
        $region16: #{tpu_custom_call.1} parent=11 // pred_fallthru
          _
        // Predicated region
        $region17: #{tpu_custom_call.1} parent=11 // pred_check
          %p344 = pneg %p90
        $region18: #{tpu_custom_call.1} parent=11 // pred_check_branch
          %346 = sbr.rel (%p344) target = $region20
        $region19: #{tpu_custom_call.1} parent=11 // pred_region
          _
        $region20: #{tpu_custom_call.1} parent=11 // pred_fallthru
          _
        // Predicated region
        $region21: #{tpu_custom_call.1} parent=11 // pred_check
          %p347 = pneg %p111
        $region22: #{tpu_custom_call.1} parent=11 // pred_check_branch
          %349 = sbr.rel (%p347) target = $region24
        $region23: #{tpu_custom_call.1} parent=11 // pred_region
          %s351 = ssub.s32 1536, 1536
          %352 = vsyncadd [#allocation3], %s351
          %s353 = sshll.u32 [#allocation2], 4
          %s354 = int_to_ptr.vmem [resolvable:$true] %s353
          %359 = dma.hbm_to_vmem [thread:$0]  %s3, 1536, %s354, [#allocation3], 128, 128, 8
        $region24: #{tpu_custom_call.1} parent=11 // pred_fallthru
          _
        // Predicated region
        $region25: #{tpu_custom_call.1} parent=11 // pred_check
          %p360 = pneg %p132
        $region26: #{tpu_custom_call.1} parent=11 // pred_check_branch
          %362 = sbr.rel (%p360) target = $region28
        $region27: #{tpu_custom_call.1} parent=11 // pred_region
          _
        $region28: #{tpu_custom_call.1} parent=11 // pred_fallthru
          _
        // Predicated region
        $region29: #{tpu_custom_call.1} parent=11 // pred_check
          %p363 = pneg %p153
        $region30: #{tpu_custom_call.1} parent=11 // pred_check_branch
          %365 = sbr.rel (%p363) target = $region32
        $region31: #{tpu_custom_call.1} parent=11 // pred_region
          %s367 = ssub.s32 1536, 1536
          %368 = vsyncadd [#allocation5], %s367
          %s369 = sshll.u32 [#allocation4], 4
          %s370 = int_to_ptr.vmem [resolvable:$true] %s369
          %375 = dma.hbm_to_vmem [thread:$0]  %s5, 1536, %s370, [#allocation5], 128, 128, 8
        $region32: #{tpu_custom_call.1} parent=11 // pred_fallthru
          _
        // Predicated region
        $region33: #{tpu_custom_call.1} parent=11 // pred_check
          %p376 = pneg %p174
        $region34: #{tpu_custom_call.1} parent=11 // pred_check_branch
          %378 = sbr.rel (%p376) target = $region36
        $region35: #{tpu_custom_call.1} parent=11 // pred_region
          _
        $region36: #{tpu_custom_call.1} parent=11 // pred_fallthru
          _
        // Predicated region
        $region37: #{tpu_custom_call.1} parent=11 // pred_check
          %p379 = pneg %p195
        $region38: #{tpu_custom_call.1} parent=11 // pred_check_branch
          %381 = sbr.rel (%p379) target = $region40
        $region39: #{tpu_custom_call.1} parent=11 // pred_region
          %s383 = ssub.s32 3072, 3072
          %384 = vsyncadd [#allocation5], %s383
          %s385 = sshll.u32 [#allocation6], 4
          %s386 = int_to_ptr.vmem [resolvable:$true] %s385
          %391 = dma.hbm_to_vmem [thread:$0]  %s7, 3072, %s386, [#allocation5], 128, 128, 8
        $region40: #{tpu_custom_call.1} parent=11 // pred_fallthru
          _
        // Predicated region
        $region41: #{tpu_custom_call.1} parent=11 // pred_check
          %p392 = pneg %p216
        $region42: #{tpu_custom_call.1} parent=11 // pred_check_branch
          %394 = sbr.rel (%p392) target = $region44
        $region43: #{tpu_custom_call.1} parent=11 // pred_region
          _
        $region44: #{tpu_custom_call.1} parent=11 // pred_fallthru
          _
        // Predicated region
        $region45: #{tpu_custom_call.1} parent=11 // pred_check
          %p395 = pneg %p237
        $region46: #{tpu_custom_call.1} parent=11 // pred_check_branch
          %397 = sbr.rel (%p395) target = $region48
        $region47: #{tpu_custom_call.1} parent=11 // pred_region
          %s399 = ssub.s32 3072, 3072
          %400 = vsyncadd [#allocation8], %s399
          %s401 = sshll.u32 [#allocation7], 4
          %s402 = int_to_ptr.vmem [resolvable:$true] %s401
          %407 = dma.hbm_to_vmem [thread:$0]  %s9, 3072, %s402, [#allocation8], 128, 128, 8
        $region48: #{tpu_custom_call.1} parent=11 // pred_fallthru
          _
        // Predicated region
        $region49: #{tpu_custom_call.1} parent=11 // pred_check
          %p408 = pneg %p258
        $region50: #{tpu_custom_call.1} parent=11 // pred_check_branch
          %410 = sbr.rel (%p408) target = $region52
        $region51: #{tpu_custom_call.1} parent=11 // pred_region
          _
        $region52: #{tpu_custom_call.1} parent=11 // pred_fallthru
          _
        // Predicated region
        $region53: #{tpu_custom_call.1} parent=11 // pred_check
          %p411 = pneg %p279
        $region54: #{tpu_custom_call.1} parent=11 // pred_check_branch
          %413 = sbr.rel (%p411) target = $region56
        $region55: #{tpu_custom_call.1} parent=11 // pred_region
          _
        $region56: #{tpu_custom_call.1} parent=11 // pred_fallthru
          _
        // Predicated region
        $region57: #{tpu_custom_call.1} parent=11 // pred_check
          %p414 = pneg %p300
        $region58: #{tpu_custom_call.1} parent=11 // pred_check_branch
          %416 = sbr.rel (%p414) target = $region60
        $region59: #{tpu_custom_call.1} parent=11 // pred_region
          _
        $region60: #{tpu_custom_call.1} parent=11 // pred_fallthru
          _
      $region12: #{tpu_custom_call.1} parent=5 // pred_fallthru
        _
      %p417 = scmp.lt.s32.totalorder %s22, 2
      // Predicated region
      $region61: #{tpu_custom_call.1} parent=5 // pred_check
        %p418 = pneg %p417
      $region62: #{tpu_custom_call.1} parent=5 // pred_check_branch
        %420 = sbr.rel (%p418) target = $region64
      $region63: #{tpu_custom_call.1} parent=5 // pred_region
        // Predicated region
        $region65: #{tpu_custom_call.1} parent=63 // pred_check
          %p421 = pneg %p42
        $region66: #{tpu_custom_call.1} parent=63 // pred_check_branch
          %423 = sbr.rel (%p421) target = $region68
        $region67: #{tpu_custom_call.1} parent=63 // pred_region
          %s424 = smul.u32 25, %s22
          %p425 = scmp.lt.s32.totalorder %s424, 49
          %s426 = scalar_select %p425, %s424, 49
          %s427 = smul.addr %s426, 8
          %s428 = scalar_lea.vmem %s0, %s427
          %s429 = smul.u32 25, %s22
        $region68: #{tpu_custom_call.1} parent=63 // pred_fallthru
          _
      $region64: #{tpu_custom_call.1} parent=5 // pred_fallthru
        _
      %p430 = scmp.le.s32.totalorder 1, %s22
      %p431 = scmp.lt.s32.totalorder %s22, 3
      %p432 = pnand %p430, %p431
      %p433 = pneg %p432
      // Predicated region
      $region69: #{tpu_custom_call.1} parent=5 // pred_check
        _
      $region70: #{tpu_custom_call.1} parent=5 // pred_check_branch
        %435 = sbr.rel (%p432) target = $region72
      $region71: #{tpu_custom_call.1} parent=5 // pred_region
        %s436 = ssub.s32 %s22, 1
        // Predicated region
        $region73: #{tpu_custom_call.1} parent=71 // pred_check
          %p437 = pneg %p111
        $region74: #{tpu_custom_call.1} parent=71 // pred_check_branch
          %439 = sbr.rel (%p437) target = $region76
        $region75: #{tpu_custom_call.1} parent=71 // pred_region
          %440 = dma.done [#allocation3], 1536
        $region76: #{tpu_custom_call.1} parent=71 // pred_fallthru
          _
        // Predicated region
        $region77: #{tpu_custom_call.1} parent=71 // pred_check
          %p441 = pneg %p153
        $region78: #{tpu_custom_call.1} parent=71 // pred_check_branch
          %443 = sbr.rel (%p441) target = $region80
        $region79: #{tpu_custom_call.1} parent=71 // pred_region
          %444 = dma.done [#allocation5], 1536
        $region80: #{tpu_custom_call.1} parent=71 // pred_fallthru
          _
        // Predicated region
        $region81: #{tpu_custom_call.1} parent=71 // pred_check
          %p445 = pneg %p195
        $region82: #{tpu_custom_call.1} parent=71 // pred_check_branch
          %447 = sbr.rel (%p445) target = $region84
        $region83: #{tpu_custom_call.1} parent=71 // pred_region
          %448 = dma.done [#allocation5], 3072
        $region84: #{tpu_custom_call.1} parent=71 // pred_fallthru
          _
        // Predicated region
        $region85: #{tpu_custom_call.1} parent=71 // pred_check
          %p449 = pneg %p237
        $region86: #{tpu_custom_call.1} parent=71 // pred_check_branch
          %451 = sbr.rel (%p449) target = $region88
        $region87: #{tpu_custom_call.1} parent=71 // pred_region
          %452 = dma.done [#allocation8], 3072
        $region88: #{tpu_custom_call.1} parent=71 // pred_fallthru
          _
        %s453 = smul.u32 25, %s27
        %p454 = scmp.lt.s32.totalorder %s453, 49
        %s455 = scalar_select %p454, %s453, 49
        %s456 = smul.addr %s455, 8
        %s457 = scalar_lea.vmem %s0, %s456
        %p458 = pneg %p48
        %p459 = pneg %p45
        %p460 = pneg %p69
        %p461 = pneg %p66
        %p462 = pneg %p90
        %p463 = pneg %p87
        %p464 = pneg %p111
        %p465 = pneg %p108
        %p466 = pneg %p132
        %p467 = pneg %p129
        %p468 = pneg %p153
        %p469 = pneg %p150
        %p470 = pneg %p174
        %p471 = pneg %p171
        %p472 = pneg %p195
        %p473 = pneg %p192
        %p474 = pneg %p216
        %p475 = pneg %p213
        %p476 = pneg %p237
        %p477 = pneg %p234
        %p478 = pneg %p258
        %p479 = pneg %p255
        %p480 = pneg %p279
        %p481 = pneg %p276
        %p482 = pneg %p300
        %p483 = pneg %p297
        %p484 = pneg %p326
        %p485 = pneg %p323
        %p486 = scmp.lt.s32.totalorder %s27, 1
        %s487 = scalar_select %p486, %s27, 1
        %s488 = smul.addr %s487, 24
        %s489 = smul.addr %s488, 8
        %s490 = scalar_lea.vmem %s13, %s489
        %s491 = smul.u32 25, %s27
        %p492 = scmp.lt.s32.totalorder %s491, 49
        %s493 = scalar_select %p492, %s491, 49
        %s494 = smul.addr %s493, 8
        %s495 = scalar_lea.vmem %s0, %s494
        %s496 = smul.u32 25, %s27
        %p497 = scmp.lt.s32.totalorder %s27, 1
        %s498 = scalar_select %p497, %s27, 1
        %s499 = smul.addr %s498, 24
        %s500 = smul.addr %s499, 8
        %s501 = scalar_lea.vmem %s13, %s500
        %v502 = vld [vmem:[%s495] sm:$0xff]
        %v503 = vld [vmem:[%s495 + $0x8] sm:$0xff]
        %v504 = vld [vmem:[%s495 + $0x10] sm:$0xff]
        %v505 = vld [vmem:[%s495 + $0x18] sm:$0xff]
        %v506 = vld [vmem:[%s495 + $0x20] sm:$0xff]
        %v507 = vld [vmem:[%s495 + $0x28] sm:$0xff]
        %v508 = vld [vmem:[%s495 + $0x30] sm:$0xff]
        %v509 = vld [vmem:[%s495 + $0x38] sm:$0xff]
        %v510 = vld [vmem:[%s495 + $0x40] sm:$0xff]
        %v511 = vld [vmem:[%s495 + $0x48] sm:$0xff]
        %v512 = vld [vmem:[%s495 + $0x50] sm:$0xff]
        %v513 = vld [vmem:[%s495 + $0x58] sm:$0xff]
        %v514 = vld [vmem:[%s495 + $0x60] sm:$0xff]
        %v515 = vld [vmem:[%s495 + $0x68] sm:$0xff]
        %v516 = vld [vmem:[%s495 + $0x70] sm:$0xff]
        %v517 = vld [vmem:[%s495 + $0x78] sm:$0xff]
        %v518 = vld [vmem:[%s495 + $0x80] sm:$0xff]
        %v519 = vld [vmem:[%s495 + $0x88] sm:$0xff]
        %v520 = vld [vmem:[%s495 + $0x90] sm:$0xff]
        %v521 = vld [vmem:[%s495 + $0x98] sm:$0xff]
        %v522 = vld [vmem:[%s495 + $0xa0] sm:$0xff]
        %v523 = vld [vmem:[%s495 + $0xa8] sm:$0xff]
        %v524 = vld [vmem:[%s495 + $0xb0] sm:$0xff]
        %v525 = vld [vmem:[%s495 + $0xb8] sm:$0xff]
        %v526 = vld [vmem:[%s495 + $0xc0] sm:$0xff]
        %v527 = vld [vmem:[%s2] sm:$0x1]
        %v528 = vld [vmem:[%s1] sm:$0xf]
        %s529 = scalar_lea.vmem %s1, 4
        %v530 = vld [vmem:[%s529] sm:$0xf]
        %vm556 = vcmask 1046528
        %v557 = vrot.slane %v502, 1
        %v558 = vrot.slane %v503, 1
        %v559 = vsel %vm556, %v557, %v558
        %v560 = vrot.slane %v504, 1
        %v561 = vsel %vm556, %v558, %v560
        %v562 = vrot.slane %v505, 1
        %v563 = vsel %vm556, %v560, %v562
        %v564 = vrot.slane %v506, 1
        %v565 = vsel %vm556, %v562, %v564
        %v566 = vrot.slane %v507, 1
        %v567 = vsel %vm556, %v564, %v566
        %v568 = vrot.slane %v508, 1
        %v569 = vsel %vm556, %v566, %v568
        %v570 = vrot.slane %v509, 1
        %v571 = vsel %vm556, %v568, %v570
        %v572 = vrot.slane %v510, 1
        %v573 = vsel %vm556, %v570, %v572
        %v574 = vrot.slane %v511, 1
        %v575 = vsel %vm556, %v572, %v574
        %v576 = vrot.slane %v512, 1
        %v577 = vsel %vm556, %v574, %v576
        %v578 = vrot.slane %v513, 1
        %v579 = vsel %vm556, %v576, %v578
        %v580 = vrot.slane %v514, 1
        %v581 = vsel %vm556, %v578, %v580
        %v582 = vrot.slane %v515, 1
        %v583 = vsel %vm556, %v580, %v582
        %v584 = vrot.slane %v516, 1
        %v585 = vsel %vm556, %v582, %v584
        %v586 = vrot.slane %v517, 1
        %v587 = vsel %vm556, %v584, %v586
        %v588 = vrot.slane %v518, 1
        %v589 = vsel %vm556, %v586, %v588
        %v590 = vrot.slane %v519, 1
        %v591 = vsel %vm556, %v588, %v590
        %v592 = vrot.slane %v520, 1
        %v593 = vsel %vm556, %v590, %v592
        %v594 = vrot.slane %v521, 1
        %v595 = vsel %vm556, %v592, %v594
        %v596 = vrot.slane %v522, 1
        %v597 = vsel %vm556, %v594, %v596
        %v598 = vrot.slane %v523, 1
        %v599 = vsel %vm556, %v596, %v598
        %v600 = vrot.slane %v524, 1
        %v601 = vsel %vm556, %v598, %v600
        %v602 = vrot.slane %v525, 1
        %v603 = vsel %vm556, %v600, %v602
        %v604 = vrot.slane %v526, 1
        %v605 = vsel %vm556, %v602, %v604
        %vm606 = vcmask 31744
        %v607 = vsel %vm606, %v559, 0
        %v609 = vsel %vm606, %v561, 0
        %v611 = vsel %vm606, %v563, 0
        %v613 = vsel %vm606, %v565, 0
        %v615 = vsel %vm606, %v567, 0
        %v617 = vsel %vm606, %v569, 0
        %v619 = vsel %vm606, %v571, 0
        %v621 = vsel %vm606, %v573, 0
        %v623 = vsel %vm606, %v575, 0
        %v625 = vsel %vm606, %v577, 0
        %v627 = vsel %vm606, %v579, 0
        %v629 = vsel %vm606, %v581, 0
        %v631 = vsel %vm606, %v583, 0
        %v633 = vsel %vm606, %v585, 0
        %v635 = vsel %vm606, %v587, 0
        %v637 = vsel %vm606, %v589, 0
        %v639 = vsel %vm606, %v591, 0
        %v641 = vsel %vm606, %v593, 0
        %v643 = vsel %vm606, %v595, 0
        %v645 = vsel %vm606, %v597, 0
        %v647 = vsel %vm606, %v599, 0
        %v649 = vsel %vm606, %v601, 0
        %v651 = vsel %vm606, %v603, 0
        %v653 = vsel %vm606, %v605, 0
        %v655 = vsel %vm606, %v604, 0
        %vm657 = vcmask 1043456
        %v659 = vsel %vm657, %v530, 0
        %661 = vmatprep.subr.mxu0 0.0
        %662 = vmatpush1.msra.mxu0 %v659
        %663 = vmatprep.subr.mxu0 0.0
        %664 = vmatpush1.msra.mxu0 0.0
        %665 = vmatprep.subr.mxu0 0.0
        %666 = vmatpush1.msra.mxu0 0.0
        %667 = vmatprep.subr.mxu0 0.0
        %668 = vmatpush1.msra.mxu0 0.0
        %669 = vmatprep.subr.mxu0 0.0
        %670 = vmatpush1.msra.mxu0 0.0
        %671 = vmatprep.subr.mxu0 0.0
        %672 = vmatpush1.msra.mxu0 0.0
        %673 = vmatprep.subr.mxu0 0.0
        %674 = vmatpush1.msra.mxu0 0.0
        %675 = vmatprep.subr.mxu0 0.0
        %676 = vmatpush1.msra.mxu0 0.0
        %677 = vmatprep.subr.mxu0 0.0
        %678 = vmatpush1.msra.mxu0 0.0
        %679 = vmatprep.subr.mxu0 0.0
        %680 = vmatpush1.msra.mxu0 0.0
        %681 = vmatprep.subr.mxu0 0.0
        %682 = vmatpush1.msra.mxu0 0.0
        %683 = vmatprep.subr.mxu0 0.0
        %684 = vmatpush1.msra.mxu0 0.0
        %685 = vmatprep.subr.mxu0 0.0
        %686 = vmatpush1.msra.mxu0 0.0
        %687 = vmatprep.subr.mxu0 0.0
        %688 = vmatpush1.msra.mxu0 0.0
        %689 = vmatprep.subr.mxu0 0.0
        %690 = vmatpush1.msra.mxu0 0.0
        %691 = vmatprep.subr.mxu0 0.0
        %692 = vmatpush1.msra.mxu0 0.0
        %693 = vmatprep.subr.mxu0 0.0
        %694 = vmatpush1.msra.mxu0 0.0
        %695 = vmatprep.subr.mxu0 0.0
        %696 = vmatpush1.msra.mxu0 0.0
        %697 = vmatprep.subr.mxu0 0.0
        %698 = vmatpush1.msra.mxu0 0.0
        %699 = vmatprep.subr.mxu0 0.0
        %700 = vmatpush1.msra.mxu0 0.0
        %701 = vmatprep.subr.mxu0 0.0
        %702 = vmatpush1.msra.mxu0 0.0
        %703 = vmatprep.subr.mxu0 0.0
        %704 = vmatpush1.msra.mxu0 0.0
        %705 = vmatprep.subr.mxu0 0.0
        %706 = vmatpush1.msra.mxu0 0.0
        %707 = vmatprep.subr.mxu0 0.0
        %708 = vmatpush1.msra.mxu0 0.0
        %709 = vmatprep.subr.mxu0 0.0
        %710 = vmatpush1.msra.mxu0 0.0
        %711 = vmatprep.subr.mxu0 0.0
        %712 = vmatpush1.msra.mxu0 0.0
        %713 = vmatprep.subr.mxu0 0.0
        %714 = vmatpush1.msra.mxu0 0.0
        %715 = vmatprep.subr.mxu0 0.0
        %716 = vmatpush1.msra.mxu0 0.0
        %717 = vmatprep.subr.mxu0 0.0
        %718 = vmatpush1.msra.mxu0 0.0
        %719 = vmatprep.subr.mxu0 0.0
        %720 = vmatpush1.msra.mxu0 0.0
        %721 = vmatprep.subr.mxu0 0.0
        %722 = vmatpush1.msra.mxu0 0.0
        %723 = vmatprep.subr.mxu0 0.0
        %724 = vmatpush1.msra.mxu0 0.0
        %725 = vmatprep.mubr.f32.mxu0 0.0
        %726 = vmatmul.mubr.f32.gmra.mrb[0].mxu0 %v607
        %v727 = vpop.f32.mrb[0].mxu0
        %v728 = vadd.f32 0.0, %v727
        %v729 = vpop.f32.mrb[0].mxu0
        %730 = vmatprep.mubr.f32.mxu0 0.0
        %731 = vmatmul.mubr.f32.gmra.mrb[0].mxu0 %v609
        %v732 = vpop.f32.mrb[0].mxu0
        %v733 = vadd.f32 0.0, %v732
        %v734 = vpop.f32.mrb[0].mxu0
        %735 = vmatprep.mubr.f32.mxu0 0.0
        %736 = vmatmul.mubr.f32.gmra.mrb[0].mxu0 %v611
        %v737 = vpop.f32.mrb[0].mxu0
        %v738 = vadd.f32 0.0, %v737
        %v739 = vpop.f32.mrb[0].mxu0
        %740 = vmatprep.mubr.f32.mxu0 0.0
        %741 = vmatmul.mubr.f32.gmra.mrb[0].mxu0 %v613
        %v742 = vpop.f32.mrb[0].mxu0
        %v743 = vadd.f32 0.0, %v742
        %v744 = vpop.f32.mrb[0].mxu0
        %745 = vmatprep.mubr.f32.mxu0 0.0
        %746 = vmatmul.mubr.f32.gmra.mrb[0].mxu0 %v615
        %v747 = vpop.f32.mrb[0].mxu0
        %v748 = vadd.f32 0.0, %v747
        %v749 = vpop.f32.mrb[0].mxu0
        %750 = vmatprep.mubr.f32.mxu0 0.0
        %751 = vmatmul.mubr.f32.gmra.mrb[0].mxu0 %v617
        %v752 = vpop.f32.mrb[0].mxu0
        %v753 = vadd.f32 0.0, %v752
        %v754 = vpop.f32.mrb[0].mxu0
        %755 = vmatprep.mubr.f32.mxu0 0.0
        %756 = vmatmul.mubr.f32.gmra.mrb[0].mxu0 %v619
        %v757 = vpop.f32.mrb[0].mxu0
        %v758 = vadd.f32 0.0, %v757
        %v759 = vpop.f32.mrb[0].mxu0
        %760 = vmatprep.mubr.f32.mxu0 0.0
        %761 = vmatmul.mubr.f32.gmra.mrb[0].mxu0 %v621
        %v762 = vpop.f32.mrb[0].mxu0
        %v763 = vadd.f32 0.0, %v762
        %v764 = vpop.f32.mrb[0].mxu0
        %765 = vmatprep.mubr.f32.mxu0 0.0
        %766 = vmatmul.mubr.f32.gmra.mrb[0].mxu0 %v623
        %v767 = vpop.f32.mrb[0].mxu0
        %v768 = vadd.f32 0.0, %v767
        %v769 = vpop.f32.mrb[0].mxu0
        %770 = vmatprep.mubr.f32.mxu0 0.0
        %771 = vmatmul.mubr.f32.gmra.mrb[0].mxu0 %v625
        %v772 = vpop.f32.mrb[0].mxu0
        %v773 = vadd.f32 0.0, %v772
        %v774 = vpop.f32.mrb[0].mxu0
        %775 = vmatprep.mubr.f32.mxu0 0.0
        %776 = vmatmul.mubr.f32.gmra.mrb[0].mxu0 %v627
        %v777 = vpop.f32.mrb[0].mxu0
        %v778 = vadd.f32 0.0, %v777
        %v779 = vpop.f32.mrb[0].mxu0
        %780 = vmatprep.mubr.f32.mxu0 0.0
        %781 = vmatmul.mubr.f32.gmra.mrb[0].mxu0 %v629
        %v782 = vpop.f32.mrb[0].mxu0
        %v783 = vadd.f32 0.0, %v782
        %v784 = vpop.f32.mrb[0].mxu0
        %785 = vmatprep.mubr.f32.mxu0 0.0
        %786 = vmatmul.mubr.f32.gmra.mrb[0].mxu0 %v631
        %v787 = vpop.f32.mrb[0].mxu0
        %v788 = vadd.f32 0.0, %v787
        %v789 = vpop.f32.mrb[0].mxu0
        %790 = vmatprep.mubr.f32.mxu0 0.0
        %791 = vmatmul.mubr.f32.gmra.mrb[0].mxu0 %v633
        %v792 = vpop.f32.mrb[0].mxu0
        %v793 = vadd.f32 0.0, %v792
        %v794 = vpop.f32.mrb[0].mxu0
        %795 = vmatprep.mubr.f32.mxu0 0.0
        %796 = vmatmul.mubr.f32.gmra.mrb[0].mxu0 %v635
        %v797 = vpop.f32.mrb[0].mxu0
        %v798 = vadd.f32 0.0, %v797
        %v799 = vpop.f32.mrb[0].mxu0
        %800 = vmatprep.mubr.f32.mxu0 0.0
        %801 = vmatmul.mubr.f32.gmra.mrb[0].mxu0 %v637
        %v802 = vpop.f32.mrb[0].mxu0
        %v803 = vadd.f32 0.0, %v802
        %v804 = vpop.f32.mrb[0].mxu0
        %805 = vmatprep.mubr.f32.mxu0 0.0
        %806 = vmatmul.mubr.f32.gmra.mrb[0].mxu0 %v639
        %v807 = vpop.f32.mrb[0].mxu0
        %v808 = vadd.f32 0.0, %v807
        %v809 = vpop.f32.mrb[0].mxu0
        %810 = vmatprep.mubr.f32.mxu0 0.0
        %811 = vmatmul.mubr.f32.gmra.mrb[0].mxu0 %v641
        %v812 = vpop.f32.mrb[0].mxu0
        %v813 = vadd.f32 0.0, %v812
        %v814 = vpop.f32.mrb[0].mxu0
        %815 = vmatprep.mubr.f32.mxu0 0.0
        %816 = vmatmul.mubr.f32.gmra.mrb[0].mxu0 %v643
        %v817 = vpop.f32.mrb[0].mxu0
        %v818 = vadd.f32 0.0, %v817
        %v819 = vpop.f32.mrb[0].mxu0
        %820 = vmatprep.mubr.f32.mxu0 0.0
        %821 = vmatmul.mubr.f32.gmra.mrb[0].mxu0 %v645
        %v822 = vpop.f32.mrb[0].mxu0
        %v823 = vadd.f32 0.0, %v822
        %v824 = vpop.f32.mrb[0].mxu0
        %825 = vmatprep.mubr.f32.mxu0 0.0
        %826 = vmatmul.mubr.f32.gmra.mrb[0].mxu0 %v647
        %v827 = vpop.f32.mrb[0].mxu0
        %v828 = vadd.f32 0.0, %v827
        %v829 = vpop.f32.mrb[0].mxu0
        %830 = vmatprep.mubr.f32.mxu0 0.0
        %831 = vmatmul.mubr.f32.gmra.mrb[0].mxu0 %v649
        %v832 = vpop.f32.mrb[0].mxu0
        %v833 = vadd.f32 0.0, %v832
        %v834 = vpop.f32.mrb[0].mxu0
        %835 = vmatprep.mubr.f32.mxu0 0.0
        %836 = vmatmul.mubr.f32.gmra.mrb[0].mxu0 %v651
        %v837 = vpop.f32.mrb[0].mxu0
        %v838 = vadd.f32 0.0, %v837
        %v839 = vpop.f32.mrb[0].mxu0
        %840 = vmatprep.mubr.f32.mxu0 0.0
        %841 = vmatmul.mubr.f32.gmra.mrb[0].mxu0 %v653
        %v842 = vpop.f32.mrb[0].mxu0
        %v843 = vadd.f32 0.0, %v842
        %v844 = vpop.f32.mrb[0].mxu0
        %845 = vmatprep.mubr.f32.mxu0 0.0
        %846 = vmatmul.mubr.f32.gmra.mrb[0].mxu0 %v655
        %v847 = vpop.f32.mrb[0].mxu0
        %v848 = vadd.f32 0.0, %v847
        %v849 = vpop.f32.mrb[0].mxu0
        %850 = vdwg.mxu0
        %v851 = vsel %vm606, %v502, 0
        %v853 = vsel %vm606, %v503, 0
        %v855 = vsel %vm606, %v504, 0
        %v857 = vsel %vm606, %v505, 0
        %v859 = vsel %vm606, %v506, 0
        %v861 = vsel %vm606, %v507, 0
        %v863 = vsel %vm606, %v508, 0
        %v865 = vsel %vm606, %v509, 0
        %v867 = vsel %vm606, %v510, 0
        %v869 = vsel %vm606, %v511, 0
        %v871 = vsel %vm606, %v512, 0
        %v873 = vsel %vm606, %v513, 0
        %v875 = vsel %vm606, %v514, 0
        %v877 = vsel %vm606, %v515, 0
        %v879 = vsel %vm606, %v516, 0
        %v881 = vsel %vm606, %v517, 0
        %v883 = vsel %vm606, %v518, 0
        %v885 = vsel %vm606, %v519, 0
        %v887 = vsel %vm606, %v520, 0
        %v889 = vsel %vm606, %v521, 0
        %v891 = vsel %vm606, %v522, 0
        %v893 = vsel %vm606, %v523, 0
        %v895 = vsel %vm606, %v524, 0
        %v897 = vsel %vm606, %v525, 0
        %v899 = vsel %vm606, %v526, 0
        %v902 = vsel %vm657, %v528, 0
        %904 = vmatprep.subr.mxu0 0.0
        %905 = vmatpush1.msra.mxu0 %v902
        %906 = vmatprep.subr.mxu0 0.0
        %907 = vmatpush1.msra.mxu0 0.0
        %908 = vmatprep.subr.mxu0 0.0
        %909 = vmatpush1.msra.mxu0 0.0
        %910 = vmatprep.subr.mxu0 0.0
        %911 = vmatpush1.msra.mxu0 0.0
        %912 = vmatprep.subr.mxu0 0.0
        %913 = vmatpush1.msra.mxu0 0.0
        %914 = vmatprep.subr.mxu0 0.0
        %915 = vmatpush1.msra.mxu0 0.0
        %916 = vmatprep.subr.mxu0 0.0
        %917 = vmatpush1.msra.mxu0 0.0
        %918 = vmatprep.subr.mxu0 0.0
        %919 = vmatpush1.msra.mxu0 0.0
        %920 = vmatprep.subr.mxu0 0.0
        %921 = vmatpush1.msra.mxu0 0.0
        %922 = vmatprep.subr.mxu0 0.0
        %923 = vmatpush1.msra.mxu0 0.0
        %924 = vmatprep.subr.mxu0 0.0
        %925 = vmatpush1.msra.mxu0 0.0
        %926 = vmatprep.subr.mxu0 0.0
        %927 = vmatpush1.msra.mxu0 0.0
        %928 = vmatprep.subr.mxu0 0.0
        %929 = vmatpush1.msra.mxu0 0.0
        %930 = vmatprep.subr.mxu0 0.0
        %931 = vmatpush1.msra.mxu0 0.0
        %932 = vmatprep.subr.mxu0 0.0
        %933 = vmatpush1.msra.mxu0 0.0
        %934 = vmatprep.subr.mxu0 0.0
        %935 = vmatpush1.msra.mxu0 0.0
        %936 = vmatprep.subr.mxu0 0.0
        %937 = vmatpush1.msra.mxu0 0.0
        %938 = vmatprep.subr.mxu0 0.0
        %939 = vmatpush1.msra.mxu0 0.0
        %940 = vmatprep.subr.mxu0 0.0
        %941 = vmatpush1.msra.mxu0 0.0
        %942 = vmatprep.subr.mxu0 0.0
        %943 = vmatpush1.msra.mxu0 0.0
        %944 = vmatprep.subr.mxu0 0.0
        %945 = vmatpush1.msra.mxu0 0.0
        %946 = vmatprep.subr.mxu0 0.0
        %947 = vmatpush1.msra.mxu0 0.0
        %948 = vmatprep.subr.mxu0 0.0
        %949 = vmatpush1.msra.mxu0 0.0
        %950 = vmatprep.subr.mxu0 0.0
        %951 = vmatpush1.msra.mxu0 0.0
        %952 = vmatprep.subr.mxu0 0.0
        %953 = vmatpush1.msra.mxu0 0.0
        %954 = vmatprep.subr.mxu0 0.0
        %955 = vmatpush1.msra.mxu0 0.0
        %956 = vmatprep.subr.mxu0 0.0
        %957 = vmatpush1.msra.mxu0 0.0
        %958 = vmatprep.subr.mxu0 0.0
        %959 = vmatpush1.msra.mxu0 0.0
        %960 = vmatprep.subr.mxu0 0.0
        %961 = vmatpush1.msra.mxu0 0.0
        %962 = vmatprep.subr.mxu0 0.0
        %963 = vmatpush1.msra.mxu0 0.0
        %964 = vmatprep.subr.mxu0 0.0
        %965 = vmatpush1.msra.mxu0 0.0
        %966 = vmatprep.subr.mxu0 0.0
        %967 = vmatpush1.msra.mxu0 0.0
        %968 = vmatprep.mubr.f32.mxu0 0.0
        %969 = vmatmul.mubr.f32.gmra.mrb[0].mxu0 %v851
        %v970 = vpop.f32.mrb[0].mxu0
        %v971 = vadd.f32 %v728, %v970
        %v972 = vpop.f32.mrb[0].mxu0
        %973 = vmatprep.mubr.f32.mxu0 0.0
        %974 = vmatmul.mubr.f32.gmra.mrb[0].mxu0 %v853
        %v975 = vpop.f32.mrb[0].mxu0
        %v976 = vadd.f32 %v733, %v975
        %v977 = vpop.f32.mrb[0].mxu0
        %978 = vmatprep.mubr.f32.mxu0 0.0
        %979 = vmatmul.mubr.f32.gmra.mrb[0].mxu0 %v855
        %v980 = vpop.f32.mrb[0].mxu0
        %v981 = vadd.f32 %v738, %v980
        %v982 = vpop.f32.mrb[0].mxu0
        %983 = vmatprep.mubr.f32.mxu0 0.0
        %984 = vmatmul.mubr.f32.gmra.mrb[0].mxu0 %v857
        %v985 = vpop.f32.mrb[0].mxu0
        %v986 = vadd.f32 %v743, %v985
        %v987 = vpop.f32.mrb[0].mxu0
        %988 = vmatprep.mubr.f32.mxu0 0.0
        %989 = vmatmul.mubr.f32.gmra.mrb[0].mxu0 %v859
        %v990 = vpop.f32.mrb[0].mxu0
        %v991 = vadd.f32 %v748, %v990
        %v992 = vpop.f32.mrb[0].mxu0
        %993 = vmatprep.mubr.f32.mxu0 0.0
        %994 = vmatmul.mubr.f32.gmra.mrb[0].mxu0 %v861
        %v995 = vpop.f32.mrb[0].mxu0
        %v996 = vadd.f32 %v753, %v995
        %v997 = vpop.f32.mrb[0].mxu0
        %998 = vmatprep.mubr.f32.mxu0 0.0
        %999 = vmatmul.mubr.f32.gmra.mrb[0].mxu0 %v863
        %v1000 = vpop.f32.mrb[0].mxu0
        %v1001 = vadd.f32 %v758, %v1000
        %v1002 = vpop.f32.mrb[0].mxu0
        %1003 = vmatprep.mubr.f32.mxu0 0.0
        %1004 = vmatmul.mubr.f32.gmra.mrb[0].mxu0 %v865
        %v1005 = vpop.f32.mrb[0].mxu0
        %v1006 = vadd.f32 %v763, %v1005
        %v1007 = vpop.f32.mrb[0].mxu0
        %1008 = vmatprep.mubr.f32.mxu0 0.0
        %1009 = vmatmul.mubr.f32.gmra.mrb[0].mxu0 %v867
        %v1010 = vpop.f32.mrb[0].mxu0
        %v1011 = vadd.f32 %v768, %v1010
        %v1012 = vpop.f32.mrb[0].mxu0
        %1013 = vmatprep.mubr.f32.mxu0 0.0
        %1014 = vmatmul.mubr.f32.gmra.mrb[0].mxu0 %v869
        %v1015 = vpop.f32.mrb[0].mxu0
        %v1016 = vadd.f32 %v773, %v1015
        %v1017 = vpop.f32.mrb[0].mxu0
        %1018 = vmatprep.mubr.f32.mxu0 0.0
        %1019 = vmatmul.mubr.f32.gmra.mrb[0].mxu0 %v871
        %v1020 = vpop.f32.mrb[0].mxu0
        %v1021 = vadd.f32 %v778, %v1020
        %v1022 = vpop.f32.mrb[0].mxu0
        %1023 = vmatprep.mubr.f32.mxu0 0.0
        %1024 = vmatmul.mubr.f32.gmra.mrb[0].mxu0 %v873
        %v1025 = vpop.f32.mrb[0].mxu0
        %v1026 = vadd.f32 %v783, %v1025
        %v1027 = vpop.f32.mrb[0].mxu0
        %1028 = vmatprep.mubr.f32.mxu0 0.0
        %1029 = vmatmul.mubr.f32.gmra.mrb[0].mxu0 %v875
        %v1030 = vpop.f32.mrb[0].mxu0
        %v1031 = vadd.f32 %v788, %v1030
        %v1032 = vpop.f32.mrb[0].mxu0
        %1033 = vmatprep.mubr.f32.mxu0 0.0
        %1034 = vmatmul.mubr.f32.gmra.mrb[0].mxu0 %v877
        %v1035 = vpop.f32.mrb[0].mxu0
        %v1036 = vadd.f32 %v793, %v1035
        %v1037 = vpop.f32.mrb[0].mxu0
        %1038 = vmatprep.mubr.f32.mxu0 0.0
        %1039 = vmatmul.mubr.f32.gmra.mrb[0].mxu0 %v879
        %v1040 = vpop.f32.mrb[0].mxu0
        %v1041 = vadd.f32 %v798, %v1040
        %v1042 = vpop.f32.mrb[0].mxu0
        %1043 = vmatprep.mubr.f32.mxu0 0.0
        %1044 = vmatmul.mubr.f32.gmra.mrb[0].mxu0 %v881
        %v1045 = vpop.f32.mrb[0].mxu0
        %v1046 = vadd.f32 %v803, %v1045
        %v1047 = vpop.f32.mrb[0].mxu0
        %1048 = vmatprep.mubr.f32.mxu0 0.0
        %1049 = vmatmul.mubr.f32.gmra.mrb[0].mxu0 %v883
        %v1050 = vpop.f32.mrb[0].mxu0
        %v1051 = vadd.f32 %v808, %v1050
        %v1052 = vpop.f32.mrb[0].mxu0
        %1053 = vmatprep.mubr.f32.mxu0 0.0
        %1054 = vmatmul.mubr.f32.gmra.mrb[0].mxu0 %v885
        %v1055 = vpop.f32.mrb[0].mxu0
        %v1056 = vadd.f32 %v813, %v1055
        %v1057 = vpop.f32.mrb[0].mxu0
        %1058 = vmatprep.mubr.f32.mxu0 0.0
        %1059 = vmatmul.mubr.f32.gmra.mrb[0].mxu0 %v887
        %v1060 = vpop.f32.mrb[0].mxu0
        %v1061 = vadd.f32 %v818, %v1060
        %v1062 = vpop.f32.mrb[0].mxu0
        %1063 = vmatprep.mubr.f32.mxu0 0.0
        %1064 = vmatmul.mubr.f32.gmra.mrb[0].mxu0 %v889
        %v1065 = vpop.f32.mrb[0].mxu0
        %v1066 = vadd.f32 %v823, %v1065
        %v1067 = vpop.f32.mrb[0].mxu0
        %1068 = vmatprep.mubr.f32.mxu0 0.0
        %1069 = vmatmul.mubr.f32.gmra.mrb[0].mxu0 %v891
        %v1070 = vpop.f32.mrb[0].mxu0
        %v1071 = vadd.f32 %v828, %v1070
        %v1072 = vpop.f32.mrb[0].mxu0
        %1073 = vmatprep.mubr.f32.mxu0 0.0
        %1074 = vmatmul.mubr.f32.gmra.mrb[0].mxu0 %v893
        %v1075 = vpop.f32.mrb[0].mxu0
        %v1076 = vadd.f32 %v833, %v1075
        %v1077 = vpop.f32.mrb[0].mxu0
        %1078 = vmatprep.mubr.f32.mxu0 0.0
        %1079 = vmatmul.mubr.f32.gmra.mrb[0].mxu0 %v895
        %v1080 = vpop.f32.mrb[0].mxu0
        %v1081 = vadd.f32 %v838, %v1080
        %v1082 = vpop.f32.mrb[0].mxu0
        %1083 = vmatprep.mubr.f32.mxu0 0.0
        %1084 = vmatmul.mubr.f32.gmra.mrb[0].mxu0 %v897
        %v1085 = vpop.f32.mrb[0].mxu0
        %v1086 = vadd.f32 %v843, %v1085
        %v1087 = vpop.f32.mrb[0].mxu0
        %1088 = vmatprep.mubr.f32.mxu0 0.0
        %1089 = vmatmul.mubr.f32.gmra.mrb[0].mxu0 %v899
        %v1090 = vpop.f32.mrb[0].mxu0
        %v1091 = vadd.f32 %v848, %v1090
        %v1092 = vpop.f32.mrb[0].mxu0
        %1093 = vdwg.mxu0
        %s1094 = scalar_lea.vmem %s1, 8
        %v1095 = vld [vmem:[%s1094] sm:$0xf]
        %vm1096 = vcmask 1045504
        %v1097 = vrot.slane %v502, 2
        %v1098 = vrot.slane %v503, 2
        %v1099 = vsel %vm1096, %v1097, %v1098
        %v1100 = vrot.slane %v504, 2
        %v1101 = vsel %vm1096, %v1098, %v1100
        %v1102 = vrot.slane %v505, 2
        %v1103 = vsel %vm1096, %v1100, %v1102
        %v1104 = vrot.slane %v506, 2
        %v1105 = vsel %vm1096, %v1102, %v1104
        %v1106 = vrot.slane %v507, 2
        %v1107 = vsel %vm1096, %v1104, %v1106
        %v1108 = vrot.slane %v508, 2
        %v1109 = vsel %vm1096, %v1106, %v1108
        %v1110 = vrot.slane %v509, 2
        %v1111 = vsel %vm1096, %v1108, %v1110
        %v1112 = vrot.slane %v510, 2
        %v1113 = vsel %vm1096, %v1110, %v1112
        %v1114 = vrot.slane %v511, 2
        %v1115 = vsel %vm1096, %v1112, %v1114
        %v1116 = vrot.slane %v512, 2
        %v1117 = vsel %vm1096, %v1114, %v1116
        %v1118 = vrot.slane %v513, 2
        %v1119 = vsel %vm1096, %v1116, %v1118
        %v1120 = vrot.slane %v514, 2
        %v1121 = vsel %vm1096, %v1118, %v1120
        %v1122 = vrot.slane %v515, 2
        %v1123 = vsel %vm1096, %v1120, %v1122
        %v1124 = vrot.slane %v516, 2
        %v1125 = vsel %vm1096, %v1122, %v1124
        %v1126 = vrot.slane %v517, 2
        %v1127 = vsel %vm1096, %v1124, %v1126
        %v1128 = vrot.slane %v518, 2
        %v1129 = vsel %vm1096, %v1126, %v1128
        %v1130 = vrot.slane %v519, 2
        %v1131 = vsel %vm1096, %v1128, %v1130
        %v1132 = vrot.slane %v520, 2
        %v1133 = vsel %vm1096, %v1130, %v1132
        %v1134 = vrot.slane %v521, 2
        %v1135 = vsel %vm1096, %v1132, %v1134
        %v1136 = vrot.slane %v522, 2
        %v1137 = vsel %vm1096, %v1134, %v1136
        %v1138 = vrot.slane %v523, 2
        %v1139 = vsel %vm1096, %v1136, %v1138
        %v1140 = vrot.slane %v524, 2
        %v1141 = vsel %vm1096, %v1138, %v1140
        %v1142 = vrot.slane %v525, 2
        %v1143 = vsel %vm1096, %v1140, %v1142
        %v1144 = vrot.slane %v526, 2
        %v1145 = vsel %vm1096, %v1142, %v1144
        %v1146 = vsel %vm606, %v1099, 0
        %v1148 = vsel %vm606, %v1101, 0
        %v1150 = vsel %vm606, %v1103, 0
        %v1152 = vsel %vm606, %v1105, 0
        %v1154 = vsel %vm606, %v1107, 0
        %v1156 = vsel %vm606, %v1109, 0
        %v1158 = vsel %vm606, %v1111, 0
        %v1160 = vsel %vm606, %v1113, 0
        %v1162 = vsel %vm606, %v1115, 0
        %v1164 = vsel %vm606, %v1117, 0
        %v1166 = vsel %vm606, %v1119, 0
        %v1168 = vsel %vm606, %v1121, 0
        %v1170 = vsel %vm606, %v1123, 0
        %v1172 = vsel %vm606, %v1125, 0
        %v1174 = vsel %vm606, %v1127, 0
        %v1176 = vsel %vm606, %v1129, 0
        %v1178 = vsel %vm606, %v1131, 0
        %v1180 = vsel %vm606, %v1133, 0
        %v1182 = vsel %vm606, %v1135, 0
        %v1184 = vsel %vm606, %v1137, 0
        %v1186 = vsel %vm606, %v1139, 0
        %v1188 = vsel %vm606, %v1141, 0
        %v1190 = vsel %vm606, %v1143, 0
        %v1192 = vsel %vm606, %v1145, 0
        %v1194 = vsel %vm606, %v1144, 0
        %v1197 = vsel %vm657, %v1095, 0
        %1199 = vmatprep.subr.mxu0 0.0
        %1200 = vmatpush1.msra.mxu0 %v1197
        %1201 = vmatprep.subr.mxu0 0.0
        %1202 = vmatpush1.msra.mxu0 0.0
        %1203 = vmatprep.subr.mxu0 0.0
        %1204 = vmatpush1.msra.mxu0 0.0
        %1205 = vmatprep.subr.mxu0 0.0
        %1206 = vmatpush1.msra.mxu0 0.0
        %1207 = vmatprep.subr.mxu0 0.0
        %1208 = vmatpush1.msra.mxu0 0.0
        %1209 = vmatprep.subr.mxu0 0.0
        %1210 = vmatpush1.msra.mxu0 0.0
        %1211 = vmatprep.subr.mxu0 0.0
        %1212 = vmatpush1.msra.mxu0 0.0
        %1213 = vmatprep.subr.mxu0 0.0
        %1214 = vmatpush1.msra.mxu0 0.0
        %1215 = vmatprep.subr.mxu0 0.0
        %1216 = vmatpush1.msra.mxu0 0.0
        %1217 = vmatprep.subr.mxu0 0.0
        %1218 = vmatpush1.msra.mxu0 0.0
        %1219 = vmatprep.subr.mxu0 0.0
        %1220 = vmatpush1.msra.mxu0 0.0
        %1221 = vmatprep.subr.mxu0 0.0
        %1222 = vmatpush1.msra.mxu0 0.0
        %1223 = vmatprep.subr.mxu0 0.0
        %1224 = vmatpush1.msra.mxu0 0.0
        %1225 = vmatprep.subr.mxu0 0.0
        %1226 = vmatpush1.msra.mxu0 0.0
        %1227 = vmatprep.subr.mxu0 0.0
        %1228 = vmatpush1.msra.mxu0 0.0
        %1229 = vmatprep.subr.mxu0 0.0
        %1230 = vmatpush1.msra.mxu0 0.0
        %1231 = vmatprep.subr.mxu0 0.0
        %1232 = vmatpush1.msra.mxu0 0.0
        %1233 = vmatprep.subr.mxu0 0.0
        %1234 = vmatpush1.msra.mxu0 0.0
        %1235 = vmatprep.subr.mxu0 0.0
        %1236 = vmatpush1.msra.mxu0 0.0
        %1237 = vmatprep.subr.mxu0 0.0
        %1238 = vmatpush1.msra.mxu0 0.0
        %1239 = vmatprep.subr.mxu0 0.0
        %1240 = vmatpush1.msra.mxu0 0.0
        %1241 = vmatprep.subr.mxu0 0.0
        %1242 = vmatpush1.msra.mxu0 0.0
        %1243 = vmatprep.subr.mxu0 0.0
        %1244 = vmatpush1.msra.mxu0 0.0
        %1245 = vmatprep.subr.mxu0 0.0
        %1246 = vmatpush1.msra.mxu0 0.0
        %1247 = vmatprep.subr.mxu0 0.0
        %1248 = vmatpush1.msra.mxu0 0.0
        %1249 = vmatprep.subr.mxu0 0.0
        %1250 = vmatpush1.msra.mxu0 0.0
        %1251 = vmatprep.subr.mxu0 0.0
        %1252 = vmatpush1.msra.mxu0 0.0
        %1253 = vmatprep.subr.mxu0 0.0
        %1254 = vmatpush1.msra.mxu0 0.0
        %1255 = vmatprep.subr.mxu0 0.0
        %1256 = vmatpush1.msra.mxu0 0.0
        %1257 = vmatprep.subr.mxu0 0.0
        %1258 = vmatpush1.msra.mxu0 0.0
        %1259 = vmatprep.subr.mxu0 0.0
        %1260 = vmatpush1.msra.mxu0 0.0
        %1261 = vmatprep.subr.mxu0 0.0
        %1262 = vmatpush1.msra.mxu0 0.0
        %1263 = vmatprep.mubr.f32.mxu0 0.0
        %1264 = vmatmul.mubr.f32.gmra.mrb[0].mxu0 %v1146
        %v1265 = vpop.f32.mrb[0].mxu0
        %v1266 = vadd.f32 0.0, %v1265
        %v1267 = vpop.f32.mrb[0].mxu0
        %1268 = vmatprep.mubr.f32.mxu0 0.0
        %1269 = vmatmul.mubr.f32.gmra.mrb[0].mxu0 %v1148
        %v1270 = vpop.f32.mrb[0].mxu0
        %v1271 = vadd.f32 0.0, %v1270
        %v1272 = vpop.f32.mrb[0].mxu0
        %1273 = vmatprep.mubr.f32.mxu0 0.0
        %1274 = vmatmul.mubr.f32.gmra.mrb[0].mxu0 %v1150
        %v1275 = vpop.f32.mrb[0].mxu0
        %v1276 = vadd.f32 0.0, %v1275
        %v1277 = vpop.f32.mrb[0].mxu0
        %1278 = vmatprep.mubr.f32.mxu0 0.0
        %1279 = vmatmul.mubr.f32.gmra.mrb[0].mxu0 %v1152
        %v1280 = vpop.f32.mrb[0].mxu0
        %v1281 = vadd.f32 0.0, %v1280
        %v1282 = vpop.f32.mrb[0].mxu0
        %1283 = vmatprep.mubr.f32.mxu0 0.0
        %1284 = vmatmul.mubr.f32.gmra.mrb[0].mxu0 %v1154
        %v1285 = vpop.f32.mrb[0].mxu0
        %v1286 = vadd.f32 0.0, %v1285
        %v1287 = vpop.f32.mrb[0].mxu0
        %1288 = vmatprep.mubr.f32.mxu0 0.0
        %1289 = vmatmul.mubr.f32.gmra.mrb[0].mxu0 %v1156
        %v1290 = vpop.f32.mrb[0].mxu0
        %v1291 = vadd.f32 0.0, %v1290
        %v1292 = vpop.f32.mrb[0].mxu0
        %1293 = vmatprep.mubr.f32.mxu0 0.0
        %1294 = vmatmul.mubr.f32.gmra.mrb[0].mxu0 %v1158
        %v1295 = vpop.f32.mrb[0].mxu0
        %v1296 = vadd.f32 0.0, %v1295
        %v1297 = vpop.f32.mrb[0].mxu0
        %1298 = vmatprep.mubr.f32.mxu0 0.0
        %1299 = vmatmul.mubr.f32.gmra.mrb[0].mxu0 %v1160
        %v1300 = vpop.f32.mrb[0].mxu0
        %v1301 = vadd.f32 0.0, %v1300
        %v1302 = vpop.f32.mrb[0].mxu0
        %1303 = vmatprep.mubr.f32.mxu0 0.0
        %1304 = vmatmul.mubr.f32.gmra.mrb[0].mxu0 %v1162
        %v1305 = vpop.f32.mrb[0].mxu0
        %v1306 = vadd.f32 0.0, %v1305
        %v1307 = vpop.f32.mrb[0].mxu0
        %1308 = vmatprep.mubr.f32.mxu0 0.0
        %1309 = vmatmul.mubr.f32.gmra.mrb[0].mxu0 %v1164
        %v1310 = vpop.f32.mrb[0].mxu0
        %v1311 = vadd.f32 0.0, %v1310
        %v1312 = vpop.f32.mrb[0].mxu0
        %1313 = vmatprep.mubr.f32.mxu0 0.0
        %1314 = vmatmul.mubr.f32.gmra.mrb[0].mxu0 %v1166
        %v1315 = vpop.f32.mrb[0].mxu0
        %v1316 = vadd.f32 0.0, %v1315
        %v1317 = vpop.f32.mrb[0].mxu0
        %1318 = vmatprep.mubr.f32.mxu0 0.0
        %1319 = vmatmul.mubr.f32.gmra.mrb[0].mxu0 %v1168
        %v1320 = vpop.f32.mrb[0].mxu0
        %v1321 = vadd.f32 0.0, %v1320
        %v1322 = vpop.f32.mrb[0].mxu0
        %1323 = vmatprep.mubr.f32.mxu0 0.0
        %1324 = vmatmul.mubr.f32.gmra.mrb[0].mxu0 %v1170
        %v1325 = vpop.f32.mrb[0].mxu0
        %v1326 = vadd.f32 0.0, %v1325
        %v1327 = vpop.f32.mrb[0].mxu0
        %1328 = vmatprep.mubr.f32.mxu0 0.0
        %1329 = vmatmul.mubr.f32.gmra.mrb[0].mxu0 %v1172
        %v1330 = vpop.f32.mrb[0].mxu0
        %v1331 = vadd.f32 0.0, %v1330
        %v1332 = vpop.f32.mrb[0].mxu0
        %1333 = vmatprep.mubr.f32.mxu0 0.0
        %1334 = vmatmul.mubr.f32.gmra.mrb[0].mxu0 %v1174
        %v1335 = vpop.f32.mrb[0].mxu0
        %v1336 = vadd.f32 0.0, %v1335
        %v1337 = vpop.f32.mrb[0].mxu0
        %1338 = vmatprep.mubr.f32.mxu0 0.0
        %1339 = vmatmul.mubr.f32.gmra.mrb[0].mxu0 %v1176
        %v1340 = vpop.f32.mrb[0].mxu0
        %v1341 = vadd.f32 0.0, %v1340
        %v1342 = vpop.f32.mrb[0].mxu0
        %1343 = vmatprep.mubr.f32.mxu0 0.0
        %1344 = vmatmul.mubr.f32.gmra.mrb[0].mxu0 %v1178
        %v1345 = vpop.f32.mrb[0].mxu0
        %v1346 = vadd.f32 0.0, %v1345
        %v1347 = vpop.f32.mrb[0].mxu0
        %1348 = vmatprep.mubr.f32.mxu0 0.0
        %1349 = vmatmul.mubr.f32.gmra.mrb[0].mxu0 %v1180
        %v1350 = vpop.f32.mrb[0].mxu0
        %v1351 = vadd.f32 0.0, %v1350
        %v1352 = vpop.f32.mrb[0].mxu0
        %1353 = vmatprep.mubr.f32.mxu0 0.0
        %1354 = vmatmul.mubr.f32.gmra.mrb[0].mxu0 %v1182
        %v1355 = vpop.f32.mrb[0].mxu0
        %v1356 = vadd.f32 0.0, %v1355
        %v1357 = vpop.f32.mrb[0].mxu0
        %1358 = vmatprep.mubr.f32.mxu0 0.0
        %1359 = vmatmul.mubr.f32.gmra.mrb[0].mxu0 %v1184
        %v1360 = vpop.f32.mrb[0].mxu0
        %v1361 = vadd.f32 0.0, %v1360
        %v1362 = vpop.f32.mrb[0].mxu0
        %1363 = vmatprep.mubr.f32.mxu0 0.0
        %1364 = vmatmul.mubr.f32.gmra.mrb[0].mxu0 %v1186
        %v1365 = vpop.f32.mrb[0].mxu0
        %v1366 = vadd.f32 0.0, %v1365
        %v1367 = vpop.f32.mrb[0].mxu0
        %1368 = vmatprep.mubr.f32.mxu0 0.0
        %1369 = vmatmul.mubr.f32.gmra.mrb[0].mxu0 %v1188
        %v1370 = vpop.f32.mrb[0].mxu0
        %v1371 = vadd.f32 0.0, %v1370
        %v1372 = vpop.f32.mrb[0].mxu0
        %1373 = vmatprep.mubr.f32.mxu0 0.0
        %1374 = vmatmul.mubr.f32.gmra.mrb[0].mxu0 %v1190
        %v1375 = vpop.f32.mrb[0].mxu0
        %v1376 = vadd.f32 0.0, %v1375
        %v1377 = vpop.f32.mrb[0].mxu0
        %1378 = vmatprep.mubr.f32.mxu0 0.0
        %1379 = vmatmul.mubr.f32.gmra.mrb[0].mxu0 %v1192
        %v1380 = vpop.f32.mrb[0].mxu0
        %v1381 = vadd.f32 0.0, %v1380
        %v1382 = vpop.f32.mrb[0].mxu0
        %1383 = vmatprep.mubr.f32.mxu0 0.0
        %1384 = vmatmul.mubr.f32.gmra.mrb[0].mxu0 %v1194
        %v1385 = vpop.f32.mrb[0].mxu0
        %v1386 = vadd.f32 0.0, %v1385
        %v1387 = vpop.f32.mrb[0].mxu0
        %1388 = vdwg.mxu0
        %v1389 = vadd.f32 %v971, %v1266
        %v1390 = vadd.f32 %v976, %v1271
        %v1391 = vadd.f32 %v981, %v1276
        %v1392 = vadd.f32 %v986, %v1281
        %v1393 = vadd.f32 %v991, %v1286
        %v1394 = vadd.f32 %v996, %v1291
        %v1395 = vadd.f32 %v1001, %v1296
        %v1396 = vadd.f32 %v1006, %v1301
        %v1397 = vadd.f32 %v1011, %v1306
        %v1398 = vadd.f32 %v1016, %v1311
        %v1399 = vadd.f32 %v1021, %v1316
        %v1400 = vadd.f32 %v1026, %v1321
        %v1401 = vadd.f32 %v1031, %v1326
        %v1402 = vadd.f32 %v1036, %v1331
        %v1403 = vadd.f32 %v1041, %v1336
        %v1404 = vadd.f32 %v1046, %v1341
        %v1405 = vadd.f32 %v1051, %v1346
        %v1406 = vadd.f32 %v1056, %v1351
        %v1407 = vadd.f32 %v1061, %v1356
        %v1408 = vadd.f32 %v1066, %v1361
        %v1409 = vadd.f32 %v1071, %v1366
        %v1410 = vadd.f32 %v1076, %v1371
        %v1411 = vadd.f32 %v1081, %v1376
        %v1412 = vadd.f32 %v1086, %v1381
        %v1413 = vadd.f32 %v1091, %v1386
        %v1415 = vlaneseq
        %v1416 = vshrl.u32 %v1415, 7
        %v1417 = vsub.s32 0, %v1416
        %v1418 = vrot.slane %v527, %v1417
        %v1420 = vadd.f32 %v1389, %v1418
        %v1421 = vadd.f32 %v1390, %v1418
        %v1422 = vadd.f32 %v1391, %v1418
        %v1423 = vadd.f32 %v1392, %v1418
        %v1424 = vadd.f32 %v1393, %v1418
        %v1425 = vadd.f32 %v1394, %v1418
        %v1426 = vadd.f32 %v1395, %v1418
        %v1427 = vadd.f32 %v1396, %v1418
        %v1428 = vadd.f32 %v1397, %v1418
        %v1429 = vadd.f32 %v1398, %v1418
        %v1430 = vadd.f32 %v1399, %v1418
        %v1431 = vadd.f32 %v1400, %v1418
        %v1432 = vadd.f32 %v1401, %v1418
        %v1433 = vadd.f32 %v1402, %v1418
        %v1434 = vadd.f32 %v1403, %v1418
        %v1435 = vadd.f32 %v1404, %v1418
        %v1436 = vadd.f32 %v1405, %v1418
        %v1437 = vadd.f32 %v1406, %v1418
        %v1438 = vadd.f32 %v1407, %v1418
        %v1439 = vadd.f32 %v1408, %v1418
        %v1440 = vadd.f32 %v1409, %v1418
        %v1441 = vadd.f32 %v1410, %v1418
        %v1442 = vadd.f32 %v1411, %v1418
        %v1443 = vadd.f32 %v1412, %v1418
        %v1444 = vadd.f32 %v1413, %v1418
        %v1445 = vmax.f32 %v1420, 0.0
        %v1446 = vmax.f32 %v1421, 0.0
        %v1447 = vmax.f32 %v1422, 0.0
        %v1448 = vmax.f32 %v1423, 0.0
        %v1449 = vmax.f32 %v1424, 0.0
        %v1450 = vmax.f32 %v1425, 0.0
        %v1451 = vmax.f32 %v1426, 0.0
        %v1452 = vmax.f32 %v1427, 0.0
        %v1453 = vmax.f32 %v1428, 0.0
        %v1454 = vmax.f32 %v1429, 0.0
        %v1455 = vmax.f32 %v1430, 0.0
        %v1456 = vmax.f32 %v1431, 0.0
        %v1457 = vmax.f32 %v1432, 0.0
        %v1458 = vmax.f32 %v1433, 0.0
        %v1459 = vmax.f32 %v1434, 0.0
        %v1460 = vmax.f32 %v1435, 0.0
        %v1461 = vmax.f32 %v1436, 0.0
        %v1462 = vmax.f32 %v1437, 0.0
        %v1463 = vmax.f32 %v1438, 0.0
        %v1464 = vmax.f32 %v1439, 0.0
        %v1465 = vmax.f32 %v1440, 0.0
        %v1466 = vmax.f32 %v1441, 0.0
        %v1467 = vmax.f32 %v1442, 0.0
        %v1468 = vmax.f32 %v1443, 0.0
        %v1469 = vmax.f32 %v1444, 0.0
        %v1470 = vld [vmem:[%s4] sm:$0x1]
        %v1471 = vld [vmem:[#allocation2] sm:$0xff]
        %v1472 = vld [vmem:[#allocation2 + $0x8] sm:$0xff]
        %v1473 = vld [vmem:[#allocation2 + $0x10] sm:$0xff]
        %v1474 = vld [vmem:[#allocation2 + $0x18] sm:$0xff]
        %s1475 = scalar_lea.vmem [#allocation2], 32
        %v1476 = vld [vmem:[%s1475] sm:$0xff]
        %v1477 = vld [vmem:[%s1475 + $0x8] sm:$0xff]
        %v1478 = vld [vmem:[%s1475 + $0x10] sm:$0xff]
        %v1479 = vld [vmem:[%s1475 + $0x18] sm:$0xff]
        %v1505 = vrot.slane %v1445, 1
        %v1506 = vrot.slane %v1446, 1
        %v1507 = vsel %vm556, %v1505, %v1506
        %v1508 = vrot.slane %v1447, 1
        %v1509 = vsel %vm556, %v1506, %v1508
        %v1510 = vrot.slane %v1448, 1
        %v1511 = vsel %vm556, %v1508, %v1510
        %v1512 = vrot.slane %v1449, 1
        %v1513 = vsel %vm556, %v1510, %v1512
        %v1514 = vrot.slane %v1450, 1
        %v1515 = vsel %vm556, %v1512, %v1514
        %v1516 = vrot.slane %v1451, 1
        %v1517 = vsel %vm556, %v1514, %v1516
        %v1518 = vrot.slane %v1452, 1
        %v1519 = vsel %vm556, %v1516, %v1518
        %v1520 = vrot.slane %v1453, 1
        %v1521 = vsel %vm556, %v1518, %v1520
        %v1522 = vrot.slane %v1454, 1
        %v1523 = vsel %vm556, %v1520, %v1522
        %v1524 = vrot.slane %v1455, 1
        %v1525 = vsel %vm556, %v1522, %v1524
        %v1526 = vrot.slane %v1456, 1
        %v1527 = vsel %vm556, %v1524, %v1526
        %v1528 = vrot.slane %v1457, 1
        %v1529 = vsel %vm556, %v1526, %v1528
        %v1530 = vrot.slane %v1458, 1
        %v1531 = vsel %vm556, %v1528, %v1530
        %v1532 = vrot.slane %v1459, 1
        %v1533 = vsel %vm556, %v1530, %v1532
        %v1534 = vrot.slane %v1460, 1
        %v1535 = vsel %vm556, %v1532, %v1534
        %v1536 = vrot.slane %v1461, 1
        %v1537 = vsel %vm556, %v1534, %v1536
        %v1538 = vrot.slane %v1462, 1
        %v1539 = vsel %vm556, %v1536, %v1538
        %v1540 = vrot.slane %v1463, 1
        %v1541 = vsel %vm556, %v1538, %v1540
        %v1542 = vrot.slane %v1464, 1
        %v1543 = vsel %vm556, %v1540, %v1542
        %v1544 = vrot.slane %v1465, 1
        %v1545 = vsel %vm556, %v1542, %v1544
        %v1546 = vrot.slane %v1466, 1
        %v1547 = vsel %vm556, %v1544, %v1546
        %v1548 = vrot.slane %v1467, 1
        %v1549 = vsel %vm556, %v1546, %v1548
        %v1550 = vrot.slane %v1468, 1
        %v1551 = vsel %vm556, %v1548, %v1550
        %v1552 = vrot.slane %v1469, 1
        %v1553 = vsel %vm556, %v1550, %v1552
        %vm1554 = vcmask 261120
        %v1555 = vsel %vm1554, %v1507, 0
        %v1557 = vsel %vm1554, %v1509, 0
        %v1559 = vsel %vm1554, %v1511, 0
        %v1561 = vsel %vm1554, %v1513, 0
        %v1563 = vsel %vm1554, %v1515, 0
        %v1565 = vsel %vm1554, %v1517, 0
        %v1567 = vsel %vm1554, %v1519, 0
        %v1569 = vsel %vm1554, %v1521, 0
        %v1571 = vsel %vm1554, %v1523, 0
        %v1573 = vsel %vm1554, %v1525, 0
        %v1575 = vsel %vm1554, %v1527, 0
        %v1577 = vsel %vm1554, %v1529, 0
        %v1579 = vsel %vm1554, %v1531, 0
        %v1581 = vsel %vm1554, %v1533, 0
        %v1583 = vsel %vm1554, %v1535, 0
        %v1585 = vsel %vm1554, %v1537, 0
        %v1587 = vsel %vm1554, %v1539, 0
        %v1589 = vsel %vm1554, %v1541, 0
        %v1591 = vsel %vm1554, %v1543, 0
        %v1593 = vsel %vm1554, %v1545, 0
        %v1595 = vsel %vm1554, %v1547, 0
        %v1597 = vsel %vm1554, %v1549, 0
        %v1599 = vsel %vm1554, %v1551, 0
        %v1601 = vsel %vm1554, %v1553, 0
        %v1603 = vsel %vm1554, %v1552, 0
        %1605 = vmatprep.subr.mxu0 0.0
        %1606 = vmatpush1.msra.mxu0 %v1476
        %1607 = vmatprep.subr.mxu0 0.0
        %1608 = vmatpush1.msra.mxu0 %v1477
        %1609 = vmatprep.subr.mxu0 0.0
        %1610 = vmatpush1.msra.mxu0 %v1478
        %1611 = vmatprep.subr.mxu0 0.0
        %1612 = vmatpush1.msra.mxu0 %v1479
        %1613 = vmatprep.subr.mxu0 0.0
        %1614 = vmatpush1.msra.mxu0 0.0
        %1615 = vmatprep.subr.mxu0 0.0
        %1616 = vmatpush1.msra.mxu0 0.0
        %1617 = vmatprep.subr.mxu0 0.0
        %1618 = vmatpush1.msra.mxu0 0.0
        %1619 = vmatprep.subr.mxu0 0.0
        %1620 = vmatpush1.msra.mxu0 0.0
        %1621 = vmatprep.subr.mxu0 0.0
        %1622 = vmatpush1.msra.mxu0 0.0
        %1623 = vmatprep.subr.mxu0 0.0
        %1624 = vmatpush1.msra.mxu0 0.0
        %1625 = vmatprep.subr.mxu0 0.0
        %1626 = vmatpush1.msra.mxu0 0.0
        %1627 = vmatprep.subr.mxu0 0.0
        %1628 = vmatpush1.msra.mxu0 0.0
        %1629 = vmatprep.subr.mxu0 0.0
        %1630 = vmatpush1.msra.mxu0 0.0
        %1631 = vmatprep.subr.mxu0 0.0
        %1632 = vmatpush1.msra.mxu0 0.0
        %1633 = vmatprep.subr.mxu0 0.0
        %1634 = vmatpush1.msra.mxu0 0.0
        %1635 = vmatprep.subr.mxu0 0.0
        %1636 = vmatpush1.msra.mxu0 0.0
        %1637 = vmatprep.subr.mxu0 0.0
        %1638 = vmatpush1.msra.mxu0 0.0
        %1639 = vmatprep.subr.mxu0 0.0
        %1640 = vmatpush1.msra.mxu0 0.0
        %1641 = vmatprep.subr.mxu0 0.0
        %1642 = vmatpush1.msra.mxu0 0.0
        %1643 = vmatprep.subr.mxu0 0.0
        %1644 = vmatpush1.msra.mxu0 0.0
        %1645 = vmatprep.subr.mxu0 0.0
        %1646 = vmatpush1.msra.mxu0 0.0
        %1647 = vmatprep.subr.mxu0 0.0
        %1648 = vmatpush1.msra.mxu0 0.0
        %1649 = vmatprep.subr.mxu0 0.0
        %1650 = vmatpush1.msra.mxu0 0.0
        %1651 = vmatprep.subr.mxu0 0.0
        %1652 = vmatpush1.msra.mxu0 0.0
        %1653 = vmatprep.subr.mxu0 0.0
        %1654 = vmatpush1.msra.mxu0 0.0
        %1655 = vmatprep.subr.mxu0 0.0
        %1656 = vmatpush1.msra.mxu0 0.0
        %1657 = vmatprep.subr.mxu0 0.0
        %1658 = vmatpush1.msra.mxu0 0.0
        %1659 = vmatprep.subr.mxu0 0.0
        %1660 = vmatpush1.msra.mxu0 0.0
        %1661 = vmatprep.subr.mxu0 0.0
        %1662 = vmatpush1.msra.mxu0 0.0
        %1663 = vmatprep.subr.mxu0 0.0
        %1664 = vmatpush1.msra.mxu0 0.0
        %1665 = vmatprep.subr.mxu0 0.0
        %1666 = vmatpush1.msra.mxu0 0.0
        %1667 = vmatprep.subr.mxu0 0.0
        %1668 = vmatpush1.msra.mxu0 0.0
        %1669 = vmatprep.mubr.f32.mxu0 0.0
        %1670 = vmatmul.mubr.f32.gmra.mrb[0].mxu0 %v1555
        %v1671 = vpop.f32.mrb[0].mxu0
        %v1672 = vadd.f32 0.0, %v1671
        %v1673 = vpop.f32.mrb[0].mxu0
        %1674 = vmatprep.mubr.f32.mxu0 0.0
        %1675 = vmatmul.mubr.f32.gmra.mrb[0].mxu0 %v1557
        %v1676 = vpop.f32.mrb[0].mxu0
        %v1677 = vadd.f32 0.0, %v1676
        %v1678 = vpop.f32.mrb[0].mxu0
        %1679 = vmatprep.mubr.f32.mxu0 0.0
        %1680 = vmatmul.mubr.f32.gmra.mrb[0].mxu0 %v1559
        %v1681 = vpop.f32.mrb[0].mxu0
        %v1682 = vadd.f32 0.0, %v1681
        %v1683 = vpop.f32.mrb[0].mxu0
        %1684 = vmatprep.mubr.f32.mxu0 0.0
        %1685 = vmatmul.mubr.f32.gmra.mrb[0].mxu0 %v1561
        %v1686 = vpop.f32.mrb[0].mxu0
        %v1687 = vadd.f32 0.0, %v1686
        %v1688 = vpop.f32.mrb[0].mxu0
        %1689 = vmatprep.mubr.f32.mxu0 0.0
        %1690 = vmatmul.mubr.f32.gmra.mrb[0].mxu0 %v1563
        %v1691 = vpop.f32.mrb[0].mxu0
        %v1692 = vadd.f32 0.0, %v1691
        %v1693 = vpop.f32.mrb[0].mxu0
        %1694 = vmatprep.mubr.f32.mxu0 0.0
        %1695 = vmatmul.mubr.f32.gmra.mrb[0].mxu0 %v1565
        %v1696 = vpop.f32.mrb[0].mxu0
        %v1697 = vadd.f32 0.0, %v1696
        %v1698 = vpop.f32.mrb[0].mxu0
        %1699 = vmatprep.mubr.f32.mxu0 0.0
        %1700 = vmatmul.mubr.f32.gmra.mrb[0].mxu0 %v1567
        %v1701 = vpop.f32.mrb[0].mxu0
        %v1702 = vadd.f32 0.0, %v1701
        %v1703 = vpop.f32.mrb[0].mxu0
        %1704 = vmatprep.mubr.f32.mxu0 0.0
        %1705 = vmatmul.mubr.f32.gmra.mrb[0].mxu0 %v1569
        %v1706 = vpop.f32.mrb[0].mxu0
        %v1707 = vadd.f32 0.0, %v1706
        %v1708 = vpop.f32.mrb[0].mxu0
        %1709 = vmatprep.mubr.f32.mxu0 0.0
        %1710 = vmatmul.mubr.f32.gmra.mrb[0].mxu0 %v1571
        %v1711 = vpop.f32.mrb[0].mxu0
        %v1712 = vadd.f32 0.0, %v1711
        %v1713 = vpop.f32.mrb[0].mxu0
        %1714 = vmatprep.mubr.f32.mxu0 0.0
        %1715 = vmatmul.mubr.f32.gmra.mrb[0].mxu0 %v1573
        %v1716 = vpop.f32.mrb[0].mxu0
        %v1717 = vadd.f32 0.0, %v1716
        %v1718 = vpop.f32.mrb[0].mxu0
        %1719 = vmatprep.mubr.f32.mxu0 0.0
        %1720 = vmatmul.mubr.f32.gmra.mrb[0].mxu0 %v1575
        %v1721 = vpop.f32.mrb[0].mxu0
        %v1722 = vadd.f32 0.0, %v1721
        %v1723 = vpop.f32.mrb[0].mxu0
        %1724 = vmatprep.mubr.f32.mxu0 0.0
        %1725 = vmatmul.mubr.f32.gmra.mrb[0].mxu0 %v1577
        %v1726 = vpop.f32.mrb[0].mxu0
        %v1727 = vadd.f32 0.0, %v1726
        %v1728 = vpop.f32.mrb[0].mxu0
        %1729 = vmatprep.mubr.f32.mxu0 0.0
        %1730 = vmatmul.mubr.f32.gmra.mrb[0].mxu0 %v1579
        %v1731 = vpop.f32.mrb[0].mxu0
        %v1732 = vadd.f32 0.0, %v1731
        %v1733 = vpop.f32.mrb[0].mxu0
        %1734 = vmatprep.mubr.f32.mxu0 0.0
        %1735 = vmatmul.mubr.f32.gmra.mrb[0].mxu0 %v1581
        %v1736 = vpop.f32.mrb[0].mxu0
        %v1737 = vadd.f32 0.0, %v1736
        %v1738 = vpop.f32.mrb[0].mxu0
        %1739 = vmatprep.mubr.f32.mxu0 0.0
        %1740 = vmatmul.mubr.f32.gmra.mrb[0].mxu0 %v1583
        %v1741 = vpop.f32.mrb[0].mxu0
        %v1742 = vadd.f32 0.0, %v1741
        %v1743 = vpop.f32.mrb[0].mxu0
        %1744 = vmatprep.mubr.f32.mxu0 0.0
        %1745 = vmatmul.mubr.f32.gmra.mrb[0].mxu0 %v1585
        %v1746 = vpop.f32.mrb[0].mxu0
        %v1747 = vadd.f32 0.0, %v1746
        %v1748 = vpop.f32.mrb[0].mxu0
        %1749 = vmatprep.mubr.f32.mxu0 0.0
        %1750 = vmatmul.mubr.f32.gmra.mrb[0].mxu0 %v1587
        %v1751 = vpop.f32.mrb[0].mxu0
        %v1752 = vadd.f32 0.0, %v1751
        %v1753 = vpop.f32.mrb[0].mxu0
        %1754 = vmatprep.mubr.f32.mxu0 0.0
        %1755 = vmatmul.mubr.f32.gmra.mrb[0].mxu0 %v1589
        %v1756 = vpop.f32.mrb[0].mxu0
        %v1757 = vadd.f32 0.0, %v1756
        %v1758 = vpop.f32.mrb[0].mxu0
        %1759 = vmatprep.mubr.f32.mxu0 0.0
        %1760 = vmatmul.mubr.f32.gmra.mrb[0].mxu0 %v1591
        %v1761 = vpop.f32.mrb[0].mxu0
        %v1762 = vadd.f32 0.0, %v1761
        %v1763 = vpop.f32.mrb[0].mxu0
        %1764 = vmatprep.mubr.f32.mxu0 0.0
        %1765 = vmatmul.mubr.f32.gmra.mrb[0].mxu0 %v1593
        %v1766 = vpop.f32.mrb[0].mxu0
        %v1767 = vadd.f32 0.0, %v1766
        %v1768 = vpop.f32.mrb[0].mxu0
        %1769 = vmatprep.mubr.f32.mxu0 0.0
        %1770 = vmatmul.mubr.f32.gmra.mrb[0].mxu0 %v1595
        %v1771 = vpop.f32.mrb[0].mxu0
        %v1772 = vadd.f32 0.0, %v1771
        %v1773 = vpop.f32.mrb[0].mxu0
        %1774 = vmatprep.mubr.f32.mxu0 0.0
        %1775 = vmatmul.mubr.f32.gmra.mrb[0].mxu0 %v1597
        %v1776 = vpop.f32.mrb[0].mxu0
        %v1777 = vadd.f32 0.0, %v1776
        %v1778 = vpop.f32.mrb[0].mxu0
        %1779 = vmatprep.mubr.f32.mxu0 0.0
        %1780 = vmatmul.mubr.f32.gmra.mrb[0].mxu0 %v1599
        %v1781 = vpop.f32.mrb[0].mxu0
        %v1782 = vadd.f32 0.0, %v1781
        %v1783 = vpop.f32.mrb[0].mxu0
        %1784 = vmatprep.mubr.f32.mxu0 0.0
        %1785 = vmatmul.mubr.f32.gmra.mrb[0].mxu0 %v1601
        %v1786 = vpop.f32.mrb[0].mxu0
        %v1787 = vadd.f32 0.0, %v1786
        %v1788 = vpop.f32.mrb[0].mxu0
        %1789 = vmatprep.mubr.f32.mxu0 0.0
        %1790 = vmatmul.mubr.f32.gmra.mrb[0].mxu0 %v1603
        %v1791 = vpop.f32.mrb[0].mxu0
        %v1792 = vadd.f32 0.0, %v1791
        %v1793 = vpop.f32.mrb[0].mxu0
        %1794 = vdwg.mxu0
        %v1795 = vsel %vm1554, %v1445, 0
        %v1797 = vsel %vm1554, %v1446, 0
        %v1799 = vsel %vm1554, %v1447, 0
        %v1801 = vsel %vm1554, %v1448, 0
        %v1803 = vsel %vm1554, %v1449, 0
        %v1805 = vsel %vm1554, %v1450, 0
        %v1807 = vsel %vm1554, %v1451, 0
        %v1809 = vsel %vm1554, %v1452, 0
        %v1811 = vsel %vm1554, %v1453, 0
        %v1813 = vsel %vm1554, %v1454, 0
        %v1815 = vsel %vm1554, %v1455, 0
        %v1817 = vsel %vm1554, %v1456, 0
        %v1819 = vsel %vm1554, %v1457, 0
        %v1821 = vsel %vm1554, %v1458, 0
        %v1823 = vsel %vm1554, %v1459, 0
        %v1825 = vsel %vm1554, %v1460, 0
        %v1827 = vsel %vm1554, %v1461, 0
        %v1829 = vsel %vm1554, %v1462, 0
        %v1831 = vsel %vm1554, %v1463, 0
        %v1833 = vsel %vm1554, %v1464, 0
        %v1835 = vsel %vm1554, %v1465, 0
        %v1837 = vsel %vm1554, %v1466, 0
        %v1839 = vsel %vm1554, %v1467, 0
        %v1841 = vsel %vm1554, %v1468, 0
        %v1843 = vsel %vm1554, %v1469, 0
        %1845 = vmatprep.subr.mxu0 0.0
        %1846 = vmatpush1.msra.mxu0 %v1471
        %1847 = vmatprep.subr.mxu0 0.0
        %1848 = vmatpush1.msra.mxu0 %v1472
        %1849 = vmatprep.subr.mxu0 0.0
        %1850 = vmatpush1.msra.mxu0 %v1473
        %1851 = vmatprep.subr.mxu0 0.0
        %1852 = vmatpush1.msra.mxu0 %v1474
        %1853 = vmatprep.subr.mxu0 0.0
        %1854 = vmatpush1.msra.mxu0 0.0
        %1855 = vmatprep.subr.mxu0 0.0
        %1856 = vmatpush1.msra.mxu0 0.0
        %1857 = vmatprep.subr.mxu0 0.0
        %1858 = vmatpush1.msra.mxu0 0.0
        %1859 = vmatprep.subr.mxu0 0.0
        %1860 = vmatpush1.msra.mxu0 0.0
        %1861 = vmatprep.subr.mxu0 0.0
        %1862 = vmatpush1.msra.mxu0 0.0
        %1863 = vmatprep.subr.mxu0 0.0
        %1864 = vmatpush1.msra.mxu0 0.0
        %1865 = vmatprep.subr.mxu0 0.0
        %1866 = vmatpush1.msra.mxu0 0.0
        %1867 = vmatprep.subr.mxu0 0.0
        %1868 = vmatpush1.msra.mxu0 0.0
        %1869 = vmatprep.subr.mxu0 0.0
        %1870 = vmatpush1.msra.mxu0 0.0
        %1871 = vmatprep.subr.mxu0 0.0
        %1872 = vmatpush1.msra.mxu0 0.0
        %1873 = vmatprep.subr.mxu0 0.0
        %1874 = vmatpush1.msra.mxu0 0.0
        %1875 = vmatprep.subr.mxu0 0.0
        %1876 = vmatpush1.msra.mxu0 0.0
        %1877 = vmatprep.subr.mxu0 0.0
        %1878 = vmatpush1.msra.mxu0 0.0
        %1879 = vmatprep.subr.mxu0 0.0
        %1880 = vmatpush1.msra.mxu0 0.0
        %1881 = vmatprep.subr.mxu0 0.0
        %1882 = vmatpush1.msra.mxu0 0.0
        %1883 = vmatprep.subr.mxu0 0.0
        %1884 = vmatpush1.msra.mxu0 0.0
        %1885 = vmatprep.subr.mxu0 0.0
        %1886 = vmatpush1.msra.mxu0 0.0
        %1887 = vmatprep.subr.mxu0 0.0
        %1888 = vmatpush1.msra.mxu0 0.0
        %1889 = vmatprep.subr.mxu0 0.0
        %1890 = vmatpush1.msra.mxu0 0.0
        %1891 = vmatprep.subr.mxu0 0.0
        %1892 = vmatpush1.msra.mxu0 0.0
        %1893 = vmatprep.subr.mxu0 0.0
        %1894 = vmatpush1.msra.mxu0 0.0
        %1895 = vmatprep.subr.mxu0 0.0
        %1896 = vmatpush1.msra.mxu0 0.0
        %1897 = vmatprep.subr.mxu0 0.0
        %1898 = vmatpush1.msra.mxu0 0.0
        %1899 = vmatprep.subr.mxu0 0.0
        %1900 = vmatpush1.msra.mxu0 0.0
        %1901 = vmatprep.subr.mxu0 0.0
        %1902 = vmatpush1.msra.mxu0 0.0
        %1903 = vmatprep.subr.mxu0 0.0
        %1904 = vmatpush1.msra.mxu0 0.0
        %1905 = vmatprep.subr.mxu0 0.0
        %1906 = vmatpush1.msra.mxu0 0.0
        %1907 = vmatprep.subr.mxu0 0.0
        %1908 = vmatpush1.msra.mxu0 0.0
        %1909 = vmatprep.mubr.f32.mxu0 0.0
        %1910 = vmatmul.mubr.f32.gmra.mrb[0].mxu0 %v1795
        %v1911 = vpop.f32.mrb[0].mxu0
        %v1912 = vadd.f32 %v1672, %v1911
        %v1913 = vpop.f32.mrb[0].mxu0
        %1914 = vmatprep.mubr.f32.mxu0 0.0
        %1915 = vmatmul.mubr.f32.gmra.mrb[0].mxu0 %v1797
        %v1916 = vpop.f32.mrb[0].mxu0
        %v1917 = vadd.f32 %v1677, %v1916
        %v1918 = vpop.f32.mrb[0].mxu0
        %1919 = vmatprep.mubr.f32.mxu0 0.0
        %1920 = vmatmul.mubr.f32.gmra.mrb[0].mxu0 %v1799
        %v1921 = vpop.f32.mrb[0].mxu0
        %v1922 = vadd.f32 %v1682, %v1921
        %v1923 = vpop.f32.mrb[0].mxu0
        %1924 = vmatprep.mubr.f32.mxu0 0.0
        %1925 = vmatmul.mubr.f32.gmra.mrb[0].mxu0 %v1801
        %v1926 = vpop.f32.mrb[0].mxu0
        %v1927 = vadd.f32 %v1687, %v1926
        %v1928 = vpop.f32.mrb[0].mxu0
        %1929 = vmatprep.mubr.f32.mxu0 0.0
        %1930 = vmatmul.mubr.f32.gmra.mrb[0].mxu0 %v1803
        %v1931 = vpop.f32.mrb[0].mxu0
        %v1932 = vadd.f32 %v1692, %v1931
        %v1933 = vpop.f32.mrb[0].mxu0
        %1934 = vmatprep.mubr.f32.mxu0 0.0
        %1935 = vmatmul.mubr.f32.gmra.mrb[0].mxu0 %v1805
        %v1936 = vpop.f32.mrb[0].mxu0
        %v1937 = vadd.f32 %v1697, %v1936
        %v1938 = vpop.f32.mrb[0].mxu0
        %1939 = vmatprep.mubr.f32.mxu0 0.0
        %1940 = vmatmul.mubr.f32.gmra.mrb[0].mxu0 %v1807
        %v1941 = vpop.f32.mrb[0].mxu0
        %v1942 = vadd.f32 %v1702, %v1941
        %v1943 = vpop.f32.mrb[0].mxu0
        %1944 = vmatprep.mubr.f32.mxu0 0.0
        %1945 = vmatmul.mubr.f32.gmra.mrb[0].mxu0 %v1809
        %v1946 = vpop.f32.mrb[0].mxu0
        %v1947 = vadd.f32 %v1707, %v1946
        %v1948 = vpop.f32.mrb[0].mxu0
        %1949 = vmatprep.mubr.f32.mxu0 0.0
        %1950 = vmatmul.mubr.f32.gmra.mrb[0].mxu0 %v1811
        %v1951 = vpop.f32.mrb[0].mxu0
        %v1952 = vadd.f32 %v1712, %v1951
        %v1953 = vpop.f32.mrb[0].mxu0
        %1954 = vmatprep.mubr.f32.mxu0 0.0
        %1955 = vmatmul.mubr.f32.gmra.mrb[0].mxu0 %v1813
        %v1956 = vpop.f32.mrb[0].mxu0
        %v1957 = vadd.f32 %v1717, %v1956
        %v1958 = vpop.f32.mrb[0].mxu0
        %1959 = vmatprep.mubr.f32.mxu0 0.0
        %1960 = vmatmul.mubr.f32.gmra.mrb[0].mxu0 %v1815
        %v1961 = vpop.f32.mrb[0].mxu0
        %v1962 = vadd.f32 %v1722, %v1961
        %v1963 = vpop.f32.mrb[0].mxu0
        %1964 = vmatprep.mubr.f32.mxu0 0.0
        %1965 = vmatmul.mubr.f32.gmra.mrb[0].mxu0 %v1817
        %v1966 = vpop.f32.mrb[0].mxu0
        %v1967 = vadd.f32 %v1727, %v1966
        %v1968 = vpop.f32.mrb[0].mxu0
        %1969 = vmatprep.mubr.f32.mxu0 0.0
        %1970 = vmatmul.mubr.f32.gmra.mrb[0].mxu0 %v1819
        %v1971 = vpop.f32.mrb[0].mxu0
        %v1972 = vadd.f32 %v1732, %v1971
        %v1973 = vpop.f32.mrb[0].mxu0
        %1974 = vmatprep.mubr.f32.mxu0 0.0
        %1975 = vmatmul.mubr.f32.gmra.mrb[0].mxu0 %v1821
        %v1976 = vpop.f32.mrb[0].mxu0
        %v1977 = vadd.f32 %v1737, %v1976
        %v1978 = vpop.f32.mrb[0].mxu0
        %1979 = vmatprep.mubr.f32.mxu0 0.0
        %1980 = vmatmul.mubr.f32.gmra.mrb[0].mxu0 %v1823
        %v1981 = vpop.f32.mrb[0].mxu0
        %v1982 = vadd.f32 %v1742, %v1981
        %v1983 = vpop.f32.mrb[0].mxu0
        %1984 = vmatprep.mubr.f32.mxu0 0.0
        %1985 = vmatmul.mubr.f32.gmra.mrb[0].mxu0 %v1825
        %v1986 = vpop.f32.mrb[0].mxu0
        %v1987 = vadd.f32 %v1747, %v1986
        %v1988 = vpop.f32.mrb[0].mxu0
        %1989 = vmatprep.mubr.f32.mxu0 0.0
        %1990 = vmatmul.mubr.f32.gmra.mrb[0].mxu0 %v1827
        %v1991 = vpop.f32.mrb[0].mxu0
        %v1992 = vadd.f32 %v1752, %v1991
        %v1993 = vpop.f32.mrb[0].mxu0
        %1994 = vmatprep.mubr.f32.mxu0 0.0
        %1995 = vmatmul.mubr.f32.gmra.mrb[0].mxu0 %v1829
        %v1996 = vpop.f32.mrb[0].mxu0
        %v1997 = vadd.f32 %v1757, %v1996
        %v1998 = vpop.f32.mrb[0].mxu0
        %1999 = vmatprep.mubr.f32.mxu0 0.0
        %2000 = vmatmul.mubr.f32.gmra.mrb[0].mxu0 %v1831
        %v2001 = vpop.f32.mrb[0].mxu0
        %v2002 = vadd.f32 %v1762, %v2001
        %v2003 = vpop.f32.mrb[0].mxu0
        %2004 = vmatprep.mubr.f32.mxu0 0.0
        %2005 = vmatmul.mubr.f32.gmra.mrb[0].mxu0 %v1833
        %v2006 = vpop.f32.mrb[0].mxu0
        %v2007 = vadd.f32 %v1767, %v2006
        %v2008 = vpop.f32.mrb[0].mxu0
        %2009 = vmatprep.mubr.f32.mxu0 0.0
        %2010 = vmatmul.mubr.f32.gmra.mrb[0].mxu0 %v1835
        %v2011 = vpop.f32.mrb[0].mxu0
        %v2012 = vadd.f32 %v1772, %v2011
        %v2013 = vpop.f32.mrb[0].mxu0
        %2014 = vmatprep.mubr.f32.mxu0 0.0
        %2015 = vmatmul.mubr.f32.gmra.mrb[0].mxu0 %v1837
        %v2016 = vpop.f32.mrb[0].mxu0
        %v2017 = vadd.f32 %v1777, %v2016
        %v2018 = vpop.f32.mrb[0].mxu0
        %2019 = vmatprep.mubr.f32.mxu0 0.0
        %2020 = vmatmul.mubr.f32.gmra.mrb[0].mxu0 %v1839
        %v2021 = vpop.f32.mrb[0].mxu0
        %v2022 = vadd.f32 %v1782, %v2021
        %v2023 = vpop.f32.mrb[0].mxu0
        %2024 = vmatprep.mubr.f32.mxu0 0.0
        %2025 = vmatmul.mubr.f32.gmra.mrb[0].mxu0 %v1841
        %v2026 = vpop.f32.mrb[0].mxu0
        %v2027 = vadd.f32 %v1787, %v2026
        %v2028 = vpop.f32.mrb[0].mxu0
        %2029 = vmatprep.mubr.f32.mxu0 0.0
        %2030 = vmatmul.mubr.f32.gmra.mrb[0].mxu0 %v1843
        %v2031 = vpop.f32.mrb[0].mxu0
        %v2032 = vadd.f32 %v1792, %v2031
        %v2033 = vpop.f32.mrb[0].mxu0
        %2034 = vdwg.mxu0
        %s2035 = scalar_lea.vmem [#allocation2], 64
        %v2036 = vld [vmem:[%s2035] sm:$0xff]
        %v2037 = vld [vmem:[%s2035 + $0x8] sm:$0xff]
        %v2038 = vld [vmem:[%s2035 + $0x10] sm:$0xff]
        %v2039 = vld [vmem:[%s2035 + $0x18] sm:$0xff]
        %v2040 = vrot.slane %v1445, 2
        %v2041 = vrot.slane %v1446, 2
        %v2042 = vsel %vm1096, %v2040, %v2041
        %v2043 = vrot.slane %v1447, 2
        %v2044 = vsel %vm1096, %v2041, %v2043
        %v2045 = vrot.slane %v1448, 2
        %v2046 = vsel %vm1096, %v2043, %v2045
        %v2047 = vrot.slane %v1449, 2
        %v2048 = vsel %vm1096, %v2045, %v2047
        %v2049 = vrot.slane %v1450, 2
        %v2050 = vsel %vm1096, %v2047, %v2049
        %v2051 = vrot.slane %v1451, 2
        %v2052 = vsel %vm1096, %v2049, %v2051
        %v2053 = vrot.slane %v1452, 2
        %v2054 = vsel %vm1096, %v2051, %v2053
        %v2055 = vrot.slane %v1453, 2
        %v2056 = vsel %vm1096, %v2053, %v2055
        %v2057 = vrot.slane %v1454, 2
        %v2058 = vsel %vm1096, %v2055, %v2057
        %v2059 = vrot.slane %v1455, 2
        %v2060 = vsel %vm1096, %v2057, %v2059
        %v2061 = vrot.slane %v1456, 2
        %v2062 = vsel %vm1096, %v2059, %v2061
        %v2063 = vrot.slane %v1457, 2
        %v2064 = vsel %vm1096, %v2061, %v2063
        %v2065 = vrot.slane %v1458, 2
        %v2066 = vsel %vm1096, %v2063, %v2065
        %v2067 = vrot.slane %v1459, 2
        %v2068 = vsel %vm1096, %v2065, %v2067
        %v2069 = vrot.slane %v1460, 2
        %v2070 = vsel %vm1096, %v2067, %v2069
        %v2071 = vrot.slane %v1461, 2
        %v2072 = vsel %vm1096, %v2069, %v2071
        %v2073 = vrot.slane %v1462, 2
        %v2074 = vsel %vm1096, %v2071, %v2073
        %v2075 = vrot.slane %v1463, 2
        %v2076 = vsel %vm1096, %v2073, %v2075
        %v2077 = vrot.slane %v1464, 2
        %v2078 = vsel %vm1096, %v2075, %v2077
        %v2079 = vrot.slane %v1465, 2
        %v2080 = vsel %vm1096, %v2077, %v2079
        %v2081 = vrot.slane %v1466, 2
        %v2082 = vsel %vm1096, %v2079, %v2081
        %v2083 = vrot.slane %v1467, 2
        %v2084 = vsel %vm1096, %v2081, %v2083
        %v2085 = vrot.slane %v1468, 2
        %v2086 = vsel %vm1096, %v2083, %v2085
        %v2087 = vrot.slane %v1469, 2
        %v2088 = vsel %vm1096, %v2085, %v2087
        %v2089 = vsel %vm1554, %v2042, 0
        %v2091 = vsel %vm1554, %v2044, 0
        %v2093 = vsel %vm1554, %v2046, 0
        %v2095 = vsel %vm1554, %v2048, 0
        %v2097 = vsel %vm1554, %v2050, 0
        %v2099 = vsel %vm1554, %v2052, 0
        %v2101 = vsel %vm1554, %v2054, 0
        %v2103 = vsel %vm1554, %v2056, 0
        %v2105 = vsel %vm1554, %v2058, 0
        %v2107 = vsel %vm1554, %v2060, 0
        %v2109 = vsel %vm1554, %v2062, 0
        %v2111 = vsel %vm1554, %v2064, 0
        %v2113 = vsel %vm1554, %v2066, 0
        %v2115 = vsel %vm1554, %v2068, 0
        %v2117 = vsel %vm1554, %v2070, 0
        %v2119 = vsel %vm1554, %v2072, 0
        %v2121 = vsel %vm1554, %v2074, 0
        %v2123 = vsel %vm1554, %v2076, 0
        %v2125 = vsel %vm1554, %v2078, 0
        %v2127 = vsel %vm1554, %v2080, 0
        %v2129 = vsel %vm1554, %v2082, 0
        %v2131 = vsel %vm1554, %v2084, 0
        %v2133 = vsel %vm1554, %v2086, 0
        %v2135 = vsel %vm1554, %v2088, 0
        %v2137 = vsel %vm1554, %v2087, 0
        %2139 = vmatprep.subr.mxu0 0.0
        %2140 = vmatpush1.msra.mxu0 %v2036
        %2141 = vmatprep.subr.mxu0 0.0
        %2142 = vmatpush1.msra.mxu0 %v2037
        %2143 = vmatprep.subr.mxu0 0.0
        %2144 = vmatpush1.msra.mxu0 %v2038
        %2145 = vmatprep.subr.mxu0 0.0
        %2146 = vmatpush1.msra.mxu0 %v2039
        %2147 = vmatprep.subr.mxu0 0.0
        %2148 = vmatpush1.msra.mxu0 0.0
        %2149 = vmatprep.subr.mxu0 0.0
        %2150 = vmatpush1.msra.mxu0 0.0
        %2151 = vmatprep.subr.mxu0 0.0
        %2152 = vmatpush1.msra.mxu0 0.0
        %2153 = vmatprep.subr.mxu0 0.0
        %2154 = vmatpush1.msra.mxu0 0.0
        %2155 = vmatprep.subr.mxu0 0.0
        %2156 = vmatpush1.msra.mxu0 0.0
        %2157 = vmatprep.subr.mxu0 0.0
        %2158 = vmatpush1.msra.mxu0 0.0
        %2159 = vmatprep.subr.mxu0 0.0
        %2160 = vmatpush1.msra.mxu0 0.0
        %2161 = vmatprep.subr.mxu0 0.0
        %2162 = vmatpush1.msra.mxu0 0.0
        %2163 = vmatprep.subr.mxu0 0.0
        %2164 = vmatpush1.msra.mxu0 0.0
        %2165 = vmatprep.subr.mxu0 0.0
        %2166 = vmatpush1.msra.mxu0 0.0
        %2167 = vmatprep.subr.mxu0 0.0
        %2168 = vmatpush1.msra.mxu0 0.0
        %2169 = vmatprep.subr.mxu0 0.0
        %2170 = vmatpush1.msra.mxu0 0.0
        %2171 = vmatprep.subr.mxu0 0.0
        %2172 = vmatpush1.msra.mxu0 0.0
        %2173 = vmatprep.subr.mxu0 0.0
        %2174 = vmatpush1.msra.mxu0 0.0
        %2175 = vmatprep.subr.mxu0 0.0
        %2176 = vmatpush1.msra.mxu0 0.0
        %2177 = vmatprep.subr.mxu0 0.0
        %2178 = vmatpush1.msra.mxu0 0.0
        %2179 = vmatprep.subr.mxu0 0.0
        %2180 = vmatpush1.msra.mxu0 0.0
        %2181 = vmatprep.subr.mxu0 0.0
        %2182 = vmatpush1.msra.mxu0 0.0
        %2183 = vmatprep.subr.mxu0 0.0
        %2184 = vmatpush1.msra.mxu0 0.0
        %2185 = vmatprep.subr.mxu0 0.0
        %2186 = vmatpush1.msra.mxu0 0.0
        %2187 = vmatprep.subr.mxu0 0.0
        %2188 = vmatpush1.msra.mxu0 0.0
        %2189 = vmatprep.subr.mxu0 0.0
        %2190 = vmatpush1.msra.mxu0 0.0
        %2191 = vmatprep.subr.mxu0 0.0
        %2192 = vmatpush1.msra.mxu0 0.0
        %2193 = vmatprep.subr.mxu0 0.0
        %2194 = vmatpush1.msra.mxu0 0.0
        %2195 = vmatprep.subr.mxu0 0.0
        %2196 = vmatpush1.msra.mxu0 0.0
        %2197 = vmatprep.subr.mxu0 0.0
        %2198 = vmatpush1.msra.mxu0 0.0
        %2199 = vmatprep.subr.mxu0 0.0
        %2200 = vmatpush1.msra.mxu0 0.0
        %2201 = vmatprep.subr.mxu0 0.0
        %2202 = vmatpush1.msra.mxu0 0.0
        %2203 = vmatprep.mubr.f32.mxu0 0.0
        %2204 = vmatmul.mubr.f32.gmra.mrb[0].mxu0 %v2089
        %v2205 = vpop.f32.mrb[0].mxu0
        %v2206 = vadd.f32 0.0, %v2205
        %v2207 = vpop.f32.mrb[0].mxu0
        %2208 = vmatprep.mubr.f32.mxu0 0.0
        %2209 = vmatmul.mubr.f32.gmra.mrb[0].mxu0 %v2091
        %v2210 = vpop.f32.mrb[0].mxu0
        %v2211 = vadd.f32 0.0, %v2210
        %v2212 = vpop.f32.mrb[0].mxu0
        %2213 = vmatprep.mubr.f32.mxu0 0.0
        %2214 = vmatmul.mubr.f32.gmra.mrb[0].mxu0 %v2093
        %v2215 = vpop.f32.mrb[0].mxu0
        %v2216 = vadd.f32 0.0, %v2215
        %v2217 = vpop.f32.mrb[0].mxu0
        %2218 = vmatprep.mubr.f32.mxu0 0.0
        %2219 = vmatmul.mubr.f32.gmra.mrb[0].mxu0 %v2095
        %v2220 = vpop.f32.mrb[0].mxu0
        %v2221 = vadd.f32 0.0, %v2220
        %v2222 = vpop.f32.mrb[0].mxu0
        %2223 = vmatprep.mubr.f32.mxu0 0.0
        %2224 = vmatmul.mubr.f32.gmra.mrb[0].mxu0 %v2097
        %v2225 = vpop.f32.mrb[0].mxu0
        %v2226 = vadd.f32 0.0, %v2225
        %v2227 = vpop.f32.mrb[0].mxu0
        %2228 = vmatprep.mubr.f32.mxu0 0.0
        %2229 = vmatmul.mubr.f32.gmra.mrb[0].mxu0 %v2099
        %v2230 = vpop.f32.mrb[0].mxu0
        %v2231 = vadd.f32 0.0, %v2230
        %v2232 = vpop.f32.mrb[0].mxu0
        %2233 = vmatprep.mubr.f32.mxu0 0.0
        %2234 = vmatmul.mubr.f32.gmra.mrb[0].mxu0 %v2101
        %v2235 = vpop.f32.mrb[0].mxu0
        %v2236 = vadd.f32 0.0, %v2235
        %v2237 = vpop.f32.mrb[0].mxu0
        %2238 = vmatprep.mubr.f32.mxu0 0.0
        %2239 = vmatmul.mubr.f32.gmra.mrb[0].mxu0 %v2103
        %v2240 = vpop.f32.mrb[0].mxu0
        %v2241 = vadd.f32 0.0, %v2240
        %v2242 = vpop.f32.mrb[0].mxu0
        %2243 = vmatprep.mubr.f32.mxu0 0.0
        %2244 = vmatmul.mubr.f32.gmra.mrb[0].mxu0 %v2105
        %v2245 = vpop.f32.mrb[0].mxu0
        %v2246 = vadd.f32 0.0, %v2245
        %v2247 = vpop.f32.mrb[0].mxu0
        %2248 = vmatprep.mubr.f32.mxu0 0.0
        %2249 = vmatmul.mubr.f32.gmra.mrb[0].mxu0 %v2107
        %v2250 = vpop.f32.mrb[0].mxu0
        %v2251 = vadd.f32 0.0, %v2250
        %v2252 = vpop.f32.mrb[0].mxu0
        %2253 = vmatprep.mubr.f32.mxu0 0.0
        %2254 = vmatmul.mubr.f32.gmra.mrb[0].mxu0 %v2109
        %v2255 = vpop.f32.mrb[0].mxu0
        %v2256 = vadd.f32 0.0, %v2255
        %v2257 = vpop.f32.mrb[0].mxu0
        %2258 = vmatprep.mubr.f32.mxu0 0.0
        %2259 = vmatmul.mubr.f32.gmra.mrb[0].mxu0 %v2111
        %v2260 = vpop.f32.mrb[0].mxu0
        %v2261 = vadd.f32 0.0, %v2260
        %v2262 = vpop.f32.mrb[0].mxu0
        %2263 = vmatprep.mubr.f32.mxu0 0.0
        %2264 = vmatmul.mubr.f32.gmra.mrb[0].mxu0 %v2113
        %v2265 = vpop.f32.mrb[0].mxu0
        %v2266 = vadd.f32 0.0, %v2265
        %v2267 = vpop.f32.mrb[0].mxu0
        %2268 = vmatprep.mubr.f32.mxu0 0.0
        %2269 = vmatmul.mubr.f32.gmra.mrb[0].mxu0 %v2115
        %v2270 = vpop.f32.mrb[0].mxu0
        %v2271 = vadd.f32 0.0, %v2270
        %v2272 = vpop.f32.mrb[0].mxu0
        %2273 = vmatprep.mubr.f32.mxu0 0.0
        %2274 = vmatmul.mubr.f32.gmra.mrb[0].mxu0 %v2117
        %v2275 = vpop.f32.mrb[0].mxu0
        %v2276 = vadd.f32 0.0, %v2275
        %v2277 = vpop.f32.mrb[0].mxu0
        %2278 = vmatprep.mubr.f32.mxu0 0.0
        %2279 = vmatmul.mubr.f32.gmra.mrb[0].mxu0 %v2119
        %v2280 = vpop.f32.mrb[0].mxu0
        %v2281 = vadd.f32 0.0, %v2280
        %v2282 = vpop.f32.mrb[0].mxu0
        %2283 = vmatprep.mubr.f32.mxu0 0.0
        %2284 = vmatmul.mubr.f32.gmra.mrb[0].mxu0 %v2121
        %v2285 = vpop.f32.mrb[0].mxu0
        %v2286 = vadd.f32 0.0, %v2285
        %v2287 = vpop.f32.mrb[0].mxu0
        %2288 = vmatprep.mubr.f32.mxu0 0.0
        %2289 = vmatmul.mubr.f32.gmra.mrb[0].mxu0 %v2123
        %v2290 = vpop.f32.mrb[0].mxu0
        %v2291 = vadd.f32 0.0, %v2290
        %v2292 = vpop.f32.mrb[0].mxu0
        %2293 = vmatprep.mubr.f32.mxu0 0.0
        %2294 = vmatmul.mubr.f32.gmra.mrb[0].mxu0 %v2125
        %v2295 = vpop.f32.mrb[0].mxu0
        %v2296 = vadd.f32 0.0, %v2295
        %v2297 = vpop.f32.mrb[0].mxu0
        %2298 = vmatprep.mubr.f32.mxu0 0.0
        %2299 = vmatmul.mubr.f32.gmra.mrb[0].mxu0 %v2127
        %v2300 = vpop.f32.mrb[0].mxu0
        %v2301 = vadd.f32 0.0, %v2300
        %v2302 = vpop.f32.mrb[0].mxu0
        %2303 = vmatprep.mubr.f32.mxu0 0.0
        %2304 = vmatmul.mubr.f32.gmra.mrb[0].mxu0 %v2129
        %v2305 = vpop.f32.mrb[0].mxu0
        %v2306 = vadd.f32 0.0, %v2305
        %v2307 = vpop.f32.mrb[0].mxu0
        %2308 = vmatprep.mubr.f32.mxu0 0.0
        %2309 = vmatmul.mubr.f32.gmra.mrb[0].mxu0 %v2131
        %v2310 = vpop.f32.mrb[0].mxu0
        %v2311 = vadd.f32 0.0, %v2310
        %v2312 = vpop.f32.mrb[0].mxu0
        %2313 = vmatprep.mubr.f32.mxu0 0.0
        %2314 = vmatmul.mubr.f32.gmra.mrb[0].mxu0 %v2133
        %v2315 = vpop.f32.mrb[0].mxu0
        %v2316 = vadd.f32 0.0, %v2315
        %v2317 = vpop.f32.mrb[0].mxu0
        %2318 = vmatprep.mubr.f32.mxu0 0.0
        %2319 = vmatmul.mubr.f32.gmra.mrb[0].mxu0 %v2135
        %v2320 = vpop.f32.mrb[0].mxu0
        %v2321 = vadd.f32 0.0, %v2320
        %v2322 = vpop.f32.mrb[0].mxu0
        %2323 = vmatprep.mubr.f32.mxu0 0.0
        %2324 = vmatmul.mubr.f32.gmra.mrb[0].mxu0 %v2137
        %v2325 = vpop.f32.mrb[0].mxu0
        %v2326 = vadd.f32 0.0, %v2325
        %v2327 = vpop.f32.mrb[0].mxu0
        %2328 = vdwg.mxu0
        %v2329 = vadd.f32 %v1912, %v2206
        %v2330 = vadd.f32 %v1917, %v2211
        %v2331 = vadd.f32 %v1922, %v2216
        %v2332 = vadd.f32 %v1927, %v2221
        %v2333 = vadd.f32 %v1932, %v2226
        %v2334 = vadd.f32 %v1937, %v2231
        %v2335 = vadd.f32 %v1942, %v2236
        %v2336 = vadd.f32 %v1947, %v2241
        %v2337 = vadd.f32 %v1952, %v2246
        %v2338 = vadd.f32 %v1957, %v2251
        %v2339 = vadd.f32 %v1962, %v2256
        %v2340 = vadd.f32 %v1967, %v2261
        %v2341 = vadd.f32 %v1972, %v2266
        %v2342 = vadd.f32 %v1977, %v2271
        %v2343 = vadd.f32 %v1982, %v2276
        %v2344 = vadd.f32 %v1987, %v2281
        %v2345 = vadd.f32 %v1992, %v2286
        %v2346 = vadd.f32 %v1997, %v2291
        %v2347 = vadd.f32 %v2002, %v2296
        %v2348 = vadd.f32 %v2007, %v2301
        %v2349 = vadd.f32 %v2012, %v2306
        %v2350 = vadd.f32 %v2017, %v2311
        %v2351 = vadd.f32 %v2022, %v2316
        %v2352 = vadd.f32 %v2027, %v2321
        %v2353 = vadd.f32 %v2032, %v2326
        %v2355 = vlaneseq
        %v2356 = vshrl.u32 %v2355, 7
        %v2357 = vsub.s32 0, %v2356
        %v2358 = vrot.slane %v1470, %v2357
        %v2360 = vadd.f32 %v2329, %v2358
        %v2361 = vadd.f32 %v2330, %v2358
        %v2362 = vadd.f32 %v2331, %v2358
        %v2363 = vadd.f32 %v2332, %v2358
        %v2364 = vadd.f32 %v2333, %v2358
        %v2365 = vadd.f32 %v2334, %v2358
        %v2366 = vadd.f32 %v2335, %v2358
        %v2367 = vadd.f32 %v2336, %v2358
        %v2368 = vadd.f32 %v2337, %v2358
        %v2369 = vadd.f32 %v2338, %v2358
        %v2370 = vadd.f32 %v2339, %v2358
        %v2371 = vadd.f32 %v2340, %v2358
        %v2372 = vadd.f32 %v2341, %v2358
        %v2373 = vadd.f32 %v2342, %v2358
        %v2374 = vadd.f32 %v2343, %v2358
        %v2375 = vadd.f32 %v2344, %v2358
        %v2376 = vadd.f32 %v2345, %v2358
        %v2377 = vadd.f32 %v2346, %v2358
        %v2378 = vadd.f32 %v2347, %v2358
        %v2379 = vadd.f32 %v2348, %v2358
        %v2380 = vadd.f32 %v2349, %v2358
        %v2381 = vadd.f32 %v2350, %v2358
        %v2382 = vadd.f32 %v2351, %v2358
        %v2383 = vadd.f32 %v2352, %v2358
        %v2384 = vadd.f32 %v2353, %v2358
        %v2385 = vmax.f32 %v2360, 0.0
        %v2386 = vmax.f32 %v2361, 0.0
        %v2387 = vmax.f32 %v2362, 0.0
        %v2388 = vmax.f32 %v2363, 0.0
        %v2389 = vmax.f32 %v2364, 0.0
        %v2390 = vmax.f32 %v2365, 0.0
        %v2391 = vmax.f32 %v2366, 0.0
        %v2392 = vmax.f32 %v2367, 0.0
        %v2393 = vmax.f32 %v2368, 0.0
        %v2394 = vmax.f32 %v2369, 0.0
        %v2395 = vmax.f32 %v2370, 0.0
        %v2396 = vmax.f32 %v2371, 0.0
        %v2397 = vmax.f32 %v2372, 0.0
        %v2398 = vmax.f32 %v2373, 0.0
        %v2399 = vmax.f32 %v2374, 0.0
        %v2400 = vmax.f32 %v2375, 0.0
        %v2401 = vmax.f32 %v2376, 0.0
        %v2402 = vmax.f32 %v2377, 0.0
        %v2403 = vmax.f32 %v2378, 0.0
        %v2404 = vmax.f32 %v2379, 0.0
        %v2405 = vmax.f32 %v2380, 0.0
        %v2406 = vmax.f32 %v2381, 0.0
        %v2407 = vmax.f32 %v2382, 0.0
        %v2408 = vmax.f32 %v2383, 0.0
        %v2409 = vmax.f32 %v2384, 0.0
        %v2410 = vld [vmem:[%s6] sm:$0x1]
        %v2411 = vld [vmem:[#allocation4] sm:$0xff]
        %v2412 = vld [vmem:[#allocation4 + $0x8] sm:$0xff]
        %v2413 = vld [vmem:[#allocation4 + $0x10] sm:$0xff]
        %v2414 = vld [vmem:[#allocation4 + $0x18] sm:$0xff]
        %s2415 = scalar_lea.vmem [#allocation4], 32
        %v2416 = vld [vmem:[%s2415] sm:$0xff]
        %v2417 = vld [vmem:[%s2415 + $0x8] sm:$0xff]
        %v2418 = vld [vmem:[%s2415 + $0x10] sm:$0xff]
        %v2419 = vld [vmem:[%s2415 + $0x18] sm:$0xff]
        %v2445 = vrot.slane %v2385, 1
        %v2446 = vrot.slane %v2386, 1
        %v2447 = vsel %vm556, %v2445, %v2446
        %v2448 = vrot.slane %v2387, 1
        %v2449 = vsel %vm556, %v2446, %v2448
        %v2450 = vrot.slane %v2388, 1
        %v2451 = vsel %vm556, %v2448, %v2450
        %v2452 = vrot.slane %v2389, 1
        %v2453 = vsel %vm556, %v2450, %v2452
        %v2454 = vrot.slane %v2390, 1
        %v2455 = vsel %vm556, %v2452, %v2454
        %v2456 = vrot.slane %v2391, 1
        %v2457 = vsel %vm556, %v2454, %v2456
        %v2458 = vrot.slane %v2392, 1
        %v2459 = vsel %vm556, %v2456, %v2458
        %v2460 = vrot.slane %v2393, 1
        %v2461 = vsel %vm556, %v2458, %v2460
        %v2462 = vrot.slane %v2394, 1
        %v2463 = vsel %vm556, %v2460, %v2462
        %v2464 = vrot.slane %v2395, 1
        %v2465 = vsel %vm556, %v2462, %v2464
        %v2466 = vrot.slane %v2396, 1
        %v2467 = vsel %vm556, %v2464, %v2466
        %v2468 = vrot.slane %v2397, 1
        %v2469 = vsel %vm556, %v2466, %v2468
        %v2470 = vrot.slane %v2398, 1
        %v2471 = vsel %vm556, %v2468, %v2470
        %v2472 = vrot.slane %v2399, 1
        %v2473 = vsel %vm556, %v2470, %v2472
        %v2474 = vrot.slane %v2400, 1
        %v2475 = vsel %vm556, %v2472, %v2474
        %v2476 = vrot.slane %v2401, 1
        %v2477 = vsel %vm556, %v2474, %v2476
        %v2478 = vrot.slane %v2402, 1
        %v2479 = vsel %vm556, %v2476, %v2478
        %v2480 = vrot.slane %v2403, 1
        %v2481 = vsel %vm556, %v2478, %v2480
        %v2482 = vrot.slane %v2404, 1
        %v2483 = vsel %vm556, %v2480, %v2482
        %v2484 = vrot.slane %v2405, 1
        %v2485 = vsel %vm556, %v2482, %v2484
        %v2486 = vrot.slane %v2406, 1
        %v2487 = vsel %vm556, %v2484, %v2486
        %v2488 = vrot.slane %v2407, 1
        %v2489 = vsel %vm556, %v2486, %v2488
        %v2490 = vrot.slane %v2408, 1
        %v2491 = vsel %vm556, %v2488, %v2490
        %v2492 = vrot.slane %v2409, 1
        %v2493 = vsel %vm556, %v2490, %v2492
        %v2494 = vsel %vm1554, %v2447, 0
        %v2496 = vsel %vm1554, %v2449, 0
        %v2498 = vsel %vm1554, %v2451, 0
        %v2500 = vsel %vm1554, %v2453, 0
        %v2502 = vsel %vm1554, %v2455, 0
        %v2504 = vsel %vm1554, %v2457, 0
        %v2506 = vsel %vm1554, %v2459, 0
        %v2508 = vsel %vm1554, %v2461, 0
        %v2510 = vsel %vm1554, %v2463, 0
        %v2512 = vsel %vm1554, %v2465, 0
        %v2514 = vsel %vm1554, %v2467, 0
        %v2516 = vsel %vm1554, %v2469, 0
        %v2518 = vsel %vm1554, %v2471, 0
        %v2520 = vsel %vm1554, %v2473, 0
        %v2522 = vsel %vm1554, %v2475, 0
        %v2524 = vsel %vm1554, %v2477, 0
        %v2526 = vsel %vm1554, %v2479, 0
        %v2528 = vsel %vm1554, %v2481, 0
        %v2530 = vsel %vm1554, %v2483, 0
        %v2532 = vsel %vm1554, %v2485, 0
        %v2534 = vsel %vm1554, %v2487, 0
        %v2536 = vsel %vm1554, %v2489, 0
        %v2538 = vsel %vm1554, %v2491, 0
        %v2540 = vsel %vm1554, %v2493, 0
        %v2542 = vsel %vm1554, %v2492, 0
        %2544 = vmatprep.subr.mxu0 0.0
        %2545 = vmatpush1.msra.mxu0 %v2416
        %2546 = vmatprep.subr.mxu0 0.0
        %2547 = vmatpush1.msra.mxu0 %v2417
        %2548 = vmatprep.subr.mxu0 0.0
        %2549 = vmatpush1.msra.mxu0 %v2418
        %2550 = vmatprep.subr.mxu0 0.0
        %2551 = vmatpush1.msra.mxu0 %v2419
        %2552 = vmatprep.subr.mxu0 0.0
        %2553 = vmatpush1.msra.mxu0 0.0
        %2554 = vmatprep.subr.mxu0 0.0
        %2555 = vmatpush1.msra.mxu0 0.0
        %2556 = vmatprep.subr.mxu0 0.0
        %2557 = vmatpush1.msra.mxu0 0.0
        %2558 = vmatprep.subr.mxu0 0.0
        %2559 = vmatpush1.msra.mxu0 0.0
        %2560 = vmatprep.subr.mxu0 0.0
        %2561 = vmatpush1.msra.mxu0 0.0
        %2562 = vmatprep.subr.mxu0 0.0
        %2563 = vmatpush1.msra.mxu0 0.0
        %2564 = vmatprep.subr.mxu0 0.0
        %2565 = vmatpush1.msra.mxu0 0.0
        %2566 = vmatprep.subr.mxu0 0.0
        %2567 = vmatpush1.msra.mxu0 0.0
        %2568 = vmatprep.subr.mxu0 0.0
        %2569 = vmatpush1.msra.mxu0 0.0
        %2570 = vmatprep.subr.mxu0 0.0
        %2571 = vmatpush1.msra.mxu0 0.0
        %2572 = vmatprep.subr.mxu0 0.0
        %2573 = vmatpush1.msra.mxu0 0.0
        %2574 = vmatprep.subr.mxu0 0.0
        %2575 = vmatpush1.msra.mxu0 0.0
        %2576 = vmatprep.subr.mxu0 0.0
        %2577 = vmatpush1.msra.mxu0 0.0
        %2578 = vmatprep.subr.mxu0 0.0
        %2579 = vmatpush1.msra.mxu0 0.0
        %2580 = vmatprep.subr.mxu0 0.0
        %2581 = vmatpush1.msra.mxu0 0.0
        %2582 = vmatprep.subr.mxu0 0.0
        %2583 = vmatpush1.msra.mxu0 0.0
        %2584 = vmatprep.subr.mxu0 0.0
        %2585 = vmatpush1.msra.mxu0 0.0
        %2586 = vmatprep.subr.mxu0 0.0
        %2587 = vmatpush1.msra.mxu0 0.0
        %2588 = vmatprep.subr.mxu0 0.0
        %2589 = vmatpush1.msra.mxu0 0.0
        %2590 = vmatprep.subr.mxu0 0.0
        %2591 = vmatpush1.msra.mxu0 0.0
        %2592 = vmatprep.subr.mxu0 0.0
        %2593 = vmatpush1.msra.mxu0 0.0
        %2594 = vmatprep.subr.mxu0 0.0
        %2595 = vmatpush1.msra.mxu0 0.0
        %2596 = vmatprep.subr.mxu0 0.0
        %2597 = vmatpush1.msra.mxu0 0.0
        %2598 = vmatprep.subr.mxu0 0.0
        %2599 = vmatpush1.msra.mxu0 0.0
        %2600 = vmatprep.subr.mxu0 0.0
        %2601 = vmatpush1.msra.mxu0 0.0
        %2602 = vmatprep.subr.mxu0 0.0
        %2603 = vmatpush1.msra.mxu0 0.0
        %2604 = vmatprep.subr.mxu0 0.0
        %2605 = vmatpush1.msra.mxu0 0.0
        %2606 = vmatprep.subr.mxu0 0.0
        %2607 = vmatpush1.msra.mxu0 0.0
        %2608 = vmatprep.mubr.f32.mxu0 0.0
        %2609 = vmatmul.mubr.f32.gmra.mrb[0].mxu0 %v2494
        %v2610 = vpop.f32.mrb[0].mxu0
        %v2611 = vadd.f32 0.0, %v2610
        %v2612 = vpop.f32.mrb[0].mxu0
        %2613 = vmatprep.mubr.f32.mxu0 0.0
        %2614 = vmatmul.mubr.f32.gmra.mrb[0].mxu0 %v2496
        %v2615 = vpop.f32.mrb[0].mxu0
        %v2616 = vadd.f32 0.0, %v2615
        %v2617 = vpop.f32.mrb[0].mxu0
        %2618 = vmatprep.mubr.f32.mxu0 0.0
        %2619 = vmatmul.mubr.f32.gmra.mrb[0].mxu0 %v2498
        %v2620 = vpop.f32.mrb[0].mxu0
        %v2621 = vadd.f32 0.0, %v2620
        %v2622 = vpop.f32.mrb[0].mxu0
        %2623 = vmatprep.mubr.f32.mxu0 0.0
        %2624 = vmatmul.mubr.f32.gmra.mrb[0].mxu0 %v2500
        %v2625 = vpop.f32.mrb[0].mxu0
        %v2626 = vadd.f32 0.0, %v2625
        %v2627 = vpop.f32.mrb[0].mxu0
        %2628 = vmatprep.mubr.f32.mxu0 0.0
        %2629 = vmatmul.mubr.f32.gmra.mrb[0].mxu0 %v2502
        %v2630 = vpop.f32.mrb[0].mxu0
        %v2631 = vadd.f32 0.0, %v2630
        %v2632 = vpop.f32.mrb[0].mxu0
        %2633 = vmatprep.mubr.f32.mxu0 0.0
        %2634 = vmatmul.mubr.f32.gmra.mrb[0].mxu0 %v2504
        %v2635 = vpop.f32.mrb[0].mxu0
        %v2636 = vadd.f32 0.0, %v2635
        %v2637 = vpop.f32.mrb[0].mxu0
        %2638 = vmatprep.mubr.f32.mxu0 0.0
        %2639 = vmatmul.mubr.f32.gmra.mrb[0].mxu0 %v2506
        %v2640 = vpop.f32.mrb[0].mxu0
        %v2641 = vadd.f32 0.0, %v2640
        %v2642 = vpop.f32.mrb[0].mxu0
        %2643 = vmatprep.mubr.f32.mxu0 0.0
        %2644 = vmatmul.mubr.f32.gmra.mrb[0].mxu0 %v2508
        %v2645 = vpop.f32.mrb[0].mxu0
        %v2646 = vadd.f32 0.0, %v2645
        %v2647 = vpop.f32.mrb[0].mxu0
        %2648 = vmatprep.mubr.f32.mxu0 0.0
        %2649 = vmatmul.mubr.f32.gmra.mrb[0].mxu0 %v2510
        %v2650 = vpop.f32.mrb[0].mxu0
        %v2651 = vadd.f32 0.0, %v2650
        %v2652 = vpop.f32.mrb[0].mxu0
        %2653 = vmatprep.mubr.f32.mxu0 0.0
        %2654 = vmatmul.mubr.f32.gmra.mrb[0].mxu0 %v2512
        %v2655 = vpop.f32.mrb[0].mxu0
        %v2656 = vadd.f32 0.0, %v2655
        %v2657 = vpop.f32.mrb[0].mxu0
        %2658 = vmatprep.mubr.f32.mxu0 0.0
        %2659 = vmatmul.mubr.f32.gmra.mrb[0].mxu0 %v2514
        %v2660 = vpop.f32.mrb[0].mxu0
        %v2661 = vadd.f32 0.0, %v2660
        %v2662 = vpop.f32.mrb[0].mxu0
        %2663 = vmatprep.mubr.f32.mxu0 0.0
        %2664 = vmatmul.mubr.f32.gmra.mrb[0].mxu0 %v2516
        %v2665 = vpop.f32.mrb[0].mxu0
        %v2666 = vadd.f32 0.0, %v2665
        %v2667 = vpop.f32.mrb[0].mxu0
        %2668 = vmatprep.mubr.f32.mxu0 0.0
        %2669 = vmatmul.mubr.f32.gmra.mrb[0].mxu0 %v2518
        %v2670 = vpop.f32.mrb[0].mxu0
        %v2671 = vadd.f32 0.0, %v2670
        %v2672 = vpop.f32.mrb[0].mxu0
        %2673 = vmatprep.mubr.f32.mxu0 0.0
        %2674 = vmatmul.mubr.f32.gmra.mrb[0].mxu0 %v2520
        %v2675 = vpop.f32.mrb[0].mxu0
        %v2676 = vadd.f32 0.0, %v2675
        %v2677 = vpop.f32.mrb[0].mxu0
        %2678 = vmatprep.mubr.f32.mxu0 0.0
        %2679 = vmatmul.mubr.f32.gmra.mrb[0].mxu0 %v2522
        %v2680 = vpop.f32.mrb[0].mxu0
        %v2681 = vadd.f32 0.0, %v2680
        %v2682 = vpop.f32.mrb[0].mxu0
        %2683 = vmatprep.mubr.f32.mxu0 0.0
        %2684 = vmatmul.mubr.f32.gmra.mrb[0].mxu0 %v2524
        %v2685 = vpop.f32.mrb[0].mxu0
        %v2686 = vadd.f32 0.0, %v2685
        %v2687 = vpop.f32.mrb[0].mxu0
        %2688 = vmatprep.mubr.f32.mxu0 0.0
        %2689 = vmatmul.mubr.f32.gmra.mrb[0].mxu0 %v2526
        %v2690 = vpop.f32.mrb[0].mxu0
        %v2691 = vadd.f32 0.0, %v2690
        %v2692 = vpop.f32.mrb[0].mxu0
        %2693 = vmatprep.mubr.f32.mxu0 0.0
        %2694 = vmatmul.mubr.f32.gmra.mrb[0].mxu0 %v2528
        %v2695 = vpop.f32.mrb[0].mxu0
        %v2696 = vadd.f32 0.0, %v2695
        %v2697 = vpop.f32.mrb[0].mxu0
        %2698 = vmatprep.mubr.f32.mxu0 0.0
        %2699 = vmatmul.mubr.f32.gmra.mrb[0].mxu0 %v2530
        %v2700 = vpop.f32.mrb[0].mxu0
        %v2701 = vadd.f32 0.0, %v2700
        %v2702 = vpop.f32.mrb[0].mxu0
        %2703 = vmatprep.mubr.f32.mxu0 0.0
        %2704 = vmatmul.mubr.f32.gmra.mrb[0].mxu0 %v2532
        %v2705 = vpop.f32.mrb[0].mxu0
        %v2706 = vadd.f32 0.0, %v2705
        %v2707 = vpop.f32.mrb[0].mxu0
        %2708 = vmatprep.mubr.f32.mxu0 0.0
        %2709 = vmatmul.mubr.f32.gmra.mrb[0].mxu0 %v2534
        %v2710 = vpop.f32.mrb[0].mxu0
        %v2711 = vadd.f32 0.0, %v2710
        %v2712 = vpop.f32.mrb[0].mxu0
        %2713 = vmatprep.mubr.f32.mxu0 0.0
        %2714 = vmatmul.mubr.f32.gmra.mrb[0].mxu0 %v2536
        %v2715 = vpop.f32.mrb[0].mxu0
        %v2716 = vadd.f32 0.0, %v2715
        %v2717 = vpop.f32.mrb[0].mxu0
        %2718 = vmatprep.mubr.f32.mxu0 0.0
        %2719 = vmatmul.mubr.f32.gmra.mrb[0].mxu0 %v2538
        %v2720 = vpop.f32.mrb[0].mxu0
        %v2721 = vadd.f32 0.0, %v2720
        %v2722 = vpop.f32.mrb[0].mxu0
        %2723 = vmatprep.mubr.f32.mxu0 0.0
        %2724 = vmatmul.mubr.f32.gmra.mrb[0].mxu0 %v2540
        %v2725 = vpop.f32.mrb[0].mxu0
        %v2726 = vadd.f32 0.0, %v2725
        %v2727 = vpop.f32.mrb[0].mxu0
        %2728 = vmatprep.mubr.f32.mxu0 0.0
        %2729 = vmatmul.mubr.f32.gmra.mrb[0].mxu0 %v2542
        %v2730 = vpop.f32.mrb[0].mxu0
        %v2731 = vadd.f32 0.0, %v2730
        %v2732 = vpop.f32.mrb[0].mxu0
        %2733 = vdwg.mxu0
        %v2734 = vsel %vm1554, %v2385, 0
        %v2736 = vsel %vm1554, %v2386, 0
        %v2738 = vsel %vm1554, %v2387, 0
        %v2740 = vsel %vm1554, %v2388, 0
        %v2742 = vsel %vm1554, %v2389, 0
        %v2744 = vsel %vm1554, %v2390, 0
        %v2746 = vsel %vm1554, %v2391, 0
        %v2748 = vsel %vm1554, %v2392, 0
        %v2750 = vsel %vm1554, %v2393, 0
        %v2752 = vsel %vm1554, %v2394, 0
        %v2754 = vsel %vm1554, %v2395, 0
        %v2756 = vsel %vm1554, %v2396, 0
        %v2758 = vsel %vm1554, %v2397, 0
        %v2760 = vsel %vm1554, %v2398, 0
        %v2762 = vsel %vm1554, %v2399, 0
        %v2764 = vsel %vm1554, %v2400, 0
        %v2766 = vsel %vm1554, %v2401, 0
        %v2768 = vsel %vm1554, %v2402, 0
        %v2770 = vsel %vm1554, %v2403, 0
        %v2772 = vsel %vm1554, %v2404, 0
        %v2774 = vsel %vm1554, %v2405, 0
        %v2776 = vsel %vm1554, %v2406, 0
        %v2778 = vsel %vm1554, %v2407, 0
        %v2780 = vsel %vm1554, %v2408, 0
        %v2782 = vsel %vm1554, %v2409, 0
        %2784 = vmatprep.subr.mxu0 0.0
        %2785 = vmatpush1.msra.mxu0 %v2411
        %2786 = vmatprep.subr.mxu0 0.0
        %2787 = vmatpush1.msra.mxu0 %v2412
        %2788 = vmatprep.subr.mxu0 0.0
        %2789 = vmatpush1.msra.mxu0 %v2413
        %2790 = vmatprep.subr.mxu0 0.0
        %2791 = vmatpush1.msra.mxu0 %v2414
        %2792 = vmatprep.subr.mxu0 0.0
        %2793 = vmatpush1.msra.mxu0 0.0
        %2794 = vmatprep.subr.mxu0 0.0
        %2795 = vmatpush1.msra.mxu0 0.0
        %2796 = vmatprep.subr.mxu0 0.0
        %2797 = vmatpush1.msra.mxu0 0.0
        %2798 = vmatprep.subr.mxu0 0.0
        %2799 = vmatpush1.msra.mxu0 0.0
        %2800 = vmatprep.subr.mxu0 0.0
        %2801 = vmatpush1.msra.mxu0 0.0
        %2802 = vmatprep.subr.mxu0 0.0
        %2803 = vmatpush1.msra.mxu0 0.0
        %2804 = vmatprep.subr.mxu0 0.0
        %2805 = vmatpush1.msra.mxu0 0.0
        %2806 = vmatprep.subr.mxu0 0.0
        %2807 = vmatpush1.msra.mxu0 0.0
        %2808 = vmatprep.subr.mxu0 0.0
        %2809 = vmatpush1.msra.mxu0 0.0
        %2810 = vmatprep.subr.mxu0 0.0
        %2811 = vmatpush1.msra.mxu0 0.0
        %2812 = vmatprep.subr.mxu0 0.0
        %2813 = vmatpush1.msra.mxu0 0.0
        %2814 = vmatprep.subr.mxu0 0.0
        %2815 = vmatpush1.msra.mxu0 0.0
        %2816 = vmatprep.subr.mxu0 0.0
        %2817 = vmatpush1.msra.mxu0 0.0
        %2818 = vmatprep.subr.mxu0 0.0
        %2819 = vmatpush1.msra.mxu0 0.0
        %2820 = vmatprep.subr.mxu0 0.0
        %2821 = vmatpush1.msra.mxu0 0.0
        %2822 = vmatprep.subr.mxu0 0.0
        %2823 = vmatpush1.msra.mxu0 0.0
        %2824 = vmatprep.subr.mxu0 0.0
        %2825 = vmatpush1.msra.mxu0 0.0
        %2826 = vmatprep.subr.mxu0 0.0
        %2827 = vmatpush1.msra.mxu0 0.0
        %2828 = vmatprep.subr.mxu0 0.0
        %2829 = vmatpush1.msra.mxu0 0.0
        %2830 = vmatprep.subr.mxu0 0.0
        %2831 = vmatpush1.msra.mxu0 0.0
        %2832 = vmatprep.subr.mxu0 0.0
        %2833 = vmatpush1.msra.mxu0 0.0
        %2834 = vmatprep.subr.mxu0 0.0
        %2835 = vmatpush1.msra.mxu0 0.0
        %2836 = vmatprep.subr.mxu0 0.0
        %2837 = vmatpush1.msra.mxu0 0.0
        %2838 = vmatprep.subr.mxu0 0.0
        %2839 = vmatpush1.msra.mxu0 0.0
        %2840 = vmatprep.subr.mxu0 0.0
        %2841 = vmatpush1.msra.mxu0 0.0
        %2842 = vmatprep.subr.mxu0 0.0
        %2843 = vmatpush1.msra.mxu0 0.0
        %2844 = vmatprep.subr.mxu0 0.0
        %2845 = vmatpush1.msra.mxu0 0.0
        %2846 = vmatprep.subr.mxu0 0.0
        %2847 = vmatpush1.msra.mxu0 0.0
        %2848 = vmatprep.mubr.f32.mxu0 0.0
        %2849 = vmatmul.mubr.f32.gmra.mrb[0].mxu0 %v2734
        %v2850 = vpop.f32.mrb[0].mxu0
        %v2851 = vadd.f32 %v2611, %v2850
        %v2852 = vpop.f32.mrb[0].mxu0
        %2853 = vmatprep.mubr.f32.mxu0 0.0
        %2854 = vmatmul.mubr.f32.gmra.mrb[0].mxu0 %v2736
        %v2855 = vpop.f32.mrb[0].mxu0
        %v2856 = vadd.f32 %v2616, %v2855
        %v2857 = vpop.f32.mrb[0].mxu0
        %2858 = vmatprep.mubr.f32.mxu0 0.0
        %2859 = vmatmul.mubr.f32.gmra.mrb[0].mxu0 %v2738
        %v2860 = vpop.f32.mrb[0].mxu0
        %v2861 = vadd.f32 %v2621, %v2860
        %v2862 = vpop.f32.mrb[0].mxu0
        %2863 = vmatprep.mubr.f32.mxu0 0.0
        %2864 = vmatmul.mubr.f32.gmra.mrb[0].mxu0 %v2740
        %v2865 = vpop.f32.mrb[0].mxu0
        %v2866 = vadd.f32 %v2626, %v2865
        %v2867 = vpop.f32.mrb[0].mxu0
        %2868 = vmatprep.mubr.f32.mxu0 0.0
        %2869 = vmatmul.mubr.f32.gmra.mrb[0].mxu0 %v2742
        %v2870 = vpop.f32.mrb[0].mxu0
        %v2871 = vadd.f32 %v2631, %v2870
        %v2872 = vpop.f32.mrb[0].mxu0
        %2873 = vmatprep.mubr.f32.mxu0 0.0
        %2874 = vmatmul.mubr.f32.gmra.mrb[0].mxu0 %v2744
        %v2875 = vpop.f32.mrb[0].mxu0
        %v2876 = vadd.f32 %v2636, %v2875
        %v2877 = vpop.f32.mrb[0].mxu0
        %2878 = vmatprep.mubr.f32.mxu0 0.0
        %2879 = vmatmul.mubr.f32.gmra.mrb[0].mxu0 %v2746
        %v2880 = vpop.f32.mrb[0].mxu0
        %v2881 = vadd.f32 %v2641, %v2880
        %v2882 = vpop.f32.mrb[0].mxu0
        %2883 = vmatprep.mubr.f32.mxu0 0.0
        %2884 = vmatmul.mubr.f32.gmra.mrb[0].mxu0 %v2748
        %v2885 = vpop.f32.mrb[0].mxu0
        %v2886 = vadd.f32 %v2646, %v2885
        %v2887 = vpop.f32.mrb[0].mxu0
        %2888 = vmatprep.mubr.f32.mxu0 0.0
        %2889 = vmatmul.mubr.f32.gmra.mrb[0].mxu0 %v2750
        %v2890 = vpop.f32.mrb[0].mxu0
        %v2891 = vadd.f32 %v2651, %v2890
        %v2892 = vpop.f32.mrb[0].mxu0
        %2893 = vmatprep.mubr.f32.mxu0 0.0
        %2894 = vmatmul.mubr.f32.gmra.mrb[0].mxu0 %v2752
        %v2895 = vpop.f32.mrb[0].mxu0
        %v2896 = vadd.f32 %v2656, %v2895
        %v2897 = vpop.f32.mrb[0].mxu0
        %2898 = vmatprep.mubr.f32.mxu0 0.0
        %2899 = vmatmul.mubr.f32.gmra.mrb[0].mxu0 %v2754
        %v2900 = vpop.f32.mrb[0].mxu0
        %v2901 = vadd.f32 %v2661, %v2900
        %v2902 = vpop.f32.mrb[0].mxu0
        %2903 = vmatprep.mubr.f32.mxu0 0.0
        %2904 = vmatmul.mubr.f32.gmra.mrb[0].mxu0 %v2756
        %v2905 = vpop.f32.mrb[0].mxu0
        %v2906 = vadd.f32 %v2666, %v2905
        %v2907 = vpop.f32.mrb[0].mxu0
        %2908 = vmatprep.mubr.f32.mxu0 0.0
        %2909 = vmatmul.mubr.f32.gmra.mrb[0].mxu0 %v2758
        %v2910 = vpop.f32.mrb[0].mxu0
        %v2911 = vadd.f32 %v2671, %v2910
        %v2912 = vpop.f32.mrb[0].mxu0
        %2913 = vmatprep.mubr.f32.mxu0 0.0
        %2914 = vmatmul.mubr.f32.gmra.mrb[0].mxu0 %v2760
        %v2915 = vpop.f32.mrb[0].mxu0
        %v2916 = vadd.f32 %v2676, %v2915
        %v2917 = vpop.f32.mrb[0].mxu0
        %2918 = vmatprep.mubr.f32.mxu0 0.0
        %2919 = vmatmul.mubr.f32.gmra.mrb[0].mxu0 %v2762
        %v2920 = vpop.f32.mrb[0].mxu0
        %v2921 = vadd.f32 %v2681, %v2920
        %v2922 = vpop.f32.mrb[0].mxu0
        %2923 = vmatprep.mubr.f32.mxu0 0.0
        %2924 = vmatmul.mubr.f32.gmra.mrb[0].mxu0 %v2764
        %v2925 = vpop.f32.mrb[0].mxu0
        %v2926 = vadd.f32 %v2686, %v2925
        %v2927 = vpop.f32.mrb[0].mxu0
        %2928 = vmatprep.mubr.f32.mxu0 0.0
        %2929 = vmatmul.mubr.f32.gmra.mrb[0].mxu0 %v2766
        %v2930 = vpop.f32.mrb[0].mxu0
        %v2931 = vadd.f32 %v2691, %v2930
        %v2932 = vpop.f32.mrb[0].mxu0
        %2933 = vmatprep.mubr.f32.mxu0 0.0
        %2934 = vmatmul.mubr.f32.gmra.mrb[0].mxu0 %v2768
        %v2935 = vpop.f32.mrb[0].mxu0
        %v2936 = vadd.f32 %v2696, %v2935
        %v2937 = vpop.f32.mrb[0].mxu0
        %2938 = vmatprep.mubr.f32.mxu0 0.0
        %2939 = vmatmul.mubr.f32.gmra.mrb[0].mxu0 %v2770
        %v2940 = vpop.f32.mrb[0].mxu0
        %v2941 = vadd.f32 %v2701, %v2940
        %v2942 = vpop.f32.mrb[0].mxu0
        %2943 = vmatprep.mubr.f32.mxu0 0.0
        %2944 = vmatmul.mubr.f32.gmra.mrb[0].mxu0 %v2772
        %v2945 = vpop.f32.mrb[0].mxu0
        %v2946 = vadd.f32 %v2706, %v2945
        %v2947 = vpop.f32.mrb[0].mxu0
        %2948 = vmatprep.mubr.f32.mxu0 0.0
        %2949 = vmatmul.mubr.f32.gmra.mrb[0].mxu0 %v2774
        %v2950 = vpop.f32.mrb[0].mxu0
        %v2951 = vadd.f32 %v2711, %v2950
        %v2952 = vpop.f32.mrb[0].mxu0
        %2953 = vmatprep.mubr.f32.mxu0 0.0
        %2954 = vmatmul.mubr.f32.gmra.mrb[0].mxu0 %v2776
        %v2955 = vpop.f32.mrb[0].mxu0
        %v2956 = vadd.f32 %v2716, %v2955
        %v2957 = vpop.f32.mrb[0].mxu0
        %2958 = vmatprep.mubr.f32.mxu0 0.0
        %2959 = vmatmul.mubr.f32.gmra.mrb[0].mxu0 %v2778
        %v2960 = vpop.f32.mrb[0].mxu0
        %v2961 = vadd.f32 %v2721, %v2960
        %v2962 = vpop.f32.mrb[0].mxu0
        %2963 = vmatprep.mubr.f32.mxu0 0.0
        %2964 = vmatmul.mubr.f32.gmra.mrb[0].mxu0 %v2780
        %v2965 = vpop.f32.mrb[0].mxu0
        %v2966 = vadd.f32 %v2726, %v2965
        %v2967 = vpop.f32.mrb[0].mxu0
        %2968 = vmatprep.mubr.f32.mxu0 0.0
        %2969 = vmatmul.mubr.f32.gmra.mrb[0].mxu0 %v2782
        %v2970 = vpop.f32.mrb[0].mxu0
        %v2971 = vadd.f32 %v2731, %v2970
        %v2972 = vpop.f32.mrb[0].mxu0
        %2973 = vdwg.mxu0
        %s2974 = scalar_lea.vmem [#allocation4], 64
        %v2975 = vld [vmem:[%s2974] sm:$0xff]
        %v2976 = vld [vmem:[%s2974 + $0x8] sm:$0xff]
        %v2977 = vld [vmem:[%s2974 + $0x10] sm:$0xff]
        %v2978 = vld [vmem:[%s2974 + $0x18] sm:$0xff]
        %v2979 = vrot.slane %v2385, 2
        %v2980 = vrot.slane %v2386, 2
        %v2981 = vsel %vm1096, %v2979, %v2980
        %v2982 = vrot.slane %v2387, 2
        %v2983 = vsel %vm1096, %v2980, %v2982
        %v2984 = vrot.slane %v2388, 2
        %v2985 = vsel %vm1096, %v2982, %v2984
        %v2986 = vrot.slane %v2389, 2
        %v2987 = vsel %vm1096, %v2984, %v2986
        %v2988 = vrot.slane %v2390, 2
        %v2989 = vsel %vm1096, %v2986, %v2988
        %v2990 = vrot.slane %v2391, 2
        %v2991 = vsel %vm1096, %v2988, %v2990
        %v2992 = vrot.slane %v2392, 2
        %v2993 = vsel %vm1096, %v2990, %v2992
        %v2994 = vrot.slane %v2393, 2
        %v2995 = vsel %vm1096, %v2992, %v2994
        %v2996 = vrot.slane %v2394, 2
        %v2997 = vsel %vm1096, %v2994, %v2996
        %v2998 = vrot.slane %v2395, 2
        %v2999 = vsel %vm1096, %v2996, %v2998
        %v3000 = vrot.slane %v2396, 2
        %v3001 = vsel %vm1096, %v2998, %v3000
        %v3002 = vrot.slane %v2397, 2
        %v3003 = vsel %vm1096, %v3000, %v3002
        %v3004 = vrot.slane %v2398, 2
        %v3005 = vsel %vm1096, %v3002, %v3004
        %v3006 = vrot.slane %v2399, 2
        %v3007 = vsel %vm1096, %v3004, %v3006
        %v3008 = vrot.slane %v2400, 2
        %v3009 = vsel %vm1096, %v3006, %v3008
        %v3010 = vrot.slane %v2401, 2
        %v3011 = vsel %vm1096, %v3008, %v3010
        %v3012 = vrot.slane %v2402, 2
        %v3013 = vsel %vm1096, %v3010, %v3012
        %v3014 = vrot.slane %v2403, 2
        %v3015 = vsel %vm1096, %v3012, %v3014
        %v3016 = vrot.slane %v2404, 2
        %v3017 = vsel %vm1096, %v3014, %v3016
        %v3018 = vrot.slane %v2405, 2
        %v3019 = vsel %vm1096, %v3016, %v3018
        %v3020 = vrot.slane %v2406, 2
        %v3021 = vsel %vm1096, %v3018, %v3020
        %v3022 = vrot.slane %v2407, 2
        %v3023 = vsel %vm1096, %v3020, %v3022
        %v3024 = vrot.slane %v2408, 2
        %v3025 = vsel %vm1096, %v3022, %v3024
        %v3026 = vrot.slane %v2409, 2
        %v3027 = vsel %vm1096, %v3024, %v3026
        %v3028 = vsel %vm1554, %v2981, 0
        %v3030 = vsel %vm1554, %v2983, 0
        %v3032 = vsel %vm1554, %v2985, 0
        %v3034 = vsel %vm1554, %v2987, 0
        %v3036 = vsel %vm1554, %v2989, 0
        %v3038 = vsel %vm1554, %v2991, 0
        %v3040 = vsel %vm1554, %v2993, 0
        %v3042 = vsel %vm1554, %v2995, 0
        %v3044 = vsel %vm1554, %v2997, 0
        %v3046 = vsel %vm1554, %v2999, 0
        %v3048 = vsel %vm1554, %v3001, 0
        %v3050 = vsel %vm1554, %v3003, 0
        %v3052 = vsel %vm1554, %v3005, 0
        %v3054 = vsel %vm1554, %v3007, 0
        %v3056 = vsel %vm1554, %v3009, 0
        %v3058 = vsel %vm1554, %v3011, 0
        %v3060 = vsel %vm1554, %v3013, 0
        %v3062 = vsel %vm1554, %v3015, 0
        %v3064 = vsel %vm1554, %v3017, 0
        %v3066 = vsel %vm1554, %v3019, 0
        %v3068 = vsel %vm1554, %v3021, 0
        %v3070 = vsel %vm1554, %v3023, 0
        %v3072 = vsel %vm1554, %v3025, 0
        %v3074 = vsel %vm1554, %v3027, 0
        %v3076 = vsel %vm1554, %v3026, 0
        %3078 = vmatprep.subr.mxu0 0.0
        %3079 = vmatpush1.msra.mxu0 %v2975
        %3080 = vmatprep.subr.mxu0 0.0
        %3081 = vmatpush1.msra.mxu0 %v2976
        %3082 = vmatprep.subr.mxu0 0.0
        %3083 = vmatpush1.msra.mxu0 %v2977
        %3084 = vmatprep.subr.mxu0 0.0
        %3085 = vmatpush1.msra.mxu0 %v2978
        %3086 = vmatprep.subr.mxu0 0.0
        %3087 = vmatpush1.msra.mxu0 0.0
        %3088 = vmatprep.subr.mxu0 0.0
        %3089 = vmatpush1.msra.mxu0 0.0
        %3090 = vmatprep.subr.mxu0 0.0
        %3091 = vmatpush1.msra.mxu0 0.0
        %3092 = vmatprep.subr.mxu0 0.0
        %3093 = vmatpush1.msra.mxu0 0.0
        %3094 = vmatprep.subr.mxu0 0.0
        %3095 = vmatpush1.msra.mxu0 0.0
        %3096 = vmatprep.subr.mxu0 0.0
        %3097 = vmatpush1.msra.mxu0 0.0
        %3098 = vmatprep.subr.mxu0 0.0
        %3099 = vmatpush1.msra.mxu0 0.0
        %3100 = vmatprep.subr.mxu0 0.0
        %3101 = vmatpush1.msra.mxu0 0.0
        %3102 = vmatprep.subr.mxu0 0.0
        %3103 = vmatpush1.msra.mxu0 0.0
        %3104 = vmatprep.subr.mxu0 0.0
        %3105 = vmatpush1.msra.mxu0 0.0
        %3106 = vmatprep.subr.mxu0 0.0
        %3107 = vmatpush1.msra.mxu0 0.0
        %3108 = vmatprep.subr.mxu0 0.0
        %3109 = vmatpush1.msra.mxu0 0.0
        %3110 = vmatprep.subr.mxu0 0.0
        %3111 = vmatpush1.msra.mxu0 0.0
        %3112 = vmatprep.subr.mxu0 0.0
        %3113 = vmatpush1.msra.mxu0 0.0
        %3114 = vmatprep.subr.mxu0 0.0
        %3115 = vmatpush1.msra.mxu0 0.0
        %3116 = vmatprep.subr.mxu0 0.0
        %3117 = vmatpush1.msra.mxu0 0.0
        %3118 = vmatprep.subr.mxu0 0.0
        %3119 = vmatpush1.msra.mxu0 0.0
        %3120 = vmatprep.subr.mxu0 0.0
        %3121 = vmatpush1.msra.mxu0 0.0
        %3122 = vmatprep.subr.mxu0 0.0
        %3123 = vmatpush1.msra.mxu0 0.0
        %3124 = vmatprep.subr.mxu0 0.0
        %3125 = vmatpush1.msra.mxu0 0.0
        %3126 = vmatprep.subr.mxu0 0.0
        %3127 = vmatpush1.msra.mxu0 0.0
        %3128 = vmatprep.subr.mxu0 0.0
        %3129 = vmatpush1.msra.mxu0 0.0
        %3130 = vmatprep.subr.mxu0 0.0
        %3131 = vmatpush1.msra.mxu0 0.0
        %3132 = vmatprep.subr.mxu0 0.0
        %3133 = vmatpush1.msra.mxu0 0.0
        %3134 = vmatprep.subr.mxu0 0.0
        %3135 = vmatpush1.msra.mxu0 0.0
        %3136 = vmatprep.subr.mxu0 0.0
        %3137 = vmatpush1.msra.mxu0 0.0
        %3138 = vmatprep.subr.mxu0 0.0
        %3139 = vmatpush1.msra.mxu0 0.0
        %3140 = vmatprep.subr.mxu0 0.0
        %3141 = vmatpush1.msra.mxu0 0.0
        %3142 = vmatprep.mubr.f32.mxu0 0.0
        %3143 = vmatmul.mubr.f32.gmra.mrb[0].mxu0 %v3028
        %v3144 = vpop.f32.mrb[0].mxu0
        %v3145 = vadd.f32 0.0, %v3144
        %v3146 = vpop.f32.mrb[0].mxu0
        %3147 = vmatprep.mubr.f32.mxu0 0.0
        %3148 = vmatmul.mubr.f32.gmra.mrb[0].mxu0 %v3030
        %v3149 = vpop.f32.mrb[0].mxu0
        %v3150 = vadd.f32 0.0, %v3149
        %v3151 = vpop.f32.mrb[0].mxu0
        %3152 = vmatprep.mubr.f32.mxu0 0.0
        %3153 = vmatmul.mubr.f32.gmra.mrb[0].mxu0 %v3032
        %v3154 = vpop.f32.mrb[0].mxu0
        %v3155 = vadd.f32 0.0, %v3154
        %v3156 = vpop.f32.mrb[0].mxu0
        %3157 = vmatprep.mubr.f32.mxu0 0.0
        %3158 = vmatmul.mubr.f32.gmra.mrb[0].mxu0 %v3034
        %v3159 = vpop.f32.mrb[0].mxu0
        %v3160 = vadd.f32 0.0, %v3159
        %v3161 = vpop.f32.mrb[0].mxu0
        %3162 = vmatprep.mubr.f32.mxu0 0.0
        %3163 = vmatmul.mubr.f32.gmra.mrb[0].mxu0 %v3036
        %v3164 = vpop.f32.mrb[0].mxu0
        %v3165 = vadd.f32 0.0, %v3164
        %v3166 = vpop.f32.mrb[0].mxu0
        %3167 = vmatprep.mubr.f32.mxu0 0.0
        %3168 = vmatmul.mubr.f32.gmra.mrb[0].mxu0 %v3038
        %v3169 = vpop.f32.mrb[0].mxu0
        %v3170 = vadd.f32 0.0, %v3169
        %v3171 = vpop.f32.mrb[0].mxu0
        %3172 = vmatprep.mubr.f32.mxu0 0.0
        %3173 = vmatmul.mubr.f32.gmra.mrb[0].mxu0 %v3040
        %v3174 = vpop.f32.mrb[0].mxu0
        %v3175 = vadd.f32 0.0, %v3174
        %v3176 = vpop.f32.mrb[0].mxu0
        %3177 = vmatprep.mubr.f32.mxu0 0.0
        %3178 = vmatmul.mubr.f32.gmra.mrb[0].mxu0 %v3042
        %v3179 = vpop.f32.mrb[0].mxu0
        %v3180 = vadd.f32 0.0, %v3179
        %v3181 = vpop.f32.mrb[0].mxu0
        %3182 = vmatprep.mubr.f32.mxu0 0.0
        %3183 = vmatmul.mubr.f32.gmra.mrb[0].mxu0 %v3044
        %v3184 = vpop.f32.mrb[0].mxu0
        %v3185 = vadd.f32 0.0, %v3184
        %v3186 = vpop.f32.mrb[0].mxu0
        %3187 = vmatprep.mubr.f32.mxu0 0.0
        %3188 = vmatmul.mubr.f32.gmra.mrb[0].mxu0 %v3046
        %v3189 = vpop.f32.mrb[0].mxu0
        %v3190 = vadd.f32 0.0, %v3189
        %v3191 = vpop.f32.mrb[0].mxu0
        %3192 = vmatprep.mubr.f32.mxu0 0.0
        %3193 = vmatmul.mubr.f32.gmra.mrb[0].mxu0 %v3048
        %v3194 = vpop.f32.mrb[0].mxu0
        %v3195 = vadd.f32 0.0, %v3194
        %v3196 = vpop.f32.mrb[0].mxu0
        %3197 = vmatprep.mubr.f32.mxu0 0.0
        %3198 = vmatmul.mubr.f32.gmra.mrb[0].mxu0 %v3050
        %v3199 = vpop.f32.mrb[0].mxu0
        %v3200 = vadd.f32 0.0, %v3199
        %v3201 = vpop.f32.mrb[0].mxu0
        %3202 = vmatprep.mubr.f32.mxu0 0.0
        %3203 = vmatmul.mubr.f32.gmra.mrb[0].mxu0 %v3052
        %v3204 = vpop.f32.mrb[0].mxu0
        %v3205 = vadd.f32 0.0, %v3204
        %v3206 = vpop.f32.mrb[0].mxu0
        %3207 = vmatprep.mubr.f32.mxu0 0.0
        %3208 = vmatmul.mubr.f32.gmra.mrb[0].mxu0 %v3054
        %v3209 = vpop.f32.mrb[0].mxu0
        %v3210 = vadd.f32 0.0, %v3209
        %v3211 = vpop.f32.mrb[0].mxu0
        %3212 = vmatprep.mubr.f32.mxu0 0.0
        %3213 = vmatmul.mubr.f32.gmra.mrb[0].mxu0 %v3056
        %v3214 = vpop.f32.mrb[0].mxu0
        %v3215 = vadd.f32 0.0, %v3214
        %v3216 = vpop.f32.mrb[0].mxu0
        %3217 = vmatprep.mubr.f32.mxu0 0.0
        %3218 = vmatmul.mubr.f32.gmra.mrb[0].mxu0 %v3058
        %v3219 = vpop.f32.mrb[0].mxu0
        %v3220 = vadd.f32 0.0, %v3219
        %v3221 = vpop.f32.mrb[0].mxu0
        %3222 = vmatprep.mubr.f32.mxu0 0.0
        %3223 = vmatmul.mubr.f32.gmra.mrb[0].mxu0 %v3060
        %v3224 = vpop.f32.mrb[0].mxu0
        %v3225 = vadd.f32 0.0, %v3224
        %v3226 = vpop.f32.mrb[0].mxu0
        %3227 = vmatprep.mubr.f32.mxu0 0.0
        %3228 = vmatmul.mubr.f32.gmra.mrb[0].mxu0 %v3062
        %v3229 = vpop.f32.mrb[0].mxu0
        %v3230 = vadd.f32 0.0, %v3229
        %v3231 = vpop.f32.mrb[0].mxu0
        %3232 = vmatprep.mubr.f32.mxu0 0.0
        %3233 = vmatmul.mubr.f32.gmra.mrb[0].mxu0 %v3064
        %v3234 = vpop.f32.mrb[0].mxu0
        %v3235 = vadd.f32 0.0, %v3234
        %v3236 = vpop.f32.mrb[0].mxu0
        %3237 = vmatprep.mubr.f32.mxu0 0.0
        %3238 = vmatmul.mubr.f32.gmra.mrb[0].mxu0 %v3066
        %v3239 = vpop.f32.mrb[0].mxu0
        %v3240 = vadd.f32 0.0, %v3239
        %v3241 = vpop.f32.mrb[0].mxu0
        %3242 = vmatprep.mubr.f32.mxu0 0.0
        %3243 = vmatmul.mubr.f32.gmra.mrb[0].mxu0 %v3068
        %v3244 = vpop.f32.mrb[0].mxu0
        %v3245 = vadd.f32 0.0, %v3244
        %v3246 = vpop.f32.mrb[0].mxu0
        %3247 = vmatprep.mubr.f32.mxu0 0.0
        %3248 = vmatmul.mubr.f32.gmra.mrb[0].mxu0 %v3070
        %v3249 = vpop.f32.mrb[0].mxu0
        %v3250 = vadd.f32 0.0, %v3249
        %v3251 = vpop.f32.mrb[0].mxu0
        %3252 = vmatprep.mubr.f32.mxu0 0.0
        %3253 = vmatmul.mubr.f32.gmra.mrb[0].mxu0 %v3072
        %v3254 = vpop.f32.mrb[0].mxu0
        %v3255 = vadd.f32 0.0, %v3254
        %v3256 = vpop.f32.mrb[0].mxu0
        %3257 = vmatprep.mubr.f32.mxu0 0.0
        %3258 = vmatmul.mubr.f32.gmra.mrb[0].mxu0 %v3074
        %v3259 = vpop.f32.mrb[0].mxu0
        %v3260 = vadd.f32 0.0, %v3259
        %v3261 = vpop.f32.mrb[0].mxu0
        %3262 = vmatprep.mubr.f32.mxu0 0.0
        %3263 = vmatmul.mubr.f32.gmra.mrb[0].mxu0 %v3076
        %v3264 = vpop.f32.mrb[0].mxu0
        %v3265 = vadd.f32 0.0, %v3264
        %v3266 = vpop.f32.mrb[0].mxu0
        %3267 = vdwg.mxu0
        %v3268 = vadd.f32 %v2851, %v3145
        %v3269 = vadd.f32 %v2856, %v3150
        %v3270 = vadd.f32 %v2861, %v3155
        %v3271 = vadd.f32 %v2866, %v3160
        %v3272 = vadd.f32 %v2871, %v3165
        %v3273 = vadd.f32 %v2876, %v3170
        %v3274 = vadd.f32 %v2881, %v3175
        %v3275 = vadd.f32 %v2886, %v3180
        %v3276 = vadd.f32 %v2891, %v3185
        %v3277 = vadd.f32 %v2896, %v3190
        %v3278 = vadd.f32 %v2901, %v3195
        %v3279 = vadd.f32 %v2906, %v3200
        %v3280 = vadd.f32 %v2911, %v3205
        %v3281 = vadd.f32 %v2916, %v3210
        %v3282 = vadd.f32 %v2921, %v3215
        %v3283 = vadd.f32 %v2926, %v3220
        %v3284 = vadd.f32 %v2931, %v3225
        %v3285 = vadd.f32 %v2936, %v3230
        %v3286 = vadd.f32 %v2941, %v3235
        %v3287 = vadd.f32 %v2946, %v3240
        %v3288 = vadd.f32 %v2951, %v3245
        %v3289 = vadd.f32 %v2956, %v3250
        %v3290 = vadd.f32 %v2961, %v3255
        %v3291 = vadd.f32 %v2966, %v3260
        %v3292 = vadd.f32 %v2971, %v3265
        %v3294 = vlaneseq
        %v3295 = vshrl.u32 %v3294, 7
        %v3296 = vsub.s32 0, %v3295
        %v3297 = vrot.slane %v2410, %v3296
        %v3299 = vadd.f32 %v3268, %v3297
        %v3300 = vadd.f32 %v3269, %v3297
        %v3301 = vadd.f32 %v3270, %v3297
        %v3302 = vadd.f32 %v3271, %v3297
        %v3303 = vadd.f32 %v3272, %v3297
        %v3304 = vadd.f32 %v3273, %v3297
        %v3305 = vadd.f32 %v3274, %v3297
        %v3306 = vadd.f32 %v3275, %v3297
        %v3307 = vadd.f32 %v3276, %v3297
        %v3308 = vadd.f32 %v3277, %v3297
        %v3309 = vadd.f32 %v3278, %v3297
        %v3310 = vadd.f32 %v3279, %v3297
        %v3311 = vadd.f32 %v3280, %v3297
        %v3312 = vadd.f32 %v3281, %v3297
        %v3313 = vadd.f32 %v3282, %v3297
        %v3314 = vadd.f32 %v3283, %v3297
        %v3315 = vadd.f32 %v3284, %v3297
        %v3316 = vadd.f32 %v3285, %v3297
        %v3317 = vadd.f32 %v3286, %v3297
        %v3318 = vadd.f32 %v3287, %v3297
        %v3319 = vadd.f32 %v3288, %v3297
        %v3320 = vadd.f32 %v3289, %v3297
        %v3321 = vadd.f32 %v3290, %v3297
        %v3322 = vadd.f32 %v3291, %v3297
        %v3323 = vadd.f32 %v3292, %v3297
        %v3324 = vmax.f32 %v3299, 0.0
        %v3325 = vmax.f32 %v3300, 0.0
        %v3326 = vmax.f32 %v3301, 0.0
        %v3327 = vmax.f32 %v3302, 0.0
        %v3328 = vmax.f32 %v3303, 0.0
        %v3329 = vmax.f32 %v3304, 0.0
        %v3330 = vmax.f32 %v3305, 0.0
        %v3331 = vmax.f32 %v3306, 0.0
        %v3332 = vmax.f32 %v3307, 0.0
        %v3333 = vmax.f32 %v3308, 0.0
        %v3334 = vmax.f32 %v3309, 0.0
        %v3335 = vmax.f32 %v3310, 0.0
        %v3336 = vmax.f32 %v3311, 0.0
        %v3337 = vmax.f32 %v3312, 0.0
        %v3338 = vmax.f32 %v3313, 0.0
        %v3339 = vmax.f32 %v3314, 0.0
        %v3340 = vmax.f32 %v3315, 0.0
        %v3341 = vmax.f32 %v3316, 0.0
        %v3342 = vmax.f32 %v3317, 0.0
        %v3343 = vmax.f32 %v3318, 0.0
        %v3344 = vmax.f32 %v3319, 0.0
        %v3345 = vmax.f32 %v3320, 0.0
        %v3346 = vmax.f32 %v3321, 0.0
        %v3347 = vmax.f32 %v3322, 0.0
        %v3348 = vmax.f32 %v3323, 0.0
        %v3349 = vld [vmem:[%s8] sm:$0x1]
        %v3350 = vld [vmem:[#allocation6] sm:$0xff]
        %v3351 = vld [vmem:[#allocation6 + $0x8] sm:$0xff]
        %v3352 = vld [vmem:[#allocation6 + $0x10] sm:$0xff]
        %v3353 = vld [vmem:[#allocation6 + $0x18] sm:$0xff]
        %v3354 = vld [vmem:[#allocation6 + $0x20] sm:$0xff]
        %v3355 = vld [vmem:[#allocation6 + $0x28] sm:$0xff]
        %v3356 = vld [vmem:[#allocation6 + $0x30] sm:$0xff]
        %v3357 = vld [vmem:[#allocation6 + $0x38] sm:$0xff]
        %s3358 = scalar_lea.vmem [#allocation6], 64
        %v3359 = vld [vmem:[%s3358] sm:$0xff]
        %v3360 = vld [vmem:[%s3358 + $0x8] sm:$0xff]
        %v3361 = vld [vmem:[%s3358 + $0x10] sm:$0xff]
        %v3362 = vld [vmem:[%s3358 + $0x18] sm:$0xff]
        %v3363 = vld [vmem:[%s3358 + $0x20] sm:$0xff]
        %v3364 = vld [vmem:[%s3358 + $0x28] sm:$0xff]
        %v3365 = vld [vmem:[%s3358 + $0x30] sm:$0xff]
        %v3366 = vld [vmem:[%s3358 + $0x38] sm:$0xff]
        %v3392 = vrot.slane %v3324, 1
        %v3393 = vrot.slane %v3325, 1
        %v3394 = vsel %vm556, %v3392, %v3393
        %v3395 = vrot.slane %v3326, 1
        %v3396 = vsel %vm556, %v3393, %v3395
        %v3397 = vrot.slane %v3327, 1
        %v3398 = vsel %vm556, %v3395, %v3397
        %v3399 = vrot.slane %v3328, 1
        %v3400 = vsel %vm556, %v3397, %v3399
        %v3401 = vrot.slane %v3329, 1
        %v3402 = vsel %vm556, %v3399, %v3401
        %v3403 = vrot.slane %v3330, 1
        %v3404 = vsel %vm556, %v3401, %v3403
        %v3405 = vrot.slane %v3331, 1
        %v3406 = vsel %vm556, %v3403, %v3405
        %v3407 = vrot.slane %v3332, 1
        %v3408 = vsel %vm556, %v3405, %v3407
        %v3409 = vrot.slane %v3333, 1
        %v3410 = vsel %vm556, %v3407, %v3409
        %v3411 = vrot.slane %v3334, 1
        %v3412 = vsel %vm556, %v3409, %v3411
        %v3413 = vrot.slane %v3335, 1
        %v3414 = vsel %vm556, %v3411, %v3413
        %v3415 = vrot.slane %v3336, 1
        %v3416 = vsel %vm556, %v3413, %v3415
        %v3417 = vrot.slane %v3337, 1
        %v3418 = vsel %vm556, %v3415, %v3417
        %v3419 = vrot.slane %v3338, 1
        %v3420 = vsel %vm556, %v3417, %v3419
        %v3421 = vrot.slane %v3339, 1
        %v3422 = vsel %vm556, %v3419, %v3421
        %v3423 = vrot.slane %v3340, 1
        %v3424 = vsel %vm556, %v3421, %v3423
        %v3425 = vrot.slane %v3341, 1
        %v3426 = vsel %vm556, %v3423, %v3425
        %v3427 = vrot.slane %v3342, 1
        %v3428 = vsel %vm556, %v3425, %v3427
        %v3429 = vrot.slane %v3343, 1
        %v3430 = vsel %vm556, %v3427, %v3429
        %v3431 = vrot.slane %v3344, 1
        %v3432 = vsel %vm556, %v3429, %v3431
        %v3433 = vrot.slane %v3345, 1
        %v3434 = vsel %vm556, %v3431, %v3433
        %v3435 = vrot.slane %v3346, 1
        %v3436 = vsel %vm556, %v3433, %v3435
        %v3437 = vrot.slane %v3347, 1
        %v3438 = vsel %vm556, %v3435, %v3437
        %v3439 = vrot.slane %v3348, 1
        %v3440 = vsel %vm556, %v3437, %v3439
        %vm3441 = vcmask 523264
        %v3442 = vsel %vm3441, %v3394, 0
        %v3444 = vsel %vm3441, %v3396, 0
        %v3446 = vsel %vm3441, %v3398, 0
        %v3448 = vsel %vm3441, %v3400, 0
        %v3450 = vsel %vm3441, %v3402, 0
        %v3452 = vsel %vm3441, %v3404, 0
        %v3454 = vsel %vm3441, %v3406, 0
        %v3456 = vsel %vm3441, %v3408, 0
        %v3458 = vsel %vm3441, %v3410, 0
        %v3460 = vsel %vm3441, %v3412, 0
        %v3462 = vsel %vm3441, %v3414, 0
        %v3464 = vsel %vm3441, %v3416, 0
        %v3466 = vsel %vm3441, %v3418, 0
        %v3468 = vsel %vm3441, %v3420, 0
        %v3470 = vsel %vm3441, %v3422, 0
        %v3472 = vsel %vm3441, %v3424, 0
        %v3474 = vsel %vm3441, %v3426, 0
        %v3476 = vsel %vm3441, %v3428, 0
        %v3478 = vsel %vm3441, %v3430, 0
        %v3480 = vsel %vm3441, %v3432, 0
        %v3482 = vsel %vm3441, %v3434, 0
        %v3484 = vsel %vm3441, %v3436, 0
        %v3486 = vsel %vm3441, %v3438, 0
        %v3488 = vsel %vm3441, %v3440, 0
        %3490 = vmatprep.subr.mxu0 0.0
        %3491 = vmatpush1.msra.mxu0 %v3359
        %3492 = vmatprep.subr.mxu0 0.0
        %3493 = vmatpush1.msra.mxu0 %v3360
        %3494 = vmatprep.subr.mxu0 0.0
        %3495 = vmatpush1.msra.mxu0 %v3361
        %3496 = vmatprep.subr.mxu0 0.0
        %3497 = vmatpush1.msra.mxu0 %v3362
        %3498 = vmatprep.subr.mxu0 0.0
        %3499 = vmatpush1.msra.mxu0 %v3363
        %3500 = vmatprep.subr.mxu0 0.0
        %3501 = vmatpush1.msra.mxu0 %v3364
        %3502 = vmatprep.subr.mxu0 0.0
        %3503 = vmatpush1.msra.mxu0 %v3365
        %3504 = vmatprep.subr.mxu0 0.0
        %3505 = vmatpush1.msra.mxu0 %v3366
        %3506 = vmatprep.subr.mxu0 0.0
        %3507 = vmatpush1.msra.mxu0 0.0
        %3508 = vmatprep.subr.mxu0 0.0
        %3509 = vmatpush1.msra.mxu0 0.0
        %3510 = vmatprep.subr.mxu0 0.0
        %3511 = vmatpush1.msra.mxu0 0.0
        %3512 = vmatprep.subr.mxu0 0.0
        %3513 = vmatpush1.msra.mxu0 0.0
        %3514 = vmatprep.subr.mxu0 0.0
        %3515 = vmatpush1.msra.mxu0 0.0
        %3516 = vmatprep.subr.mxu0 0.0
        %3517 = vmatpush1.msra.mxu0 0.0
        %3518 = vmatprep.subr.mxu0 0.0
        %3519 = vmatpush1.msra.mxu0 0.0
        %3520 = vmatprep.subr.mxu0 0.0
        %3521 = vmatpush1.msra.mxu0 0.0
        %3522 = vmatprep.subr.mxu0 0.0
        %3523 = vmatpush1.msra.mxu0 0.0
        %3524 = vmatprep.subr.mxu0 0.0
        %3525 = vmatpush1.msra.mxu0 0.0
        %3526 = vmatprep.subr.mxu0 0.0
        %3527 = vmatpush1.msra.mxu0 0.0
        %3528 = vmatprep.subr.mxu0 0.0
        %3529 = vmatpush1.msra.mxu0 0.0
        %3530 = vmatprep.subr.mxu0 0.0
        %3531 = vmatpush1.msra.mxu0 0.0
        %3532 = vmatprep.subr.mxu0 0.0
        %3533 = vmatpush1.msra.mxu0 0.0
        %3534 = vmatprep.subr.mxu0 0.0
        %3535 = vmatpush1.msra.mxu0 0.0
        %3536 = vmatprep.subr.mxu0 0.0
        %3537 = vmatpush1.msra.mxu0 0.0
        %3538 = vmatprep.subr.mxu0 0.0
        %3539 = vmatpush1.msra.mxu0 0.0
        %3540 = vmatprep.subr.mxu0 0.0
        %3541 = vmatpush1.msra.mxu0 0.0
        %3542 = vmatprep.subr.mxu0 0.0
        %3543 = vmatpush1.msra.mxu0 0.0
        %3544 = vmatprep.subr.mxu0 0.0
        %3545 = vmatpush1.msra.mxu0 0.0
        %3546 = vmatprep.subr.mxu0 0.0
        %3547 = vmatpush1.msra.mxu0 0.0
        %3548 = vmatprep.subr.mxu0 0.0
        %3549 = vmatpush1.msra.mxu0 0.0
        %3550 = vmatprep.subr.mxu0 0.0
        %3551 = vmatpush1.msra.mxu0 0.0
        %3552 = vmatprep.subr.mxu0 0.0
        %3553 = vmatpush1.msra.mxu0 0.0
        %3554 = vmatprep.mubr.f32.mxu0 0.0
        %3555 = vmatmul.mubr.f32.gmra.mrb[0].mxu0 %v3442
        %v3556 = vpop.f32.mrb[0].mxu0
        %v3557 = vadd.f32 0.0, %v3556
        %v3558 = vpop.f32.mrb[0].mxu0
        %3559 = vmatprep.mubr.f32.mxu0 0.0
        %3560 = vmatmul.mubr.f32.gmra.mrb[0].mxu0 %v3444
        %v3561 = vpop.f32.mrb[0].mxu0
        %v3562 = vadd.f32 0.0, %v3561
        %v3563 = vpop.f32.mrb[0].mxu0
        %3564 = vmatprep.mubr.f32.mxu0 0.0
        %3565 = vmatmul.mubr.f32.gmra.mrb[0].mxu0 %v3446
        %v3566 = vpop.f32.mrb[0].mxu0
        %v3567 = vadd.f32 0.0, %v3566
        %v3568 = vpop.f32.mrb[0].mxu0
        %3569 = vmatprep.mubr.f32.mxu0 0.0
        %3570 = vmatmul.mubr.f32.gmra.mrb[0].mxu0 %v3448
        %v3571 = vpop.f32.mrb[0].mxu0
        %v3572 = vadd.f32 0.0, %v3571
        %v3573 = vpop.f32.mrb[0].mxu0
        %3574 = vmatprep.mubr.f32.mxu0 0.0
        %3575 = vmatmul.mubr.f32.gmra.mrb[0].mxu0 %v3450
        %v3576 = vpop.f32.mrb[0].mxu0
        %v3577 = vadd.f32 0.0, %v3576
        %v3578 = vpop.f32.mrb[0].mxu0
        %3579 = vmatprep.mubr.f32.mxu0 0.0
        %3580 = vmatmul.mubr.f32.gmra.mrb[0].mxu0 %v3452
        %v3581 = vpop.f32.mrb[0].mxu0
        %v3582 = vadd.f32 0.0, %v3581
        %v3583 = vpop.f32.mrb[0].mxu0
        %3584 = vmatprep.mubr.f32.mxu0 0.0
        %3585 = vmatmul.mubr.f32.gmra.mrb[0].mxu0 %v3454
        %v3586 = vpop.f32.mrb[0].mxu0
        %v3587 = vadd.f32 0.0, %v3586
        %v3588 = vpop.f32.mrb[0].mxu0
        %3589 = vmatprep.mubr.f32.mxu0 0.0
        %3590 = vmatmul.mubr.f32.gmra.mrb[0].mxu0 %v3456
        %v3591 = vpop.f32.mrb[0].mxu0
        %v3592 = vadd.f32 0.0, %v3591
        %v3593 = vpop.f32.mrb[0].mxu0
        %3594 = vmatprep.mubr.f32.mxu0 0.0
        %3595 = vmatmul.mubr.f32.gmra.mrb[0].mxu0 %v3458
        %v3596 = vpop.f32.mrb[0].mxu0
        %v3597 = vadd.f32 0.0, %v3596
        %v3598 = vpop.f32.mrb[0].mxu0
        %3599 = vmatprep.mubr.f32.mxu0 0.0
        %3600 = vmatmul.mubr.f32.gmra.mrb[0].mxu0 %v3460
        %v3601 = vpop.f32.mrb[0].mxu0
        %v3602 = vadd.f32 0.0, %v3601
        %v3603 = vpop.f32.mrb[0].mxu0
        %3604 = vmatprep.mubr.f32.mxu0 0.0
        %3605 = vmatmul.mubr.f32.gmra.mrb[0].mxu0 %v3462
        %v3606 = vpop.f32.mrb[0].mxu0
        %v3607 = vadd.f32 0.0, %v3606
        %v3608 = vpop.f32.mrb[0].mxu0
        %3609 = vmatprep.mubr.f32.mxu0 0.0
        %3610 = vmatmul.mubr.f32.gmra.mrb[0].mxu0 %v3464
        %v3611 = vpop.f32.mrb[0].mxu0
        %v3612 = vadd.f32 0.0, %v3611
        %v3613 = vpop.f32.mrb[0].mxu0
        %3614 = vmatprep.mubr.f32.mxu0 0.0
        %3615 = vmatmul.mubr.f32.gmra.mrb[0].mxu0 %v3466
        %v3616 = vpop.f32.mrb[0].mxu0
        %v3617 = vadd.f32 0.0, %v3616
        %v3618 = vpop.f32.mrb[0].mxu0
        %3619 = vmatprep.mubr.f32.mxu0 0.0
        %3620 = vmatmul.mubr.f32.gmra.mrb[0].mxu0 %v3468
        %v3621 = vpop.f32.mrb[0].mxu0
        %v3622 = vadd.f32 0.0, %v3621
        %v3623 = vpop.f32.mrb[0].mxu0
        %3624 = vmatprep.mubr.f32.mxu0 0.0
        %3625 = vmatmul.mubr.f32.gmra.mrb[0].mxu0 %v3470
        %v3626 = vpop.f32.mrb[0].mxu0
        %v3627 = vadd.f32 0.0, %v3626
        %v3628 = vpop.f32.mrb[0].mxu0
        %3629 = vmatprep.mubr.f32.mxu0 0.0
        %3630 = vmatmul.mubr.f32.gmra.mrb[0].mxu0 %v3472
        %v3631 = vpop.f32.mrb[0].mxu0
        %v3632 = vadd.f32 0.0, %v3631
        %v3633 = vpop.f32.mrb[0].mxu0
        %3634 = vmatprep.mubr.f32.mxu0 0.0
        %3635 = vmatmul.mubr.f32.gmra.mrb[0].mxu0 %v3474
        %v3636 = vpop.f32.mrb[0].mxu0
        %v3637 = vadd.f32 0.0, %v3636
        %v3638 = vpop.f32.mrb[0].mxu0
        %3639 = vmatprep.mubr.f32.mxu0 0.0
        %3640 = vmatmul.mubr.f32.gmra.mrb[0].mxu0 %v3476
        %v3641 = vpop.f32.mrb[0].mxu0
        %v3642 = vadd.f32 0.0, %v3641
        %v3643 = vpop.f32.mrb[0].mxu0
        %3644 = vmatprep.mubr.f32.mxu0 0.0
        %3645 = vmatmul.mubr.f32.gmra.mrb[0].mxu0 %v3478
        %v3646 = vpop.f32.mrb[0].mxu0
        %v3647 = vadd.f32 0.0, %v3646
        %v3648 = vpop.f32.mrb[0].mxu0
        %3649 = vmatprep.mubr.f32.mxu0 0.0
        %3650 = vmatmul.mubr.f32.gmra.mrb[0].mxu0 %v3480
        %v3651 = vpop.f32.mrb[0].mxu0
        %v3652 = vadd.f32 0.0, %v3651
        %v3653 = vpop.f32.mrb[0].mxu0
        %3654 = vmatprep.mubr.f32.mxu0 0.0
        %3655 = vmatmul.mubr.f32.gmra.mrb[0].mxu0 %v3482
        %v3656 = vpop.f32.mrb[0].mxu0
        %v3657 = vadd.f32 0.0, %v3656
        %v3658 = vpop.f32.mrb[0].mxu0
        %3659 = vmatprep.mubr.f32.mxu0 0.0
        %3660 = vmatmul.mubr.f32.gmra.mrb[0].mxu0 %v3484
        %v3661 = vpop.f32.mrb[0].mxu0
        %v3662 = vadd.f32 0.0, %v3661
        %v3663 = vpop.f32.mrb[0].mxu0
        %3664 = vmatprep.mubr.f32.mxu0 0.0
        %3665 = vmatmul.mubr.f32.gmra.mrb[0].mxu0 %v3486
        %v3666 = vpop.f32.mrb[0].mxu0
        %v3667 = vadd.f32 0.0, %v3666
        %v3668 = vpop.f32.mrb[0].mxu0
        %3669 = vmatprep.mubr.f32.mxu0 0.0
        %3670 = vmatmul.mubr.f32.gmra.mrb[0].mxu0 %v3488
        %v3671 = vpop.f32.mrb[0].mxu0
        %v3672 = vadd.f32 0.0, %v3671
        %v3673 = vpop.f32.mrb[0].mxu0
        %3674 = vdwg.mxu0
        %v3675 = vsel %vm3441, %v3324, 0
        %v3677 = vsel %vm3441, %v3325, 0
        %v3679 = vsel %vm3441, %v3326, 0
        %v3681 = vsel %vm3441, %v3327, 0
        %v3683 = vsel %vm3441, %v3328, 0
        %v3685 = vsel %vm3441, %v3329, 0
        %v3687 = vsel %vm3441, %v3330, 0
        %v3689 = vsel %vm3441, %v3331, 0
        %v3691 = vsel %vm3441, %v3332, 0
        %v3693 = vsel %vm3441, %v3333, 0
        %v3695 = vsel %vm3441, %v3334, 0
        %v3697 = vsel %vm3441, %v3335, 0
        %v3699 = vsel %vm3441, %v3336, 0
        %v3701 = vsel %vm3441, %v3337, 0
        %v3703 = vsel %vm3441, %v3338, 0
        %v3705 = vsel %vm3441, %v3339, 0
        %v3707 = vsel %vm3441, %v3340, 0
        %v3709 = vsel %vm3441, %v3341, 0
        %v3711 = vsel %vm3441, %v3342, 0
        %v3713 = vsel %vm3441, %v3343, 0
        %v3715 = vsel %vm3441, %v3344, 0
        %v3717 = vsel %vm3441, %v3345, 0
        %v3719 = vsel %vm3441, %v3346, 0
        %v3721 = vsel %vm3441, %v3347, 0
        %3723 = vmatprep.subr.mxu0 0.0
        %3724 = vmatpush1.msra.mxu0 %v3350
        %3725 = vmatprep.subr.mxu0 0.0
        %3726 = vmatpush1.msra.mxu0 %v3351
        %3727 = vmatprep.subr.mxu0 0.0
        %3728 = vmatpush1.msra.mxu0 %v3352
        %3729 = vmatprep.subr.mxu0 0.0
        %3730 = vmatpush1.msra.mxu0 %v3353
        %3731 = vmatprep.subr.mxu0 0.0
        %3732 = vmatpush1.msra.mxu0 %v3354
        %3733 = vmatprep.subr.mxu0 0.0
        %3734 = vmatpush1.msra.mxu0 %v3355
        %3735 = vmatprep.subr.mxu0 0.0
        %3736 = vmatpush1.msra.mxu0 %v3356
        %3737 = vmatprep.subr.mxu0 0.0
        %3738 = vmatpush1.msra.mxu0 %v3357
        %3739 = vmatprep.subr.mxu0 0.0
        %3740 = vmatpush1.msra.mxu0 0.0
        %3741 = vmatprep.subr.mxu0 0.0
        %3742 = vmatpush1.msra.mxu0 0.0
        %3743 = vmatprep.subr.mxu0 0.0
        %3744 = vmatpush1.msra.mxu0 0.0
        %3745 = vmatprep.subr.mxu0 0.0
        %3746 = vmatpush1.msra.mxu0 0.0
        %3747 = vmatprep.subr.mxu0 0.0
        %3748 = vmatpush1.msra.mxu0 0.0
        %3749 = vmatprep.subr.mxu0 0.0
        %3750 = vmatpush1.msra.mxu0 0.0
        %3751 = vmatprep.subr.mxu0 0.0
        %3752 = vmatpush1.msra.mxu0 0.0
        %3753 = vmatprep.subr.mxu0 0.0
        %3754 = vmatpush1.msra.mxu0 0.0
        %3755 = vmatprep.subr.mxu0 0.0
        %3756 = vmatpush1.msra.mxu0 0.0
        %3757 = vmatprep.subr.mxu0 0.0
        %3758 = vmatpush1.msra.mxu0 0.0
        %3759 = vmatprep.subr.mxu0 0.0
        %3760 = vmatpush1.msra.mxu0 0.0
        %3761 = vmatprep.subr.mxu0 0.0
        %3762 = vmatpush1.msra.mxu0 0.0
        %3763 = vmatprep.subr.mxu0 0.0
        %3764 = vmatpush1.msra.mxu0 0.0
        %3765 = vmatprep.subr.mxu0 0.0
        %3766 = vmatpush1.msra.mxu0 0.0
        %3767 = vmatprep.subr.mxu0 0.0
        %3768 = vmatpush1.msra.mxu0 0.0
        %3769 = vmatprep.subr.mxu0 0.0
        %3770 = vmatpush1.msra.mxu0 0.0
        %3771 = vmatprep.subr.mxu0 0.0
        %3772 = vmatpush1.msra.mxu0 0.0
        %3773 = vmatprep.subr.mxu0 0.0
        %3774 = vmatpush1.msra.mxu0 0.0
        %3775 = vmatprep.subr.mxu0 0.0
        %3776 = vmatpush1.msra.mxu0 0.0
        %3777 = vmatprep.subr.mxu0 0.0
        %3778 = vmatpush1.msra.mxu0 0.0
        %3779 = vmatprep.subr.mxu0 0.0
        %3780 = vmatpush1.msra.mxu0 0.0
        %3781 = vmatprep.subr.mxu0 0.0
        %3782 = vmatpush1.msra.mxu0 0.0
        %3783 = vmatprep.subr.mxu0 0.0
        %3784 = vmatpush1.msra.mxu0 0.0
        %3785 = vmatprep.subr.mxu0 0.0
        %3786 = vmatpush1.msra.mxu0 0.0
        %3787 = vmatprep.mubr.f32.mxu0 0.0
        %3788 = vmatmul.mubr.f32.gmra.mrb[0].mxu0 %v3675
        %v3789 = vpop.f32.mrb[0].mxu0
        %v3790 = vadd.f32 %v3557, %v3789
        %v3791 = vpop.f32.mrb[0].mxu0
        %3792 = vmatprep.mubr.f32.mxu0 0.0
        %3793 = vmatmul.mubr.f32.gmra.mrb[0].mxu0 %v3677
        %v3794 = vpop.f32.mrb[0].mxu0
        %v3795 = vadd.f32 %v3562, %v3794
        %v3796 = vpop.f32.mrb[0].mxu0
        %3797 = vmatprep.mubr.f32.mxu0 0.0
        %3798 = vmatmul.mubr.f32.gmra.mrb[0].mxu0 %v3679
        %v3799 = vpop.f32.mrb[0].mxu0
        %v3800 = vadd.f32 %v3567, %v3799
        %v3801 = vpop.f32.mrb[0].mxu0
        %3802 = vmatprep.mubr.f32.mxu0 0.0
        %3803 = vmatmul.mubr.f32.gmra.mrb[0].mxu0 %v3681
        %v3804 = vpop.f32.mrb[0].mxu0
        %v3805 = vadd.f32 %v3572, %v3804
        %v3806 = vpop.f32.mrb[0].mxu0
        %3807 = vmatprep.mubr.f32.mxu0 0.0
        %3808 = vmatmul.mubr.f32.gmra.mrb[0].mxu0 %v3683
        %v3809 = vpop.f32.mrb[0].mxu0
        %v3810 = vadd.f32 %v3577, %v3809
        %v3811 = vpop.f32.mrb[0].mxu0
        %3812 = vmatprep.mubr.f32.mxu0 0.0
        %3813 = vmatmul.mubr.f32.gmra.mrb[0].mxu0 %v3685
        %v3814 = vpop.f32.mrb[0].mxu0
        %v3815 = vadd.f32 %v3582, %v3814
        %v3816 = vpop.f32.mrb[0].mxu0
        %3817 = vmatprep.mubr.f32.mxu0 0.0
        %3818 = vmatmul.mubr.f32.gmra.mrb[0].mxu0 %v3687
        %v3819 = vpop.f32.mrb[0].mxu0
        %v3820 = vadd.f32 %v3587, %v3819
        %v3821 = vpop.f32.mrb[0].mxu0
        %3822 = vmatprep.mubr.f32.mxu0 0.0
        %3823 = vmatmul.mubr.f32.gmra.mrb[0].mxu0 %v3689
        %v3824 = vpop.f32.mrb[0].mxu0
        %v3825 = vadd.f32 %v3592, %v3824
        %v3826 = vpop.f32.mrb[0].mxu0
        %3827 = vmatprep.mubr.f32.mxu0 0.0
        %3828 = vmatmul.mubr.f32.gmra.mrb[0].mxu0 %v3691
        %v3829 = vpop.f32.mrb[0].mxu0
        %v3830 = vadd.f32 %v3597, %v3829
        %v3831 = vpop.f32.mrb[0].mxu0
        %3832 = vmatprep.mubr.f32.mxu0 0.0
        %3833 = vmatmul.mubr.f32.gmra.mrb[0].mxu0 %v3693
        %v3834 = vpop.f32.mrb[0].mxu0
        %v3835 = vadd.f32 %v3602, %v3834
        %v3836 = vpop.f32.mrb[0].mxu0
        %3837 = vmatprep.mubr.f32.mxu0 0.0
        %3838 = vmatmul.mubr.f32.gmra.mrb[0].mxu0 %v3695
        %v3839 = vpop.f32.mrb[0].mxu0
        %v3840 = vadd.f32 %v3607, %v3839
        %v3841 = vpop.f32.mrb[0].mxu0
        %3842 = vmatprep.mubr.f32.mxu0 0.0
        %3843 = vmatmul.mubr.f32.gmra.mrb[0].mxu0 %v3697
        %v3844 = vpop.f32.mrb[0].mxu0
        %v3845 = vadd.f32 %v3612, %v3844
        %v3846 = vpop.f32.mrb[0].mxu0
        %3847 = vmatprep.mubr.f32.mxu0 0.0
        %3848 = vmatmul.mubr.f32.gmra.mrb[0].mxu0 %v3699
        %v3849 = vpop.f32.mrb[0].mxu0
        %v3850 = vadd.f32 %v3617, %v3849
        %v3851 = vpop.f32.mrb[0].mxu0
        %3852 = vmatprep.mubr.f32.mxu0 0.0
        %3853 = vmatmul.mubr.f32.gmra.mrb[0].mxu0 %v3701
        %v3854 = vpop.f32.mrb[0].mxu0
        %v3855 = vadd.f32 %v3622, %v3854
        %v3856 = vpop.f32.mrb[0].mxu0
        %3857 = vmatprep.mubr.f32.mxu0 0.0
        %3858 = vmatmul.mubr.f32.gmra.mrb[0].mxu0 %v3703
        %v3859 = vpop.f32.mrb[0].mxu0
        %v3860 = vadd.f32 %v3627, %v3859
        %v3861 = vpop.f32.mrb[0].mxu0
        %3862 = vmatprep.mubr.f32.mxu0 0.0
        %3863 = vmatmul.mubr.f32.gmra.mrb[0].mxu0 %v3705
        %v3864 = vpop.f32.mrb[0].mxu0
        %v3865 = vadd.f32 %v3632, %v3864
        %v3866 = vpop.f32.mrb[0].mxu0
        %3867 = vmatprep.mubr.f32.mxu0 0.0
        %3868 = vmatmul.mubr.f32.gmra.mrb[0].mxu0 %v3707
        %v3869 = vpop.f32.mrb[0].mxu0
        %v3870 = vadd.f32 %v3637, %v3869
        %v3871 = vpop.f32.mrb[0].mxu0
        %3872 = vmatprep.mubr.f32.mxu0 0.0
        %3873 = vmatmul.mubr.f32.gmra.mrb[0].mxu0 %v3709
        %v3874 = vpop.f32.mrb[0].mxu0
        %v3875 = vadd.f32 %v3642, %v3874
        %v3876 = vpop.f32.mrb[0].mxu0
        %3877 = vmatprep.mubr.f32.mxu0 0.0
        %3878 = vmatmul.mubr.f32.gmra.mrb[0].mxu0 %v3711
        %v3879 = vpop.f32.mrb[0].mxu0
        %v3880 = vadd.f32 %v3647, %v3879
        %v3881 = vpop.f32.mrb[0].mxu0
        %3882 = vmatprep.mubr.f32.mxu0 0.0
        %3883 = vmatmul.mubr.f32.gmra.mrb[0].mxu0 %v3713
        %v3884 = vpop.f32.mrb[0].mxu0
        %v3885 = vadd.f32 %v3652, %v3884
        %v3886 = vpop.f32.mrb[0].mxu0
        %3887 = vmatprep.mubr.f32.mxu0 0.0
        %3888 = vmatmul.mubr.f32.gmra.mrb[0].mxu0 %v3715
        %v3889 = vpop.f32.mrb[0].mxu0
        %v3890 = vadd.f32 %v3657, %v3889
        %v3891 = vpop.f32.mrb[0].mxu0
        %3892 = vmatprep.mubr.f32.mxu0 0.0
        %3893 = vmatmul.mubr.f32.gmra.mrb[0].mxu0 %v3717
        %v3894 = vpop.f32.mrb[0].mxu0
        %v3895 = vadd.f32 %v3662, %v3894
        %v3896 = vpop.f32.mrb[0].mxu0
        %3897 = vmatprep.mubr.f32.mxu0 0.0
        %3898 = vmatmul.mubr.f32.gmra.mrb[0].mxu0 %v3719
        %v3899 = vpop.f32.mrb[0].mxu0
        %v3900 = vadd.f32 %v3667, %v3899
        %v3901 = vpop.f32.mrb[0].mxu0
        %3902 = vmatprep.mubr.f32.mxu0 0.0
        %3903 = vmatmul.mubr.f32.gmra.mrb[0].mxu0 %v3721
        %v3904 = vpop.f32.mrb[0].mxu0
        %v3905 = vadd.f32 %v3672, %v3904
        %v3906 = vpop.f32.mrb[0].mxu0
        %3907 = vdwg.mxu0
        %s3908 = scalar_lea.vmem [#allocation6], 128
        %v3909 = vld [vmem:[%s3908] sm:$0xff]
        %v3910 = vld [vmem:[%s3908 + $0x8] sm:$0xff]
        %v3911 = vld [vmem:[%s3908 + $0x10] sm:$0xff]
        %v3912 = vld [vmem:[%s3908 + $0x18] sm:$0xff]
        %v3913 = vld [vmem:[%s3908 + $0x20] sm:$0xff]
        %v3914 = vld [vmem:[%s3908 + $0x28] sm:$0xff]
        %v3915 = vld [vmem:[%s3908 + $0x30] sm:$0xff]
        %v3916 = vld [vmem:[%s3908 + $0x38] sm:$0xff]
        %v3917 = vrot.slane %v3324, 2
        %v3918 = vrot.slane %v3325, 2
        %v3919 = vsel %vm1096, %v3917, %v3918
        %v3920 = vrot.slane %v3326, 2
        %v3921 = vsel %vm1096, %v3918, %v3920
        %v3922 = vrot.slane %v3327, 2
        %v3923 = vsel %vm1096, %v3920, %v3922
        %v3924 = vrot.slane %v3328, 2
        %v3925 = vsel %vm1096, %v3922, %v3924
        %v3926 = vrot.slane %v3329, 2
        %v3927 = vsel %vm1096, %v3924, %v3926
        %v3928 = vrot.slane %v3330, 2
        %v3929 = vsel %vm1096, %v3926, %v3928
        %v3930 = vrot.slane %v3331, 2
        %v3931 = vsel %vm1096, %v3928, %v3930
        %v3932 = vrot.slane %v3332, 2
        %v3933 = vsel %vm1096, %v3930, %v3932
        %v3934 = vrot.slane %v3333, 2
        %v3935 = vsel %vm1096, %v3932, %v3934
        %v3936 = vrot.slane %v3334, 2
        %v3937 = vsel %vm1096, %v3934, %v3936
        %v3938 = vrot.slane %v3335, 2
        %v3939 = vsel %vm1096, %v3936, %v3938
        %v3940 = vrot.slane %v3336, 2
        %v3941 = vsel %vm1096, %v3938, %v3940
        %v3942 = vrot.slane %v3337, 2
        %v3943 = vsel %vm1096, %v3940, %v3942
        %v3944 = vrot.slane %v3338, 2
        %v3945 = vsel %vm1096, %v3942, %v3944
        %v3946 = vrot.slane %v3339, 2
        %v3947 = vsel %vm1096, %v3944, %v3946
        %v3948 = vrot.slane %v3340, 2
        %v3949 = vsel %vm1096, %v3946, %v3948
        %v3950 = vrot.slane %v3341, 2
        %v3951 = vsel %vm1096, %v3948, %v3950
        %v3952 = vrot.slane %v3342, 2
        %v3953 = vsel %vm1096, %v3950, %v3952
        %v3954 = vrot.slane %v3343, 2
        %v3955 = vsel %vm1096, %v3952, %v3954
        %v3956 = vrot.slane %v3344, 2
        %v3957 = vsel %vm1096, %v3954, %v3956
        %v3958 = vrot.slane %v3345, 2
        %v3959 = vsel %vm1096, %v3956, %v3958
        %v3960 = vrot.slane %v3346, 2
        %v3961 = vsel %vm1096, %v3958, %v3960
        %v3962 = vrot.slane %v3347, 2
        %v3963 = vsel %vm1096, %v3960, %v3962
        %v3964 = vrot.slane %v3348, 2
        %v3965 = vsel %vm1096, %v3962, %v3964
        %v3966 = vsel %vm3441, %v3919, 0
        %v3968 = vsel %vm3441, %v3921, 0
        %v3970 = vsel %vm3441, %v3923, 0
        %v3972 = vsel %vm3441, %v3925, 0
        %v3974 = vsel %vm3441, %v3927, 0
        %v3976 = vsel %vm3441, %v3929, 0
        %v3978 = vsel %vm3441, %v3931, 0
        %v3980 = vsel %vm3441, %v3933, 0
        %v3982 = vsel %vm3441, %v3935, 0
        %v3984 = vsel %vm3441, %v3937, 0
        %v3986 = vsel %vm3441, %v3939, 0
        %v3988 = vsel %vm3441, %v3941, 0
        %v3990 = vsel %vm3441, %v3943, 0
        %v3992 = vsel %vm3441, %v3945, 0
        %v3994 = vsel %vm3441, %v3947, 0
        %v3996 = vsel %vm3441, %v3949, 0
        %v3998 = vsel %vm3441, %v3951, 0
        %v4000 = vsel %vm3441, %v3953, 0
        %v4002 = vsel %vm3441, %v3955, 0
        %v4004 = vsel %vm3441, %v3957, 0
        %v4006 = vsel %vm3441, %v3959, 0
        %v4008 = vsel %vm3441, %v3961, 0
        %v4010 = vsel %vm3441, %v3963, 0
        %v4012 = vsel %vm3441, %v3965, 0
        %4014 = vmatprep.subr.mxu0 0.0
        %4015 = vmatpush1.msra.mxu0 %v3909
        %4016 = vmatprep.subr.mxu0 0.0
        %4017 = vmatpush1.msra.mxu0 %v3910
        %4018 = vmatprep.subr.mxu0 0.0
        %4019 = vmatpush1.msra.mxu0 %v3911
        %4020 = vmatprep.subr.mxu0 0.0
        %4021 = vmatpush1.msra.mxu0 %v3912
        %4022 = vmatprep.subr.mxu0 0.0
        %4023 = vmatpush1.msra.mxu0 %v3913
        %4024 = vmatprep.subr.mxu0 0.0
        %4025 = vmatpush1.msra.mxu0 %v3914
        %4026 = vmatprep.subr.mxu0 0.0
        %4027 = vmatpush1.msra.mxu0 %v3915
        %4028 = vmatprep.subr.mxu0 0.0
        %4029 = vmatpush1.msra.mxu0 %v3916
        %4030 = vmatprep.subr.mxu0 0.0
        %4031 = vmatpush1.msra.mxu0 0.0
        %4032 = vmatprep.subr.mxu0 0.0
        %4033 = vmatpush1.msra.mxu0 0.0
        %4034 = vmatprep.subr.mxu0 0.0
        %4035 = vmatpush1.msra.mxu0 0.0
        %4036 = vmatprep.subr.mxu0 0.0
        %4037 = vmatpush1.msra.mxu0 0.0
        %4038 = vmatprep.subr.mxu0 0.0
        %4039 = vmatpush1.msra.mxu0 0.0
        %4040 = vmatprep.subr.mxu0 0.0
        %4041 = vmatpush1.msra.mxu0 0.0
        %4042 = vmatprep.subr.mxu0 0.0
        %4043 = vmatpush1.msra.mxu0 0.0
        %4044 = vmatprep.subr.mxu0 0.0
        %4045 = vmatpush1.msra.mxu0 0.0
        %4046 = vmatprep.subr.mxu0 0.0
        %4047 = vmatpush1.msra.mxu0 0.0
        %4048 = vmatprep.subr.mxu0 0.0
        %4049 = vmatpush1.msra.mxu0 0.0
        %4050 = vmatprep.subr.mxu0 0.0
        %4051 = vmatpush1.msra.mxu0 0.0
        %4052 = vmatprep.subr.mxu0 0.0
        %4053 = vmatpush1.msra.mxu0 0.0
        %4054 = vmatprep.subr.mxu0 0.0
        %4055 = vmatpush1.msra.mxu0 0.0
        %4056 = vmatprep.subr.mxu0 0.0
        %4057 = vmatpush1.msra.mxu0 0.0
        %4058 = vmatprep.subr.mxu0 0.0
        %4059 = vmatpush1.msra.mxu0 0.0
        %4060 = vmatprep.subr.mxu0 0.0
        %4061 = vmatpush1.msra.mxu0 0.0
        %4062 = vmatprep.subr.mxu0 0.0
        %4063 = vmatpush1.msra.mxu0 0.0
        %4064 = vmatprep.subr.mxu0 0.0
        %4065 = vmatpush1.msra.mxu0 0.0
        %4066 = vmatprep.subr.mxu0 0.0
        %4067 = vmatpush1.msra.mxu0 0.0
        %4068 = vmatprep.subr.mxu0 0.0
        %4069 = vmatpush1.msra.mxu0 0.0
        %4070 = vmatprep.subr.mxu0 0.0
        %4071 = vmatpush1.msra.mxu0 0.0
        %4072 = vmatprep.subr.mxu0 0.0
        %4073 = vmatpush1.msra.mxu0 0.0
        %4074 = vmatprep.subr.mxu0 0.0
        %4075 = vmatpush1.msra.mxu0 0.0
        %4076 = vmatprep.subr.mxu0 0.0
        %4077 = vmatpush1.msra.mxu0 0.0
        %4078 = vmatprep.mubr.f32.mxu0 0.0
        %4079 = vmatmul.mubr.f32.gmra.mrb[0].mxu0 %v3966
        %v4080 = vpop.f32.mrb[0].mxu0
        %v4081 = vadd.f32 0.0, %v4080
        %v4082 = vpop.f32.mrb[0].mxu0
        %4083 = vmatprep.mubr.f32.mxu0 0.0
        %4084 = vmatmul.mubr.f32.gmra.mrb[0].mxu0 %v3968
        %v4085 = vpop.f32.mrb[0].mxu0
        %v4086 = vadd.f32 0.0, %v4085
        %v4087 = vpop.f32.mrb[0].mxu0
        %4088 = vmatprep.mubr.f32.mxu0 0.0
        %4089 = vmatmul.mubr.f32.gmra.mrb[0].mxu0 %v3970
        %v4090 = vpop.f32.mrb[0].mxu0
        %v4091 = vadd.f32 0.0, %v4090
        %v4092 = vpop.f32.mrb[0].mxu0
        %4093 = vmatprep.mubr.f32.mxu0 0.0
        %4094 = vmatmul.mubr.f32.gmra.mrb[0].mxu0 %v3972
        %v4095 = vpop.f32.mrb[0].mxu0
        %v4096 = vadd.f32 0.0, %v4095
        %v4097 = vpop.f32.mrb[0].mxu0
        %4098 = vmatprep.mubr.f32.mxu0 0.0
        %4099 = vmatmul.mubr.f32.gmra.mrb[0].mxu0 %v3974
        %v4100 = vpop.f32.mrb[0].mxu0
        %v4101 = vadd.f32 0.0, %v4100
        %v4102 = vpop.f32.mrb[0].mxu0
        %4103 = vmatprep.mubr.f32.mxu0 0.0
        %4104 = vmatmul.mubr.f32.gmra.mrb[0].mxu0 %v3976
        %v4105 = vpop.f32.mrb[0].mxu0
        %v4106 = vadd.f32 0.0, %v4105
        %v4107 = vpop.f32.mrb[0].mxu0
        %4108 = vmatprep.mubr.f32.mxu0 0.0
        %4109 = vmatmul.mubr.f32.gmra.mrb[0].mxu0 %v3978
        %v4110 = vpop.f32.mrb[0].mxu0
        %v4111 = vadd.f32 0.0, %v4110
        %v4112 = vpop.f32.mrb[0].mxu0
        %4113 = vmatprep.mubr.f32.mxu0 0.0
        %4114 = vmatmul.mubr.f32.gmra.mrb[0].mxu0 %v3980
        %v4115 = vpop.f32.mrb[0].mxu0
        %v4116 = vadd.f32 0.0, %v4115
        %v4117 = vpop.f32.mrb[0].mxu0
        %4118 = vmatprep.mubr.f32.mxu0 0.0
        %4119 = vmatmul.mubr.f32.gmra.mrb[0].mxu0 %v3982
        %v4120 = vpop.f32.mrb[0].mxu0
        %v4121 = vadd.f32 0.0, %v4120
        %v4122 = vpop.f32.mrb[0].mxu0
        %4123 = vmatprep.mubr.f32.mxu0 0.0
        %4124 = vmatmul.mubr.f32.gmra.mrb[0].mxu0 %v3984
        %v4125 = vpop.f32.mrb[0].mxu0
        %v4126 = vadd.f32 0.0, %v4125
        %v4127 = vpop.f32.mrb[0].mxu0
        %4128 = vmatprep.mubr.f32.mxu0 0.0
        %4129 = vmatmul.mubr.f32.gmra.mrb[0].mxu0 %v3986
        %v4130 = vpop.f32.mrb[0].mxu0
        %v4131 = vadd.f32 0.0, %v4130
        %v4132 = vpop.f32.mrb[0].mxu0
        %4133 = vmatprep.mubr.f32.mxu0 0.0
        %4134 = vmatmul.mubr.f32.gmra.mrb[0].mxu0 %v3988
        %v4135 = vpop.f32.mrb[0].mxu0
        %v4136 = vadd.f32 0.0, %v4135
        %v4137 = vpop.f32.mrb[0].mxu0
        %4138 = vmatprep.mubr.f32.mxu0 0.0
        %4139 = vmatmul.mubr.f32.gmra.mrb[0].mxu0 %v3990
        %v4140 = vpop.f32.mrb[0].mxu0
        %v4141 = vadd.f32 0.0, %v4140
        %v4142 = vpop.f32.mrb[0].mxu0
        %4143 = vmatprep.mubr.f32.mxu0 0.0
        %4144 = vmatmul.mubr.f32.gmra.mrb[0].mxu0 %v3992
        %v4145 = vpop.f32.mrb[0].mxu0
        %v4146 = vadd.f32 0.0, %v4145
        %v4147 = vpop.f32.mrb[0].mxu0
        %4148 = vmatprep.mubr.f32.mxu0 0.0
        %4149 = vmatmul.mubr.f32.gmra.mrb[0].mxu0 %v3994
        %v4150 = vpop.f32.mrb[0].mxu0
        %v4151 = vadd.f32 0.0, %v4150
        %v4152 = vpop.f32.mrb[0].mxu0
        %4153 = vmatprep.mubr.f32.mxu0 0.0
        %4154 = vmatmul.mubr.f32.gmra.mrb[0].mxu0 %v3996
        %v4155 = vpop.f32.mrb[0].mxu0
        %v4156 = vadd.f32 0.0, %v4155
        %v4157 = vpop.f32.mrb[0].mxu0
        %4158 = vmatprep.mubr.f32.mxu0 0.0
        %4159 = vmatmul.mubr.f32.gmra.mrb[0].mxu0 %v3998
        %v4160 = vpop.f32.mrb[0].mxu0
        %v4161 = vadd.f32 0.0, %v4160
        %v4162 = vpop.f32.mrb[0].mxu0
        %4163 = vmatprep.mubr.f32.mxu0 0.0
        %4164 = vmatmul.mubr.f32.gmra.mrb[0].mxu0 %v4000
        %v4165 = vpop.f32.mrb[0].mxu0
        %v4166 = vadd.f32 0.0, %v4165
        %v4167 = vpop.f32.mrb[0].mxu0
        %4168 = vmatprep.mubr.f32.mxu0 0.0
        %4169 = vmatmul.mubr.f32.gmra.mrb[0].mxu0 %v4002
        %v4170 = vpop.f32.mrb[0].mxu0
        %v4171 = vadd.f32 0.0, %v4170
        %v4172 = vpop.f32.mrb[0].mxu0
        %4173 = vmatprep.mubr.f32.mxu0 0.0
        %4174 = vmatmul.mubr.f32.gmra.mrb[0].mxu0 %v4004
        %v4175 = vpop.f32.mrb[0].mxu0
        %v4176 = vadd.f32 0.0, %v4175
        %v4177 = vpop.f32.mrb[0].mxu0
        %4178 = vmatprep.mubr.f32.mxu0 0.0
        %4179 = vmatmul.mubr.f32.gmra.mrb[0].mxu0 %v4006
        %v4180 = vpop.f32.mrb[0].mxu0
        %v4181 = vadd.f32 0.0, %v4180
        %v4182 = vpop.f32.mrb[0].mxu0
        %4183 = vmatprep.mubr.f32.mxu0 0.0
        %4184 = vmatmul.mubr.f32.gmra.mrb[0].mxu0 %v4008
        %v4185 = vpop.f32.mrb[0].mxu0
        %v4186 = vadd.f32 0.0, %v4185
        %v4187 = vpop.f32.mrb[0].mxu0
        %4188 = vmatprep.mubr.f32.mxu0 0.0
        %4189 = vmatmul.mubr.f32.gmra.mrb[0].mxu0 %v4010
        %v4190 = vpop.f32.mrb[0].mxu0
        %v4191 = vadd.f32 0.0, %v4190
        %v4192 = vpop.f32.mrb[0].mxu0
        %4193 = vmatprep.mubr.f32.mxu0 0.0
        %4194 = vmatmul.mubr.f32.gmra.mrb[0].mxu0 %v4012
        %v4195 = vpop.f32.mrb[0].mxu0
        %v4196 = vadd.f32 0.0, %v4195
        %v4197 = vpop.f32.mrb[0].mxu0
        %4198 = vdwg.mxu0
        %v4199 = vadd.f32 %v3790, %v4081
        %v4200 = vadd.f32 %v3795, %v4086
        %v4201 = vadd.f32 %v3800, %v4091
        %v4202 = vadd.f32 %v3805, %v4096
        %v4203 = vadd.f32 %v3810, %v4101
        %v4204 = vadd.f32 %v3815, %v4106
        %v4205 = vadd.f32 %v3820, %v4111
        %v4206 = vadd.f32 %v3825, %v4116
        %v4207 = vadd.f32 %v3830, %v4121
        %v4208 = vadd.f32 %v3835, %v4126
        %v4209 = vadd.f32 %v3840, %v4131
        %v4210 = vadd.f32 %v3845, %v4136
        %v4211 = vadd.f32 %v3850, %v4141
        %v4212 = vadd.f32 %v3855, %v4146
        %v4213 = vadd.f32 %v3860, %v4151
        %v4214 = vadd.f32 %v3865, %v4156
        %v4215 = vadd.f32 %v3870, %v4161
        %v4216 = vadd.f32 %v3875, %v4166
        %v4217 = vadd.f32 %v3880, %v4171
        %v4218 = vadd.f32 %v3885, %v4176
        %v4219 = vadd.f32 %v3890, %v4181
        %v4220 = vadd.f32 %v3895, %v4186
        %v4221 = vadd.f32 %v3900, %v4191
        %v4222 = vadd.f32 %v3905, %v4196
        %v4224 = vlaneseq
        %v4225 = vshrl.u32 %v4224, 7
        %v4226 = vsub.s32 0, %v4225
        %v4227 = vrot.slane %v3349, %v4226
        %v4229 = vadd.f32 %v4199, %v4227
        %v4230 = vadd.f32 %v4200, %v4227
        %v4231 = vadd.f32 %v4201, %v4227
        %v4232 = vadd.f32 %v4202, %v4227
        %v4233 = vadd.f32 %v4203, %v4227
        %v4234 = vadd.f32 %v4204, %v4227
        %v4235 = vadd.f32 %v4205, %v4227
        %v4236 = vadd.f32 %v4206, %v4227
        %v4237 = vadd.f32 %v4207, %v4227
        %v4238 = vadd.f32 %v4208, %v4227
        %v4239 = vadd.f32 %v4209, %v4227
        %v4240 = vadd.f32 %v4210, %v4227
        %v4241 = vadd.f32 %v4211, %v4227
        %v4242 = vadd.f32 %v4212, %v4227
        %v4243 = vadd.f32 %v4213, %v4227
        %v4244 = vadd.f32 %v4214, %v4227
        %v4245 = vadd.f32 %v4215, %v4227
        %v4246 = vadd.f32 %v4216, %v4227
        %v4247 = vadd.f32 %v4217, %v4227
        %v4248 = vadd.f32 %v4218, %v4227
        %v4249 = vadd.f32 %v4219, %v4227
        %v4250 = vadd.f32 %v4220, %v4227
        %v4251 = vadd.f32 %v4221, %v4227
        %v4252 = vadd.f32 %v4222, %v4227
        %v4253 = vmax.f32 %v4229, 0.0
        %v4254 = vmax.f32 %v4230, 0.0
        %v4255 = vmax.f32 %v4231, 0.0
        %v4256 = vmax.f32 %v4232, 0.0
        %v4257 = vmax.f32 %v4233, 0.0
        %v4258 = vmax.f32 %v4234, 0.0
        %v4259 = vmax.f32 %v4235, 0.0
        %v4260 = vmax.f32 %v4236, 0.0
        %v4261 = vmax.f32 %v4237, 0.0
        %v4262 = vmax.f32 %v4238, 0.0
        %v4263 = vmax.f32 %v4239, 0.0
        %v4264 = vmax.f32 %v4240, 0.0
        %v4265 = vmax.f32 %v4241, 0.0
        %v4266 = vmax.f32 %v4242, 0.0
        %v4267 = vmax.f32 %v4243, 0.0
        %v4268 = vmax.f32 %v4244, 0.0
        %v4269 = vmax.f32 %v4245, 0.0
        %v4270 = vmax.f32 %v4246, 0.0
        %v4271 = vmax.f32 %v4247, 0.0
        %v4272 = vmax.f32 %v4248, 0.0
        %v4273 = vmax.f32 %v4249, 0.0
        %v4274 = vmax.f32 %v4250, 0.0
        %v4275 = vmax.f32 %v4251, 0.0
        %v4276 = vmax.f32 %v4252, 0.0
        %v4277 = vld [vmem:[%s10] sm:$0x1]
        %v4278 = vld [vmem:[#allocation7] sm:$0xff]
        %v4279 = vld [vmem:[#allocation7 + $0x8] sm:$0xff]
        %v4280 = vld [vmem:[#allocation7 + $0x10] sm:$0xff]
        %v4281 = vld [vmem:[#allocation7 + $0x18] sm:$0xff]
        %v4282 = vld [vmem:[#allocation7 + $0x20] sm:$0xff]
        %v4283 = vld [vmem:[#allocation7 + $0x28] sm:$0xff]
        %v4284 = vld [vmem:[#allocation7 + $0x30] sm:$0xff]
        %v4285 = vld [vmem:[#allocation7 + $0x38] sm:$0xff]
        %s4286 = scalar_lea.vmem [#allocation7], 64
        %v4287 = vld [vmem:[%s4286] sm:$0xff]
        %v4288 = vld [vmem:[%s4286 + $0x8] sm:$0xff]
        %v4289 = vld [vmem:[%s4286 + $0x10] sm:$0xff]
        %v4290 = vld [vmem:[%s4286 + $0x18] sm:$0xff]
        %v4291 = vld [vmem:[%s4286 + $0x20] sm:$0xff]
        %v4292 = vld [vmem:[%s4286 + $0x28] sm:$0xff]
        %v4293 = vld [vmem:[%s4286 + $0x30] sm:$0xff]
        %v4294 = vld [vmem:[%s4286 + $0x38] sm:$0xff]
        %v4319 = vrot.slane %v4253, 1
        %v4320 = vrot.slane %v4254, 1
        %v4321 = vsel %vm556, %v4319, %v4320
        %v4322 = vrot.slane %v4255, 1
        %v4323 = vsel %vm556, %v4320, %v4322
        %v4324 = vrot.slane %v4256, 1
        %v4325 = vsel %vm556, %v4322, %v4324
        %v4326 = vrot.slane %v4257, 1
        %v4327 = vsel %vm556, %v4324, %v4326
        %v4328 = vrot.slane %v4258, 1
        %v4329 = vsel %vm556, %v4326, %v4328
        %v4330 = vrot.slane %v4259, 1
        %v4331 = vsel %vm556, %v4328, %v4330
        %v4332 = vrot.slane %v4260, 1
        %v4333 = vsel %vm556, %v4330, %v4332
        %v4334 = vrot.slane %v4261, 1
        %v4335 = vsel %vm556, %v4332, %v4334
        %v4336 = vrot.slane %v4262, 1
        %v4337 = vsel %vm556, %v4334, %v4336
        %v4338 = vrot.slane %v4263, 1
        %v4339 = vsel %vm556, %v4336, %v4338
        %v4340 = vrot.slane %v4264, 1
        %v4341 = vsel %vm556, %v4338, %v4340
        %v4342 = vrot.slane %v4265, 1
        %v4343 = vsel %vm556, %v4340, %v4342
        %v4344 = vrot.slane %v4266, 1
        %v4345 = vsel %vm556, %v4342, %v4344
        %v4346 = vrot.slane %v4267, 1
        %v4347 = vsel %vm556, %v4344, %v4346
        %v4348 = vrot.slane %v4268, 1
        %v4349 = vsel %vm556, %v4346, %v4348
        %v4350 = vrot.slane %v4269, 1
        %v4351 = vsel %vm556, %v4348, %v4350
        %v4352 = vrot.slane %v4270, 1
        %v4353 = vsel %vm556, %v4350, %v4352
        %v4354 = vrot.slane %v4271, 1
        %v4355 = vsel %vm556, %v4352, %v4354
        %v4356 = vrot.slane %v4272, 1
        %v4357 = vsel %vm556, %v4354, %v4356
        %v4358 = vrot.slane %v4273, 1
        %v4359 = vsel %vm556, %v4356, %v4358
        %v4360 = vrot.slane %v4274, 1
        %v4361 = vsel %vm556, %v4358, %v4360
        %v4362 = vrot.slane %v4275, 1
        %v4363 = vsel %vm556, %v4360, %v4362
        %v4364 = vrot.slane %v4276, 1
        %v4365 = vsel %vm556, %v4362, %v4364
        %v4366 = vsel %vm3441, %v4321, 0
        %v4368 = vsel %vm3441, %v4323, 0
        %v4370 = vsel %vm3441, %v4325, 0
        %v4372 = vsel %vm3441, %v4327, 0
        %v4374 = vsel %vm3441, %v4329, 0
        %v4376 = vsel %vm3441, %v4331, 0
        %v4378 = vsel %vm3441, %v4333, 0
        %v4380 = vsel %vm3441, %v4335, 0
        %v4382 = vsel %vm3441, %v4337, 0
        %v4384 = vsel %vm3441, %v4339, 0
        %v4386 = vsel %vm3441, %v4341, 0
        %v4388 = vsel %vm3441, %v4343, 0
        %v4390 = vsel %vm3441, %v4345, 0
        %v4392 = vsel %vm3441, %v4347, 0
        %v4394 = vsel %vm3441, %v4349, 0
        %v4396 = vsel %vm3441, %v4351, 0
        %v4398 = vsel %vm3441, %v4353, 0
        %v4400 = vsel %vm3441, %v4355, 0
        %v4402 = vsel %vm3441, %v4357, 0
        %v4404 = vsel %vm3441, %v4359, 0
        %v4406 = vsel %vm3441, %v4361, 0
        %v4408 = vsel %vm3441, %v4363, 0
        %v4410 = vsel %vm3441, %v4365, 0
        %v4412 = vsel %vm3441, %v4364, 0
        %4414 = vmatprep.subr.mxu0 0.0
        %4415 = vmatpush1.msra.mxu0 %v4287
        %4416 = vmatprep.subr.mxu0 0.0
        %4417 = vmatpush1.msra.mxu0 %v4288
        %4418 = vmatprep.subr.mxu0 0.0
        %4419 = vmatpush1.msra.mxu0 %v4289
        %4420 = vmatprep.subr.mxu0 0.0
        %4421 = vmatpush1.msra.mxu0 %v4290
        %4422 = vmatprep.subr.mxu0 0.0
        %4423 = vmatpush1.msra.mxu0 %v4291
        %4424 = vmatprep.subr.mxu0 0.0
        %4425 = vmatpush1.msra.mxu0 %v4292
        %4426 = vmatprep.subr.mxu0 0.0
        %4427 = vmatpush1.msra.mxu0 %v4293
        %4428 = vmatprep.subr.mxu0 0.0
        %4429 = vmatpush1.msra.mxu0 %v4294
        %4430 = vmatprep.subr.mxu0 0.0
        %4431 = vmatpush1.msra.mxu0 0.0
        %4432 = vmatprep.subr.mxu0 0.0
        %4433 = vmatpush1.msra.mxu0 0.0
        %4434 = vmatprep.subr.mxu0 0.0
        %4435 = vmatpush1.msra.mxu0 0.0
        %4436 = vmatprep.subr.mxu0 0.0
        %4437 = vmatpush1.msra.mxu0 0.0
        %4438 = vmatprep.subr.mxu0 0.0
        %4439 = vmatpush1.msra.mxu0 0.0
        %4440 = vmatprep.subr.mxu0 0.0
        %4441 = vmatpush1.msra.mxu0 0.0
        %4442 = vmatprep.subr.mxu0 0.0
        %4443 = vmatpush1.msra.mxu0 0.0
        %4444 = vmatprep.subr.mxu0 0.0
        %4445 = vmatpush1.msra.mxu0 0.0
        %4446 = vmatprep.subr.mxu0 0.0
        %4447 = vmatpush1.msra.mxu0 0.0
        %4448 = vmatprep.subr.mxu0 0.0
        %4449 = vmatpush1.msra.mxu0 0.0
        %4450 = vmatprep.subr.mxu0 0.0
        %4451 = vmatpush1.msra.mxu0 0.0
        %4452 = vmatprep.subr.mxu0 0.0
        %4453 = vmatpush1.msra.mxu0 0.0
        %4454 = vmatprep.subr.mxu0 0.0
        %4455 = vmatpush1.msra.mxu0 0.0
        %4456 = vmatprep.subr.mxu0 0.0
        %4457 = vmatpush1.msra.mxu0 0.0
        %4458 = vmatprep.subr.mxu0 0.0
        %4459 = vmatpush1.msra.mxu0 0.0
        %4460 = vmatprep.subr.mxu0 0.0
        %4461 = vmatpush1.msra.mxu0 0.0
        %4462 = vmatprep.subr.mxu0 0.0
        %4463 = vmatpush1.msra.mxu0 0.0
        %4464 = vmatprep.subr.mxu0 0.0
        %4465 = vmatpush1.msra.mxu0 0.0
        %4466 = vmatprep.subr.mxu0 0.0
        %4467 = vmatpush1.msra.mxu0 0.0
        %4468 = vmatprep.subr.mxu0 0.0
        %4469 = vmatpush1.msra.mxu0 0.0
        %4470 = vmatprep.subr.mxu0 0.0
        %4471 = vmatpush1.msra.mxu0 0.0
        %4472 = vmatprep.subr.mxu0 0.0
        %4473 = vmatpush1.msra.mxu0 0.0
        %4474 = vmatprep.subr.mxu0 0.0
        %4475 = vmatpush1.msra.mxu0 0.0
        %4476 = vmatprep.subr.mxu0 0.0
        %4477 = vmatpush1.msra.mxu0 0.0
        %4478 = vmatprep.mubr.f32.mxu0 0.0
        %4479 = vmatmul.mubr.f32.gmra.mrb[0].mxu0 %v4366
        %v4480 = vpop.f32.mrb[0].mxu0
        %v4481 = vadd.f32 0.0, %v4480
        %v4482 = vpop.f32.mrb[0].mxu0
        %4483 = vmatprep.mubr.f32.mxu0 0.0
        %4484 = vmatmul.mubr.f32.gmra.mrb[0].mxu0 %v4368
        %v4485 = vpop.f32.mrb[0].mxu0
        %v4486 = vadd.f32 0.0, %v4485
        %v4487 = vpop.f32.mrb[0].mxu0
        %4488 = vmatprep.mubr.f32.mxu0 0.0
        %4489 = vmatmul.mubr.f32.gmra.mrb[0].mxu0 %v4370
        %v4490 = vpop.f32.mrb[0].mxu0
        %v4491 = vadd.f32 0.0, %v4490
        %v4492 = vpop.f32.mrb[0].mxu0
        %4493 = vmatprep.mubr.f32.mxu0 0.0
        %4494 = vmatmul.mubr.f32.gmra.mrb[0].mxu0 %v4372
        %v4495 = vpop.f32.mrb[0].mxu0
        %v4496 = vadd.f32 0.0, %v4495
        %v4497 = vpop.f32.mrb[0].mxu0
        %4498 = vmatprep.mubr.f32.mxu0 0.0
        %4499 = vmatmul.mubr.f32.gmra.mrb[0].mxu0 %v4374
        %v4500 = vpop.f32.mrb[0].mxu0
        %v4501 = vadd.f32 0.0, %v4500
        %v4502 = vpop.f32.mrb[0].mxu0
        %4503 = vmatprep.mubr.f32.mxu0 0.0
        %4504 = vmatmul.mubr.f32.gmra.mrb[0].mxu0 %v4376
        %v4505 = vpop.f32.mrb[0].mxu0
        %v4506 = vadd.f32 0.0, %v4505
        %v4507 = vpop.f32.mrb[0].mxu0
        %4508 = vmatprep.mubr.f32.mxu0 0.0
        %4509 = vmatmul.mubr.f32.gmra.mrb[0].mxu0 %v4378
        %v4510 = vpop.f32.mrb[0].mxu0
        %v4511 = vadd.f32 0.0, %v4510
        %v4512 = vpop.f32.mrb[0].mxu0
        %4513 = vmatprep.mubr.f32.mxu0 0.0
        %4514 = vmatmul.mubr.f32.gmra.mrb[0].mxu0 %v4380
        %v4515 = vpop.f32.mrb[0].mxu0
        %v4516 = vadd.f32 0.0, %v4515
        %v4517 = vpop.f32.mrb[0].mxu0
        %4518 = vmatprep.mubr.f32.mxu0 0.0
        %4519 = vmatmul.mubr.f32.gmra.mrb[0].mxu0 %v4382
        %v4520 = vpop.f32.mrb[0].mxu0
        %v4521 = vadd.f32 0.0, %v4520
        %v4522 = vpop.f32.mrb[0].mxu0
        %4523 = vmatprep.mubr.f32.mxu0 0.0
        %4524 = vmatmul.mubr.f32.gmra.mrb[0].mxu0 %v4384
        %v4525 = vpop.f32.mrb[0].mxu0
        %v4526 = vadd.f32 0.0, %v4525
        %v4527 = vpop.f32.mrb[0].mxu0
        %4528 = vmatprep.mubr.f32.mxu0 0.0
        %4529 = vmatmul.mubr.f32.gmra.mrb[0].mxu0 %v4386
        %v4530 = vpop.f32.mrb[0].mxu0
        %v4531 = vadd.f32 0.0, %v4530
        %v4532 = vpop.f32.mrb[0].mxu0
        %4533 = vmatprep.mubr.f32.mxu0 0.0
        %4534 = vmatmul.mubr.f32.gmra.mrb[0].mxu0 %v4388
        %v4535 = vpop.f32.mrb[0].mxu0
        %v4536 = vadd.f32 0.0, %v4535
        %v4537 = vpop.f32.mrb[0].mxu0
        %4538 = vmatprep.mubr.f32.mxu0 0.0
        %4539 = vmatmul.mubr.f32.gmra.mrb[0].mxu0 %v4390
        %v4540 = vpop.f32.mrb[0].mxu0
        %v4541 = vadd.f32 0.0, %v4540
        %v4542 = vpop.f32.mrb[0].mxu0
        %4543 = vmatprep.mubr.f32.mxu0 0.0
        %4544 = vmatmul.mubr.f32.gmra.mrb[0].mxu0 %v4392
        %v4545 = vpop.f32.mrb[0].mxu0
        %v4546 = vadd.f32 0.0, %v4545
        %v4547 = vpop.f32.mrb[0].mxu0
        %4548 = vmatprep.mubr.f32.mxu0 0.0
        %4549 = vmatmul.mubr.f32.gmra.mrb[0].mxu0 %v4394
        %v4550 = vpop.f32.mrb[0].mxu0
        %v4551 = vadd.f32 0.0, %v4550
        %v4552 = vpop.f32.mrb[0].mxu0
        %4553 = vmatprep.mubr.f32.mxu0 0.0
        %4554 = vmatmul.mubr.f32.gmra.mrb[0].mxu0 %v4396
        %v4555 = vpop.f32.mrb[0].mxu0
        %v4556 = vadd.f32 0.0, %v4555
        %v4557 = vpop.f32.mrb[0].mxu0
        %4558 = vmatprep.mubr.f32.mxu0 0.0
        %4559 = vmatmul.mubr.f32.gmra.mrb[0].mxu0 %v4398
        %v4560 = vpop.f32.mrb[0].mxu0
        %v4561 = vadd.f32 0.0, %v4560
        %v4562 = vpop.f32.mrb[0].mxu0
        %4563 = vmatprep.mubr.f32.mxu0 0.0
        %4564 = vmatmul.mubr.f32.gmra.mrb[0].mxu0 %v4400
        %v4565 = vpop.f32.mrb[0].mxu0
        %v4566 = vadd.f32 0.0, %v4565
        %v4567 = vpop.f32.mrb[0].mxu0
        %4568 = vmatprep.mubr.f32.mxu0 0.0
        %4569 = vmatmul.mubr.f32.gmra.mrb[0].mxu0 %v4402
        %v4570 = vpop.f32.mrb[0].mxu0
        %v4571 = vadd.f32 0.0, %v4570
        %v4572 = vpop.f32.mrb[0].mxu0
        %4573 = vmatprep.mubr.f32.mxu0 0.0
        %4574 = vmatmul.mubr.f32.gmra.mrb[0].mxu0 %v4404
        %v4575 = vpop.f32.mrb[0].mxu0
        %v4576 = vadd.f32 0.0, %v4575
        %v4577 = vpop.f32.mrb[0].mxu0
        %4578 = vmatprep.mubr.f32.mxu0 0.0
        %4579 = vmatmul.mubr.f32.gmra.mrb[0].mxu0 %v4406
        %v4580 = vpop.f32.mrb[0].mxu0
        %v4581 = vadd.f32 0.0, %v4580
        %v4582 = vpop.f32.mrb[0].mxu0
        %4583 = vmatprep.mubr.f32.mxu0 0.0
        %4584 = vmatmul.mubr.f32.gmra.mrb[0].mxu0 %v4408
        %v4585 = vpop.f32.mrb[0].mxu0
        %v4586 = vadd.f32 0.0, %v4585
        %v4587 = vpop.f32.mrb[0].mxu0
        %4588 = vmatprep.mubr.f32.mxu0 0.0
        %4589 = vmatmul.mubr.f32.gmra.mrb[0].mxu0 %v4410
        %v4590 = vpop.f32.mrb[0].mxu0
        %v4591 = vadd.f32 0.0, %v4590
        %v4592 = vpop.f32.mrb[0].mxu0
        %4593 = vmatprep.mubr.f32.mxu0 0.0
        %4594 = vmatmul.mubr.f32.gmra.mrb[0].mxu0 %v4412
        %v4595 = vpop.f32.mrb[0].mxu0
        %v4596 = vadd.f32 0.0, %v4595
        %v4597 = vpop.f32.mrb[0].mxu0
        %4598 = vdwg.mxu0
        %v4599 = vsel %vm3441, %v4253, 0
        %v4601 = vsel %vm3441, %v4254, 0
        %v4603 = vsel %vm3441, %v4255, 0
        %v4605 = vsel %vm3441, %v4256, 0
        %v4607 = vsel %vm3441, %v4257, 0
        %v4609 = vsel %vm3441, %v4258, 0
        %v4611 = vsel %vm3441, %v4259, 0
        %v4613 = vsel %vm3441, %v4260, 0
        %v4615 = vsel %vm3441, %v4261, 0
        %v4617 = vsel %vm3441, %v4262, 0
        %v4619 = vsel %vm3441, %v4263, 0
        %v4621 = vsel %vm3441, %v4264, 0
        %v4623 = vsel %vm3441, %v4265, 0
        %v4625 = vsel %vm3441, %v4266, 0
        %v4627 = vsel %vm3441, %v4267, 0
        %v4629 = vsel %vm3441, %v4268, 0
        %v4631 = vsel %vm3441, %v4269, 0
        %v4633 = vsel %vm3441, %v4270, 0
        %v4635 = vsel %vm3441, %v4271, 0
        %v4637 = vsel %vm3441, %v4272, 0
        %v4639 = vsel %vm3441, %v4273, 0
        %v4641 = vsel %vm3441, %v4274, 0
        %v4643 = vsel %vm3441, %v4275, 0
        %v4645 = vsel %vm3441, %v4276, 0
        %4647 = vmatprep.subr.mxu0 0.0
        %4648 = vmatpush1.msra.mxu0 %v4278
        %4649 = vmatprep.subr.mxu0 0.0
        %4650 = vmatpush1.msra.mxu0 %v4279
        %4651 = vmatprep.subr.mxu0 0.0
        %4652 = vmatpush1.msra.mxu0 %v4280
        %4653 = vmatprep.subr.mxu0 0.0
        %4654 = vmatpush1.msra.mxu0 %v4281
        %4655 = vmatprep.subr.mxu0 0.0
        %4656 = vmatpush1.msra.mxu0 %v4282
        %4657 = vmatprep.subr.mxu0 0.0
        %4658 = vmatpush1.msra.mxu0 %v4283
        %4659 = vmatprep.subr.mxu0 0.0
        %4660 = vmatpush1.msra.mxu0 %v4284
        %4661 = vmatprep.subr.mxu0 0.0
        %4662 = vmatpush1.msra.mxu0 %v4285
        %4663 = vmatprep.subr.mxu0 0.0
        %4664 = vmatpush1.msra.mxu0 0.0
        %4665 = vmatprep.subr.mxu0 0.0
        %4666 = vmatpush1.msra.mxu0 0.0
        %4667 = vmatprep.subr.mxu0 0.0
        %4668 = vmatpush1.msra.mxu0 0.0
        %4669 = vmatprep.subr.mxu0 0.0
        %4670 = vmatpush1.msra.mxu0 0.0
        %4671 = vmatprep.subr.mxu0 0.0
        %4672 = vmatpush1.msra.mxu0 0.0
        %4673 = vmatprep.subr.mxu0 0.0
        %4674 = vmatpush1.msra.mxu0 0.0
        %4675 = vmatprep.subr.mxu0 0.0
        %4676 = vmatpush1.msra.mxu0 0.0
        %4677 = vmatprep.subr.mxu0 0.0
        %4678 = vmatpush1.msra.mxu0 0.0
        %4679 = vmatprep.subr.mxu0 0.0
        %4680 = vmatpush1.msra.mxu0 0.0
        %4681 = vmatprep.subr.mxu0 0.0
        %4682 = vmatpush1.msra.mxu0 0.0
        %4683 = vmatprep.subr.mxu0 0.0
        %4684 = vmatpush1.msra.mxu0 0.0
        %4685 = vmatprep.subr.mxu0 0.0
        %4686 = vmatpush1.msra.mxu0 0.0
        %4687 = vmatprep.subr.mxu0 0.0
        %4688 = vmatpush1.msra.mxu0 0.0
        %4689 = vmatprep.subr.mxu0 0.0
        %4690 = vmatpush1.msra.mxu0 0.0
        %4691 = vmatprep.subr.mxu0 0.0
        %4692 = vmatpush1.msra.mxu0 0.0
        %4693 = vmatprep.subr.mxu0 0.0
        %4694 = vmatpush1.msra.mxu0 0.0
        %4695 = vmatprep.subr.mxu0 0.0
        %4696 = vmatpush1.msra.mxu0 0.0
        %4697 = vmatprep.subr.mxu0 0.0
        %4698 = vmatpush1.msra.mxu0 0.0
        %4699 = vmatprep.subr.mxu0 0.0
        %4700 = vmatpush1.msra.mxu0 0.0
        %4701 = vmatprep.subr.mxu0 0.0
        %4702 = vmatpush1.msra.mxu0 0.0
        %4703 = vmatprep.subr.mxu0 0.0
        %4704 = vmatpush1.msra.mxu0 0.0
        %4705 = vmatprep.subr.mxu0 0.0
        %4706 = vmatpush1.msra.mxu0 0.0
        %4707 = vmatprep.subr.mxu0 0.0
        %4708 = vmatpush1.msra.mxu0 0.0
        %4709 = vmatprep.subr.mxu0 0.0
        %4710 = vmatpush1.msra.mxu0 0.0
        %4711 = vmatprep.mubr.f32.mxu0 0.0
        %4712 = vmatmul.mubr.f32.gmra.mrb[0].mxu0 %v4599
        %v4713 = vpop.f32.mrb[0].mxu0
        %v4714 = vadd.f32 %v4481, %v4713
        %v4715 = vpop.f32.mrb[0].mxu0
        %4716 = vmatprep.mubr.f32.mxu0 0.0
        %4717 = vmatmul.mubr.f32.gmra.mrb[0].mxu0 %v4601
        %v4718 = vpop.f32.mrb[0].mxu0
        %v4719 = vadd.f32 %v4486, %v4718
        %v4720 = vpop.f32.mrb[0].mxu0
        %4721 = vmatprep.mubr.f32.mxu0 0.0
        %4722 = vmatmul.mubr.f32.gmra.mrb[0].mxu0 %v4603
        %v4723 = vpop.f32.mrb[0].mxu0
        %v4724 = vadd.f32 %v4491, %v4723
        %v4725 = vpop.f32.mrb[0].mxu0
        %4726 = vmatprep.mubr.f32.mxu0 0.0
        %4727 = vmatmul.mubr.f32.gmra.mrb[0].mxu0 %v4605
        %v4728 = vpop.f32.mrb[0].mxu0
        %v4729 = vadd.f32 %v4496, %v4728
        %v4730 = vpop.f32.mrb[0].mxu0
        %4731 = vmatprep.mubr.f32.mxu0 0.0
        %4732 = vmatmul.mubr.f32.gmra.mrb[0].mxu0 %v4607
        %v4733 = vpop.f32.mrb[0].mxu0
        %v4734 = vadd.f32 %v4501, %v4733
        %v4735 = vpop.f32.mrb[0].mxu0
        %4736 = vmatprep.mubr.f32.mxu0 0.0
        %4737 = vmatmul.mubr.f32.gmra.mrb[0].mxu0 %v4609
        %v4738 = vpop.f32.mrb[0].mxu0
        %v4739 = vadd.f32 %v4506, %v4738
        %v4740 = vpop.f32.mrb[0].mxu0
        %4741 = vmatprep.mubr.f32.mxu0 0.0
        %4742 = vmatmul.mubr.f32.gmra.mrb[0].mxu0 %v4611
        %v4743 = vpop.f32.mrb[0].mxu0
        %v4744 = vadd.f32 %v4511, %v4743
        %v4745 = vpop.f32.mrb[0].mxu0
        %4746 = vmatprep.mubr.f32.mxu0 0.0
        %4747 = vmatmul.mubr.f32.gmra.mrb[0].mxu0 %v4613
        %v4748 = vpop.f32.mrb[0].mxu0
        %v4749 = vadd.f32 %v4516, %v4748
        %v4750 = vpop.f32.mrb[0].mxu0
        %4751 = vmatprep.mubr.f32.mxu0 0.0
        %4752 = vmatmul.mubr.f32.gmra.mrb[0].mxu0 %v4615
        %v4753 = vpop.f32.mrb[0].mxu0
        %v4754 = vadd.f32 %v4521, %v4753
        %v4755 = vpop.f32.mrb[0].mxu0
        %4756 = vmatprep.mubr.f32.mxu0 0.0
        %4757 = vmatmul.mubr.f32.gmra.mrb[0].mxu0 %v4617
        %v4758 = vpop.f32.mrb[0].mxu0
        %v4759 = vadd.f32 %v4526, %v4758
        %v4760 = vpop.f32.mrb[0].mxu0
        %4761 = vmatprep.mubr.f32.mxu0 0.0
        %4762 = vmatmul.mubr.f32.gmra.mrb[0].mxu0 %v4619
        %v4763 = vpop.f32.mrb[0].mxu0
        %v4764 = vadd.f32 %v4531, %v4763
        %v4765 = vpop.f32.mrb[0].mxu0
        %4766 = vmatprep.mubr.f32.mxu0 0.0
        %4767 = vmatmul.mubr.f32.gmra.mrb[0].mxu0 %v4621
        %v4768 = vpop.f32.mrb[0].mxu0
        %v4769 = vadd.f32 %v4536, %v4768
        %v4770 = vpop.f32.mrb[0].mxu0
        %4771 = vmatprep.mubr.f32.mxu0 0.0
        %4772 = vmatmul.mubr.f32.gmra.mrb[0].mxu0 %v4623
        %v4773 = vpop.f32.mrb[0].mxu0
        %v4774 = vadd.f32 %v4541, %v4773
        %v4775 = vpop.f32.mrb[0].mxu0
        %4776 = vmatprep.mubr.f32.mxu0 0.0
        %4777 = vmatmul.mubr.f32.gmra.mrb[0].mxu0 %v4625
        %v4778 = vpop.f32.mrb[0].mxu0
        %v4779 = vadd.f32 %v4546, %v4778
        %v4780 = vpop.f32.mrb[0].mxu0
        %4781 = vmatprep.mubr.f32.mxu0 0.0
        %4782 = vmatmul.mubr.f32.gmra.mrb[0].mxu0 %v4627
        %v4783 = vpop.f32.mrb[0].mxu0
        %v4784 = vadd.f32 %v4551, %v4783
        %v4785 = vpop.f32.mrb[0].mxu0
        %4786 = vmatprep.mubr.f32.mxu0 0.0
        %4787 = vmatmul.mubr.f32.gmra.mrb[0].mxu0 %v4629
        %v4788 = vpop.f32.mrb[0].mxu0
        %v4789 = vadd.f32 %v4556, %v4788
        %v4790 = vpop.f32.mrb[0].mxu0
        %4791 = vmatprep.mubr.f32.mxu0 0.0
        %4792 = vmatmul.mubr.f32.gmra.mrb[0].mxu0 %v4631
        %v4793 = vpop.f32.mrb[0].mxu0
        %v4794 = vadd.f32 %v4561, %v4793
        %v4795 = vpop.f32.mrb[0].mxu0
        %4796 = vmatprep.mubr.f32.mxu0 0.0
        %4797 = vmatmul.mubr.f32.gmra.mrb[0].mxu0 %v4633
        %v4798 = vpop.f32.mrb[0].mxu0
        %v4799 = vadd.f32 %v4566, %v4798
        %v4800 = vpop.f32.mrb[0].mxu0
        %4801 = vmatprep.mubr.f32.mxu0 0.0
        %4802 = vmatmul.mubr.f32.gmra.mrb[0].mxu0 %v4635
        %v4803 = vpop.f32.mrb[0].mxu0
        %v4804 = vadd.f32 %v4571, %v4803
        %v4805 = vpop.f32.mrb[0].mxu0
        %4806 = vmatprep.mubr.f32.mxu0 0.0
        %4807 = vmatmul.mubr.f32.gmra.mrb[0].mxu0 %v4637
        %v4808 = vpop.f32.mrb[0].mxu0
        %v4809 = vadd.f32 %v4576, %v4808
        %v4810 = vpop.f32.mrb[0].mxu0
        %4811 = vmatprep.mubr.f32.mxu0 0.0
        %4812 = vmatmul.mubr.f32.gmra.mrb[0].mxu0 %v4639
        %v4813 = vpop.f32.mrb[0].mxu0
        %v4814 = vadd.f32 %v4581, %v4813
        %v4815 = vpop.f32.mrb[0].mxu0
        %4816 = vmatprep.mubr.f32.mxu0 0.0
        %4817 = vmatmul.mubr.f32.gmra.mrb[0].mxu0 %v4641
        %v4818 = vpop.f32.mrb[0].mxu0
        %v4819 = vadd.f32 %v4586, %v4818
        %v4820 = vpop.f32.mrb[0].mxu0
        %4821 = vmatprep.mubr.f32.mxu0 0.0
        %4822 = vmatmul.mubr.f32.gmra.mrb[0].mxu0 %v4643
        %v4823 = vpop.f32.mrb[0].mxu0
        %v4824 = vadd.f32 %v4591, %v4823
        %v4825 = vpop.f32.mrb[0].mxu0
        %4826 = vmatprep.mubr.f32.mxu0 0.0
        %4827 = vmatmul.mubr.f32.gmra.mrb[0].mxu0 %v4645
        %v4828 = vpop.f32.mrb[0].mxu0
        %v4829 = vadd.f32 %v4596, %v4828
        %v4830 = vpop.f32.mrb[0].mxu0
        %4831 = vdwg.mxu0
        %s4832 = scalar_lea.vmem [#allocation7], 128
        %v4833 = vld [vmem:[%s4832] sm:$0xff]
        %v4834 = vld [vmem:[%s4832 + $0x8] sm:$0xff]
        %v4835 = vld [vmem:[%s4832 + $0x10] sm:$0xff]
        %v4836 = vld [vmem:[%s4832 + $0x18] sm:$0xff]
        %v4837 = vld [vmem:[%s4832 + $0x20] sm:$0xff]
        %v4838 = vld [vmem:[%s4832 + $0x28] sm:$0xff]
        %v4839 = vld [vmem:[%s4832 + $0x30] sm:$0xff]
        %v4840 = vld [vmem:[%s4832 + $0x38] sm:$0xff]
        %v4841 = vrot.slane %v4253, 2
        %v4842 = vrot.slane %v4254, 2
        %v4843 = vsel %vm1096, %v4841, %v4842
        %v4844 = vrot.slane %v4255, 2
        %v4845 = vsel %vm1096, %v4842, %v4844
        %v4846 = vrot.slane %v4256, 2
        %v4847 = vsel %vm1096, %v4844, %v4846
        %v4848 = vrot.slane %v4257, 2
        %v4849 = vsel %vm1096, %v4846, %v4848
        %v4850 = vrot.slane %v4258, 2
        %v4851 = vsel %vm1096, %v4848, %v4850
        %v4852 = vrot.slane %v4259, 2
        %v4853 = vsel %vm1096, %v4850, %v4852
        %v4854 = vrot.slane %v4260, 2
        %v4855 = vsel %vm1096, %v4852, %v4854
        %v4856 = vrot.slane %v4261, 2
        %v4857 = vsel %vm1096, %v4854, %v4856
        %v4858 = vrot.slane %v4262, 2
        %v4859 = vsel %vm1096, %v4856, %v4858
        %v4860 = vrot.slane %v4263, 2
        %v4861 = vsel %vm1096, %v4858, %v4860
        %v4862 = vrot.slane %v4264, 2
        %v4863 = vsel %vm1096, %v4860, %v4862
        %v4864 = vrot.slane %v4265, 2
        %v4865 = vsel %vm1096, %v4862, %v4864
        %v4866 = vrot.slane %v4266, 2
        %v4867 = vsel %vm1096, %v4864, %v4866
        %v4868 = vrot.slane %v4267, 2
        %v4869 = vsel %vm1096, %v4866, %v4868
        %v4870 = vrot.slane %v4268, 2
        %v4871 = vsel %vm1096, %v4868, %v4870
        %v4872 = vrot.slane %v4269, 2
        %v4873 = vsel %vm1096, %v4870, %v4872
        %v4874 = vrot.slane %v4270, 2
        %v4875 = vsel %vm1096, %v4872, %v4874
        %v4876 = vrot.slane %v4271, 2
        %v4877 = vsel %vm1096, %v4874, %v4876
        %v4878 = vrot.slane %v4272, 2
        %v4879 = vsel %vm1096, %v4876, %v4878
        %v4880 = vrot.slane %v4273, 2
        %v4881 = vsel %vm1096, %v4878, %v4880
        %v4882 = vrot.slane %v4274, 2
        %v4883 = vsel %vm1096, %v4880, %v4882
        %v4884 = vrot.slane %v4275, 2
        %v4885 = vsel %vm1096, %v4882, %v4884
        %v4886 = vrot.slane %v4276, 2
        %v4887 = vsel %vm1096, %v4884, %v4886
        %v4888 = vsel %vm3441, %v4843, 0
        %v4890 = vsel %vm3441, %v4845, 0
        %v4892 = vsel %vm3441, %v4847, 0
        %v4894 = vsel %vm3441, %v4849, 0
        %v4896 = vsel %vm3441, %v4851, 0
        %v4898 = vsel %vm3441, %v4853, 0
        %v4900 = vsel %vm3441, %v4855, 0
        %v4902 = vsel %vm3441, %v4857, 0
        %v4904 = vsel %vm3441, %v4859, 0
        %v4906 = vsel %vm3441, %v4861, 0
        %v4908 = vsel %vm3441, %v4863, 0
        %v4910 = vsel %vm3441, %v4865, 0
        %v4912 = vsel %vm3441, %v4867, 0
        %v4914 = vsel %vm3441, %v4869, 0
        %v4916 = vsel %vm3441, %v4871, 0
        %v4918 = vsel %vm3441, %v4873, 0
        %v4920 = vsel %vm3441, %v4875, 0
        %v4922 = vsel %vm3441, %v4877, 0
        %v4924 = vsel %vm3441, %v4879, 0
        %v4926 = vsel %vm3441, %v4881, 0
        %v4928 = vsel %vm3441, %v4883, 0
        %v4930 = vsel %vm3441, %v4885, 0
        %v4932 = vsel %vm3441, %v4887, 0
        %v4934 = vsel %vm3441, %v4886, 0
        %4936 = vmatprep.subr.mxu0 0.0
        %4937 = vmatpush1.msra.mxu0 %v4833
        %4938 = vmatprep.subr.mxu0 0.0
        %4939 = vmatpush1.msra.mxu0 %v4834
        %4940 = vmatprep.subr.mxu0 0.0
        %4941 = vmatpush1.msra.mxu0 %v4835
        %4942 = vmatprep.subr.mxu0 0.0
        %4943 = vmatpush1.msra.mxu0 %v4836
        %4944 = vmatprep.subr.mxu0 0.0
        %4945 = vmatpush1.msra.mxu0 %v4837
        %4946 = vmatprep.subr.mxu0 0.0
        %4947 = vmatpush1.msra.mxu0 %v4838
        %4948 = vmatprep.subr.mxu0 0.0
        %4949 = vmatpush1.msra.mxu0 %v4839
        %4950 = vmatprep.subr.mxu0 0.0
        %4951 = vmatpush1.msra.mxu0 %v4840
        %4952 = vmatprep.subr.mxu0 0.0
        %4953 = vmatpush1.msra.mxu0 0.0
        %4954 = vmatprep.subr.mxu0 0.0
        %4955 = vmatpush1.msra.mxu0 0.0
        %4956 = vmatprep.subr.mxu0 0.0
        %4957 = vmatpush1.msra.mxu0 0.0
        %4958 = vmatprep.subr.mxu0 0.0
        %4959 = vmatpush1.msra.mxu0 0.0
        %4960 = vmatprep.subr.mxu0 0.0
        %4961 = vmatpush1.msra.mxu0 0.0
        %4962 = vmatprep.subr.mxu0 0.0
        %4963 = vmatpush1.msra.mxu0 0.0
        %4964 = vmatprep.subr.mxu0 0.0
        %4965 = vmatpush1.msra.mxu0 0.0
        %4966 = vmatprep.subr.mxu0 0.0
        %4967 = vmatpush1.msra.mxu0 0.0
        %4968 = vmatprep.subr.mxu0 0.0
        %4969 = vmatpush1.msra.mxu0 0.0
        %4970 = vmatprep.subr.mxu0 0.0
        %4971 = vmatpush1.msra.mxu0 0.0
        %4972 = vmatprep.subr.mxu0 0.0
        %4973 = vmatpush1.msra.mxu0 0.0
        %4974 = vmatprep.subr.mxu0 0.0
        %4975 = vmatpush1.msra.mxu0 0.0
        %4976 = vmatprep.subr.mxu0 0.0
        %4977 = vmatpush1.msra.mxu0 0.0
        %4978 = vmatprep.subr.mxu0 0.0
        %4979 = vmatpush1.msra.mxu0 0.0
        %4980 = vmatprep.subr.mxu0 0.0
        %4981 = vmatpush1.msra.mxu0 0.0
        %4982 = vmatprep.subr.mxu0 0.0
        %4983 = vmatpush1.msra.mxu0 0.0
        %4984 = vmatprep.subr.mxu0 0.0
        %4985 = vmatpush1.msra.mxu0 0.0
        %4986 = vmatprep.subr.mxu0 0.0
        %4987 = vmatpush1.msra.mxu0 0.0
        %4988 = vmatprep.subr.mxu0 0.0
        %4989 = vmatpush1.msra.mxu0 0.0
        %4990 = vmatprep.subr.mxu0 0.0
        %4991 = vmatpush1.msra.mxu0 0.0
        %4992 = vmatprep.subr.mxu0 0.0
        %4993 = vmatpush1.msra.mxu0 0.0
        %4994 = vmatprep.subr.mxu0 0.0
        %4995 = vmatpush1.msra.mxu0 0.0
        %4996 = vmatprep.subr.mxu0 0.0
        %4997 = vmatpush1.msra.mxu0 0.0
        %4998 = vmatprep.subr.mxu0 0.0
        %4999 = vmatpush1.msra.mxu0 0.0
        %5000 = vmatprep.mubr.f32.mxu0 0.0
        %5001 = vmatmul.mubr.f32.gmra.mrb[0].mxu0 %v4888
        %v5002 = vpop.f32.mrb[0].mxu0
        %v5003 = vadd.f32 0.0, %v5002
        %v5004 = vpop.f32.mrb[0].mxu0
        %5005 = vmatprep.mubr.f32.mxu0 0.0
        %5006 = vmatmul.mubr.f32.gmra.mrb[0].mxu0 %v4890
        %v5007 = vpop.f32.mrb[0].mxu0
        %v5008 = vadd.f32 0.0, %v5007
        %v5009 = vpop.f32.mrb[0].mxu0
        %5010 = vmatprep.mubr.f32.mxu0 0.0
        %5011 = vmatmul.mubr.f32.gmra.mrb[0].mxu0 %v4892
        %v5012 = vpop.f32.mrb[0].mxu0
        %v5013 = vadd.f32 0.0, %v5012
        %v5014 = vpop.f32.mrb[0].mxu0
        %5015 = vmatprep.mubr.f32.mxu0 0.0
        %5016 = vmatmul.mubr.f32.gmra.mrb[0].mxu0 %v4894
        %v5017 = vpop.f32.mrb[0].mxu0
        %v5018 = vadd.f32 0.0, %v5017
        %v5019 = vpop.f32.mrb[0].mxu0
        %5020 = vmatprep.mubr.f32.mxu0 0.0
        %5021 = vmatmul.mubr.f32.gmra.mrb[0].mxu0 %v4896
        %v5022 = vpop.f32.mrb[0].mxu0
        %v5023 = vadd.f32 0.0, %v5022
        %v5024 = vpop.f32.mrb[0].mxu0
        %5025 = vmatprep.mubr.f32.mxu0 0.0
        %5026 = vmatmul.mubr.f32.gmra.mrb[0].mxu0 %v4898
        %v5027 = vpop.f32.mrb[0].mxu0
        %v5028 = vadd.f32 0.0, %v5027
        %v5029 = vpop.f32.mrb[0].mxu0
        %5030 = vmatprep.mubr.f32.mxu0 0.0
        %5031 = vmatmul.mubr.f32.gmra.mrb[0].mxu0 %v4900
        %v5032 = vpop.f32.mrb[0].mxu0
        %v5033 = vadd.f32 0.0, %v5032
        %v5034 = vpop.f32.mrb[0].mxu0
        %5035 = vmatprep.mubr.f32.mxu0 0.0
        %5036 = vmatmul.mubr.f32.gmra.mrb[0].mxu0 %v4902
        %v5037 = vpop.f32.mrb[0].mxu0
        %v5038 = vadd.f32 0.0, %v5037
        %v5039 = vpop.f32.mrb[0].mxu0
        %5040 = vmatprep.mubr.f32.mxu0 0.0
        %5041 = vmatmul.mubr.f32.gmra.mrb[0].mxu0 %v4904
        %v5042 = vpop.f32.mrb[0].mxu0
        %v5043 = vadd.f32 0.0, %v5042
        %v5044 = vpop.f32.mrb[0].mxu0
        %5045 = vmatprep.mubr.f32.mxu0 0.0
        %5046 = vmatmul.mubr.f32.gmra.mrb[0].mxu0 %v4906
        %v5047 = vpop.f32.mrb[0].mxu0
        %v5048 = vadd.f32 0.0, %v5047
        %v5049 = vpop.f32.mrb[0].mxu0
        %5050 = vmatprep.mubr.f32.mxu0 0.0
        %5051 = vmatmul.mubr.f32.gmra.mrb[0].mxu0 %v4908
        %v5052 = vpop.f32.mrb[0].mxu0
        %v5053 = vadd.f32 0.0, %v5052
        %v5054 = vpop.f32.mrb[0].mxu0
        %5055 = vmatprep.mubr.f32.mxu0 0.0
        %5056 = vmatmul.mubr.f32.gmra.mrb[0].mxu0 %v4910
        %v5057 = vpop.f32.mrb[0].mxu0
        %v5058 = vadd.f32 0.0, %v5057
        %v5059 = vpop.f32.mrb[0].mxu0
        %5060 = vmatprep.mubr.f32.mxu0 0.0
        %5061 = vmatmul.mubr.f32.gmra.mrb[0].mxu0 %v4912
        %v5062 = vpop.f32.mrb[0].mxu0
        %v5063 = vadd.f32 0.0, %v5062
        %v5064 = vpop.f32.mrb[0].mxu0
        %5065 = vmatprep.mubr.f32.mxu0 0.0
        %5066 = vmatmul.mubr.f32.gmra.mrb[0].mxu0 %v4914
        %v5067 = vpop.f32.mrb[0].mxu0
        %v5068 = vadd.f32 0.0, %v5067
        %v5069 = vpop.f32.mrb[0].mxu0
        %5070 = vmatprep.mubr.f32.mxu0 0.0
        %5071 = vmatmul.mubr.f32.gmra.mrb[0].mxu0 %v4916
        %v5072 = vpop.f32.mrb[0].mxu0
        %v5073 = vadd.f32 0.0, %v5072
        %v5074 = vpop.f32.mrb[0].mxu0
        %5075 = vmatprep.mubr.f32.mxu0 0.0
        %5076 = vmatmul.mubr.f32.gmra.mrb[0].mxu0 %v4918
        %v5077 = vpop.f32.mrb[0].mxu0
        %v5078 = vadd.f32 0.0, %v5077
        %v5079 = vpop.f32.mrb[0].mxu0
        %5080 = vmatprep.mubr.f32.mxu0 0.0
        %5081 = vmatmul.mubr.f32.gmra.mrb[0].mxu0 %v4920
        %v5082 = vpop.f32.mrb[0].mxu0
        %v5083 = vadd.f32 0.0, %v5082
        %v5084 = vpop.f32.mrb[0].mxu0
        %5085 = vmatprep.mubr.f32.mxu0 0.0
        %5086 = vmatmul.mubr.f32.gmra.mrb[0].mxu0 %v4922
        %v5087 = vpop.f32.mrb[0].mxu0
        %v5088 = vadd.f32 0.0, %v5087
        %v5089 = vpop.f32.mrb[0].mxu0
        %5090 = vmatprep.mubr.f32.mxu0 0.0
        %5091 = vmatmul.mubr.f32.gmra.mrb[0].mxu0 %v4924
        %v5092 = vpop.f32.mrb[0].mxu0
        %v5093 = vadd.f32 0.0, %v5092
        %v5094 = vpop.f32.mrb[0].mxu0
        %5095 = vmatprep.mubr.f32.mxu0 0.0
        %5096 = vmatmul.mubr.f32.gmra.mrb[0].mxu0 %v4926
        %v5097 = vpop.f32.mrb[0].mxu0
        %v5098 = vadd.f32 0.0, %v5097
        %v5099 = vpop.f32.mrb[0].mxu0
        %5100 = vmatprep.mubr.f32.mxu0 0.0
        %5101 = vmatmul.mubr.f32.gmra.mrb[0].mxu0 %v4928
        %v5102 = vpop.f32.mrb[0].mxu0
        %v5103 = vadd.f32 0.0, %v5102
        %v5104 = vpop.f32.mrb[0].mxu0
        %5105 = vmatprep.mubr.f32.mxu0 0.0
        %5106 = vmatmul.mubr.f32.gmra.mrb[0].mxu0 %v4930
        %v5107 = vpop.f32.mrb[0].mxu0
        %v5108 = vadd.f32 0.0, %v5107
        %v5109 = vpop.f32.mrb[0].mxu0
        %5110 = vmatprep.mubr.f32.mxu0 0.0
        %5111 = vmatmul.mubr.f32.gmra.mrb[0].mxu0 %v4932
        %v5112 = vpop.f32.mrb[0].mxu0
        %v5113 = vadd.f32 0.0, %v5112
        %v5114 = vpop.f32.mrb[0].mxu0
        %5115 = vmatprep.mubr.f32.mxu0 0.0
        %5116 = vmatmul.mubr.f32.gmra.mrb[0].mxu0 %v4934
        %v5117 = vpop.f32.mrb[0].mxu0
        %v5118 = vadd.f32 0.0, %v5117
        %v5119 = vpop.f32.mrb[0].mxu0
        %5120 = vdwg.mxu0
        %v5121 = vadd.f32 %v4714, %v5003
        %v5122 = vadd.f32 %v4719, %v5008
        %v5123 = vadd.f32 %v4724, %v5013
        %v5124 = vadd.f32 %v4729, %v5018
        %v5125 = vadd.f32 %v4734, %v5023
        %v5126 = vadd.f32 %v4739, %v5028
        %v5127 = vadd.f32 %v4744, %v5033
        %v5128 = vadd.f32 %v4749, %v5038
        %v5129 = vadd.f32 %v4754, %v5043
        %v5130 = vadd.f32 %v4759, %v5048
        %v5131 = vadd.f32 %v4764, %v5053
        %v5132 = vadd.f32 %v4769, %v5058
        %v5133 = vadd.f32 %v4774, %v5063
        %v5134 = vadd.f32 %v4779, %v5068
        %v5135 = vadd.f32 %v4784, %v5073
        %v5136 = vadd.f32 %v4789, %v5078
        %v5137 = vadd.f32 %v4794, %v5083
        %v5138 = vadd.f32 %v4799, %v5088
        %v5139 = vadd.f32 %v4804, %v5093
        %v5140 = vadd.f32 %v4809, %v5098
        %v5141 = vadd.f32 %v4814, %v5103
        %v5142 = vadd.f32 %v4819, %v5108
        %v5143 = vadd.f32 %v4824, %v5113
        %v5144 = vadd.f32 %v4829, %v5118
        %v5146 = vlaneseq
        %v5147 = vshrl.u32 %v5146, 7
        %v5148 = vsub.s32 0, %v5147
        %v5149 = vrot.slane %v4277, %v5148
        %v5151 = vadd.f32 %v5121, %v5149
        %v5152 = vadd.f32 %v5122, %v5149
        %v5153 = vadd.f32 %v5123, %v5149
        %v5154 = vadd.f32 %v5124, %v5149
        %v5155 = vadd.f32 %v5125, %v5149
        %v5156 = vadd.f32 %v5126, %v5149
        %v5157 = vadd.f32 %v5127, %v5149
        %v5158 = vadd.f32 %v5128, %v5149
        %v5159 = vadd.f32 %v5129, %v5149
        %v5160 = vadd.f32 %v5130, %v5149
        %v5161 = vadd.f32 %v5131, %v5149
        %v5162 = vadd.f32 %v5132, %v5149
        %v5163 = vadd.f32 %v5133, %v5149
        %v5164 = vadd.f32 %v5134, %v5149
        %v5165 = vadd.f32 %v5135, %v5149
        %v5166 = vadd.f32 %v5136, %v5149
        %v5167 = vadd.f32 %v5137, %v5149
        %v5168 = vadd.f32 %v5138, %v5149
        %v5169 = vadd.f32 %v5139, %v5149
        %v5170 = vadd.f32 %v5140, %v5149
        %v5171 = vadd.f32 %v5141, %v5149
        %v5172 = vadd.f32 %v5142, %v5149
        %v5173 = vadd.f32 %v5143, %v5149
        %v5174 = vadd.f32 %v5144, %v5149
        %v5175 = vmax.f32 %v5151, 0.0
        %v5176 = vmax.f32 %v5152, 0.0
        %v5177 = vmax.f32 %v5153, 0.0
        %v5178 = vmax.f32 %v5154, 0.0
        %v5179 = vmax.f32 %v5155, 0.0
        %v5180 = vmax.f32 %v5156, 0.0
        %v5181 = vmax.f32 %v5157, 0.0
        %v5182 = vmax.f32 %v5158, 0.0
        %v5183 = vmax.f32 %v5159, 0.0
        %v5184 = vmax.f32 %v5160, 0.0
        %v5185 = vmax.f32 %v5161, 0.0
        %v5186 = vmax.f32 %v5162, 0.0
        %v5187 = vmax.f32 %v5163, 0.0
        %v5188 = vmax.f32 %v5164, 0.0
        %v5189 = vmax.f32 %v5165, 0.0
        %v5190 = vmax.f32 %v5166, 0.0
        %v5191 = vmax.f32 %v5167, 0.0
        %v5192 = vmax.f32 %v5168, 0.0
        %v5193 = vmax.f32 %v5169, 0.0
        %v5194 = vmax.f32 %v5170, 0.0
        %v5195 = vmax.f32 %v5171, 0.0
        %v5196 = vmax.f32 %v5172, 0.0
        %v5197 = vmax.f32 %v5173, 0.0
        %v5198 = vmax.f32 %v5174, 0.0
        %v5199 = vld [vmem:[%s12] sm:$0x1]
        %v5200 = vld [vmem:[%s11] sm:$0xff]
        %v5201 = vld [vmem:[%s11 + $0x8] sm:$0xff]
        %v5202 = vld [vmem:[%s11 + $0x10] sm:$0xff]
        %v5203 = vld [vmem:[%s11 + $0x18] sm:$0xff]
        %v5204 = vld [vmem:[%s11 + $0x20] sm:$0xff]
        %v5205 = vld [vmem:[%s11 + $0x28] sm:$0xff]
        %v5206 = vld [vmem:[%s11 + $0x30] sm:$0xff]
        %v5207 = vld [vmem:[%s11 + $0x38] sm:$0xff]
        %v5208 = vld [vmem:[%s11 + $0x40] sm:$0xff]
        %v5209 = vld [vmem:[%s11 + $0x48] sm:$0xff]
        %v5210 = vld [vmem:[%s11 + $0x50] sm:$0xff]
        %v5211 = vld [vmem:[%s11 + $0x58] sm:$0xff]
        %v5212 = vld [vmem:[%s11 + $0x60] sm:$0xff]
        %v5213 = vld [vmem:[%s11 + $0x68] sm:$0xff]
        %v5214 = vld [vmem:[%s11 + $0x70] sm:$0xff]
        %v5215 = vld [vmem:[%s11 + $0x78] sm:$0xff]
        %s5216 = scalar_lea.vmem %s11, 128
        %v5217 = vld [vmem:[%s5216] sm:$0xff]
        %v5218 = vld [vmem:[%s5216 + $0x8] sm:$0xff]
        %v5219 = vld [vmem:[%s5216 + $0x10] sm:$0xff]
        %v5220 = vld [vmem:[%s5216 + $0x18] sm:$0xff]
        %v5221 = vld [vmem:[%s5216 + $0x20] sm:$0xff]
        %v5222 = vld [vmem:[%s5216 + $0x28] sm:$0xff]
        %v5223 = vld [vmem:[%s5216 + $0x30] sm:$0xff]
        %v5224 = vld [vmem:[%s5216 + $0x38] sm:$0xff]
        %v5225 = vld [vmem:[%s5216 + $0x40] sm:$0xff]
        %v5226 = vld [vmem:[%s5216 + $0x48] sm:$0xff]
        %v5227 = vld [vmem:[%s5216 + $0x50] sm:$0xff]
        %v5228 = vld [vmem:[%s5216 + $0x58] sm:$0xff]
        %v5229 = vld [vmem:[%s5216 + $0x60] sm:$0xff]
        %v5230 = vld [vmem:[%s5216 + $0x68] sm:$0xff]
        %v5231 = vld [vmem:[%s5216 + $0x70] sm:$0xff]
        %v5232 = vld [vmem:[%s5216 + $0x78] sm:$0xff]
        %v5257 = vrot.slane %v5175, 1
        %v5258 = vrot.slane %v5176, 1
        %v5259 = vsel %vm556, %v5257, %v5258
        %v5260 = vrot.slane %v5177, 1
        %v5261 = vsel %vm556, %v5258, %v5260
        %v5262 = vrot.slane %v5178, 1
        %v5263 = vsel %vm556, %v5260, %v5262
        %v5264 = vrot.slane %v5179, 1
        %v5265 = vsel %vm556, %v5262, %v5264
        %v5266 = vrot.slane %v5180, 1
        %v5267 = vsel %vm556, %v5264, %v5266
        %v5268 = vrot.slane %v5181, 1
        %v5269 = vsel %vm556, %v5266, %v5268
        %v5270 = vrot.slane %v5182, 1
        %v5271 = vsel %vm556, %v5268, %v5270
        %v5272 = vrot.slane %v5183, 1
        %v5273 = vsel %vm556, %v5270, %v5272
        %v5274 = vrot.slane %v5184, 1
        %v5275 = vsel %vm556, %v5272, %v5274
        %v5276 = vrot.slane %v5185, 1
        %v5277 = vsel %vm556, %v5274, %v5276
        %v5278 = vrot.slane %v5186, 1
        %v5279 = vsel %vm556, %v5276, %v5278
        %v5280 = vrot.slane %v5187, 1
        %v5281 = vsel %vm556, %v5278, %v5280
        %v5282 = vrot.slane %v5188, 1
        %v5283 = vsel %vm556, %v5280, %v5282
        %v5284 = vrot.slane %v5189, 1
        %v5285 = vsel %vm556, %v5282, %v5284
        %v5286 = vrot.slane %v5190, 1
        %v5287 = vsel %vm556, %v5284, %v5286
        %v5288 = vrot.slane %v5191, 1
        %v5289 = vsel %vm556, %v5286, %v5288
        %v5290 = vrot.slane %v5192, 1
        %v5291 = vsel %vm556, %v5288, %v5290
        %v5292 = vrot.slane %v5193, 1
        %v5293 = vsel %vm556, %v5290, %v5292
        %v5294 = vrot.slane %v5194, 1
        %v5295 = vsel %vm556, %v5292, %v5294
        %v5296 = vrot.slane %v5195, 1
        %v5297 = vsel %vm556, %v5294, %v5296
        %v5298 = vrot.slane %v5196, 1
        %v5299 = vsel %vm556, %v5296, %v5298
        %v5300 = vrot.slane %v5197, 1
        %v5301 = vsel %vm556, %v5298, %v5300
        %v5302 = vrot.slane %v5198, 1
        %v5303 = vsel %vm556, %v5300, %v5302
        %5328 = vmatprep.subr.mxu0 0.0
        %5329 = vmatpush1.msra.mxu0 %v5217
        %5330 = vmatprep.subr.mxu0 0.0
        %5331 = vmatpush1.msra.mxu0 %v5218
        %5332 = vmatprep.subr.mxu0 0.0
        %5333 = vmatpush1.msra.mxu0 %v5219
        %5334 = vmatprep.subr.mxu0 0.0
        %5335 = vmatpush1.msra.mxu0 %v5220
        %5336 = vmatprep.subr.mxu0 0.0
        %5337 = vmatpush1.msra.mxu0 %v5221
        %5338 = vmatprep.subr.mxu0 0.0
        %5339 = vmatpush1.msra.mxu0 %v5222
        %5340 = vmatprep.subr.mxu0 0.0
        %5341 = vmatpush1.msra.mxu0 %v5223
        %5342 = vmatprep.subr.mxu0 0.0
        %5343 = vmatpush1.msra.mxu0 %v5224
        %5344 = vmatprep.subr.mxu0 0.0
        %5345 = vmatpush1.msra.mxu0 %v5225
        %5346 = vmatprep.subr.mxu0 0.0
        %5347 = vmatpush1.msra.mxu0 %v5226
        %5348 = vmatprep.subr.mxu0 0.0
        %5349 = vmatpush1.msra.mxu0 %v5227
        %5350 = vmatprep.subr.mxu0 0.0
        %5351 = vmatpush1.msra.mxu0 %v5228
        %5352 = vmatprep.subr.mxu0 0.0
        %5353 = vmatpush1.msra.mxu0 %v5229
        %5354 = vmatprep.subr.mxu0 0.0
        %5355 = vmatpush1.msra.mxu0 %v5230
        %5356 = vmatprep.subr.mxu0 0.0
        %5357 = vmatpush1.msra.mxu0 %v5231
        %5358 = vmatprep.subr.mxu0 0.0
        %5359 = vmatpush1.msra.mxu0 %v5232
        %5360 = vmatprep.subr.mxu0 0.0
        %5361 = vmatpush1.msra.mxu0 0.0
        %5362 = vmatprep.subr.mxu0 0.0
        %5363 = vmatpush1.msra.mxu0 0.0
        %5364 = vmatprep.subr.mxu0 0.0
        %5365 = vmatpush1.msra.mxu0 0.0
        %5366 = vmatprep.subr.mxu0 0.0
        %5367 = vmatpush1.msra.mxu0 0.0
        %5368 = vmatprep.subr.mxu0 0.0
        %5369 = vmatpush1.msra.mxu0 0.0
        %5370 = vmatprep.subr.mxu0 0.0
        %5371 = vmatpush1.msra.mxu0 0.0
        %5372 = vmatprep.subr.mxu0 0.0
        %5373 = vmatpush1.msra.mxu0 0.0
        %5374 = vmatprep.subr.mxu0 0.0
        %5375 = vmatpush1.msra.mxu0 0.0
        %5376 = vmatprep.subr.mxu0 0.0
        %5377 = vmatpush1.msra.mxu0 0.0
        %5378 = vmatprep.subr.mxu0 0.0
        %5379 = vmatpush1.msra.mxu0 0.0
        %5380 = vmatprep.subr.mxu0 0.0
        %5381 = vmatpush1.msra.mxu0 0.0
        %5382 = vmatprep.subr.mxu0 0.0
        %5383 = vmatpush1.msra.mxu0 0.0
        %5384 = vmatprep.subr.mxu0 0.0
        %5385 = vmatpush1.msra.mxu0 0.0
        %5386 = vmatprep.subr.mxu0 0.0
        %5387 = vmatpush1.msra.mxu0 0.0
        %5388 = vmatprep.subr.mxu0 0.0
        %5389 = vmatpush1.msra.mxu0 0.0
        %5390 = vmatprep.subr.mxu0 0.0
        %5391 = vmatpush1.msra.mxu0 0.0
        %5392 = vmatprep.mubr.f32.mxu0 0.0
        %5393 = vmatmul.mubr.f32.gmra.mrb[0].mxu0 %v5259
        %v5394 = vpop.f32.mrb[0].mxu0
        %v5395 = vadd.f32 0.0, %v5394
        %v5396 = vpop.f32.mrb[0].mxu0
        %5397 = vmatprep.mubr.f32.mxu0 0.0
        %5398 = vmatmul.mubr.f32.gmra.mrb[0].mxu0 %v5261
        %v5399 = vpop.f32.mrb[0].mxu0
        %v5400 = vadd.f32 0.0, %v5399
        %v5401 = vpop.f32.mrb[0].mxu0
        %5402 = vmatprep.mubr.f32.mxu0 0.0
        %5403 = vmatmul.mubr.f32.gmra.mrb[0].mxu0 %v5263
        %v5404 = vpop.f32.mrb[0].mxu0
        %v5405 = vadd.f32 0.0, %v5404
        %v5406 = vpop.f32.mrb[0].mxu0
        %5407 = vmatprep.mubr.f32.mxu0 0.0
        %5408 = vmatmul.mubr.f32.gmra.mrb[0].mxu0 %v5265
        %v5409 = vpop.f32.mrb[0].mxu0
        %v5410 = vadd.f32 0.0, %v5409
        %v5411 = vpop.f32.mrb[0].mxu0
        %5412 = vmatprep.mubr.f32.mxu0 0.0
        %5413 = vmatmul.mubr.f32.gmra.mrb[0].mxu0 %v5267
        %v5414 = vpop.f32.mrb[0].mxu0
        %v5415 = vadd.f32 0.0, %v5414
        %v5416 = vpop.f32.mrb[0].mxu0
        %5417 = vmatprep.mubr.f32.mxu0 0.0
        %5418 = vmatmul.mubr.f32.gmra.mrb[0].mxu0 %v5269
        %v5419 = vpop.f32.mrb[0].mxu0
        %v5420 = vadd.f32 0.0, %v5419
        %v5421 = vpop.f32.mrb[0].mxu0
        %5422 = vmatprep.mubr.f32.mxu0 0.0
        %5423 = vmatmul.mubr.f32.gmra.mrb[0].mxu0 %v5271
        %v5424 = vpop.f32.mrb[0].mxu0
        %v5425 = vadd.f32 0.0, %v5424
        %v5426 = vpop.f32.mrb[0].mxu0
        %5427 = vmatprep.mubr.f32.mxu0 0.0
        %5428 = vmatmul.mubr.f32.gmra.mrb[0].mxu0 %v5273
        %v5429 = vpop.f32.mrb[0].mxu0
        %v5430 = vadd.f32 0.0, %v5429
        %v5431 = vpop.f32.mrb[0].mxu0
        %5432 = vmatprep.mubr.f32.mxu0 0.0
        %5433 = vmatmul.mubr.f32.gmra.mrb[0].mxu0 %v5275
        %v5434 = vpop.f32.mrb[0].mxu0
        %v5435 = vadd.f32 0.0, %v5434
        %v5436 = vpop.f32.mrb[0].mxu0
        %5437 = vmatprep.mubr.f32.mxu0 0.0
        %5438 = vmatmul.mubr.f32.gmra.mrb[0].mxu0 %v5277
        %v5439 = vpop.f32.mrb[0].mxu0
        %v5440 = vadd.f32 0.0, %v5439
        %v5441 = vpop.f32.mrb[0].mxu0
        %5442 = vmatprep.mubr.f32.mxu0 0.0
        %5443 = vmatmul.mubr.f32.gmra.mrb[0].mxu0 %v5279
        %v5444 = vpop.f32.mrb[0].mxu0
        %v5445 = vadd.f32 0.0, %v5444
        %v5446 = vpop.f32.mrb[0].mxu0
        %5447 = vmatprep.mubr.f32.mxu0 0.0
        %5448 = vmatmul.mubr.f32.gmra.mrb[0].mxu0 %v5281
        %v5449 = vpop.f32.mrb[0].mxu0
        %v5450 = vadd.f32 0.0, %v5449
        %v5451 = vpop.f32.mrb[0].mxu0
        %5452 = vmatprep.mubr.f32.mxu0 0.0
        %5453 = vmatmul.mubr.f32.gmra.mrb[0].mxu0 %v5283
        %v5454 = vpop.f32.mrb[0].mxu0
        %v5455 = vadd.f32 0.0, %v5454
        %v5456 = vpop.f32.mrb[0].mxu0
        %5457 = vmatprep.mubr.f32.mxu0 0.0
        %5458 = vmatmul.mubr.f32.gmra.mrb[0].mxu0 %v5285
        %v5459 = vpop.f32.mrb[0].mxu0
        %v5460 = vadd.f32 0.0, %v5459
        %v5461 = vpop.f32.mrb[0].mxu0
        %5462 = vmatprep.mubr.f32.mxu0 0.0
        %5463 = vmatmul.mubr.f32.gmra.mrb[0].mxu0 %v5287
        %v5464 = vpop.f32.mrb[0].mxu0
        %v5465 = vadd.f32 0.0, %v5464
        %v5466 = vpop.f32.mrb[0].mxu0
        %5467 = vmatprep.mubr.f32.mxu0 0.0
        %5468 = vmatmul.mubr.f32.gmra.mrb[0].mxu0 %v5289
        %v5469 = vpop.f32.mrb[0].mxu0
        %v5470 = vadd.f32 0.0, %v5469
        %v5471 = vpop.f32.mrb[0].mxu0
        %5472 = vmatprep.mubr.f32.mxu0 0.0
        %5473 = vmatmul.mubr.f32.gmra.mrb[0].mxu0 %v5291
        %v5474 = vpop.f32.mrb[0].mxu0
        %v5475 = vadd.f32 0.0, %v5474
        %v5476 = vpop.f32.mrb[0].mxu0
        %5477 = vmatprep.mubr.f32.mxu0 0.0
        %5478 = vmatmul.mubr.f32.gmra.mrb[0].mxu0 %v5293
        %v5479 = vpop.f32.mrb[0].mxu0
        %v5480 = vadd.f32 0.0, %v5479
        %v5481 = vpop.f32.mrb[0].mxu0
        %5482 = vmatprep.mubr.f32.mxu0 0.0
        %5483 = vmatmul.mubr.f32.gmra.mrb[0].mxu0 %v5295
        %v5484 = vpop.f32.mrb[0].mxu0
        %v5485 = vadd.f32 0.0, %v5484
        %v5486 = vpop.f32.mrb[0].mxu0
        %5487 = vmatprep.mubr.f32.mxu0 0.0
        %5488 = vmatmul.mubr.f32.gmra.mrb[0].mxu0 %v5297
        %v5489 = vpop.f32.mrb[0].mxu0
        %v5490 = vadd.f32 0.0, %v5489
        %v5491 = vpop.f32.mrb[0].mxu0
        %5492 = vmatprep.mubr.f32.mxu0 0.0
        %5493 = vmatmul.mubr.f32.gmra.mrb[0].mxu0 %v5299
        %v5494 = vpop.f32.mrb[0].mxu0
        %v5495 = vadd.f32 0.0, %v5494
        %v5496 = vpop.f32.mrb[0].mxu0
        %5497 = vmatprep.mubr.f32.mxu0 0.0
        %5498 = vmatmul.mubr.f32.gmra.mrb[0].mxu0 %v5301
        %v5499 = vpop.f32.mrb[0].mxu0
        %v5500 = vadd.f32 0.0, %v5499
        %v5501 = vpop.f32.mrb[0].mxu0
        %5502 = vmatprep.mubr.f32.mxu0 0.0
        %5503 = vmatmul.mubr.f32.gmra.mrb[0].mxu0 %v5303
        %v5504 = vpop.f32.mrb[0].mxu0
        %v5505 = vadd.f32 0.0, %v5504
        %v5506 = vpop.f32.mrb[0].mxu0
        %5507 = vmatprep.mubr.f32.mxu0 0.0
        %5508 = vmatmul.mubr.f32.gmra.mrb[0].mxu0 %v5302
        %v5509 = vpop.f32.mrb[0].mxu0
        %v5510 = vadd.f32 0.0, %v5509
        %v5511 = vpop.f32.mrb[0].mxu0
        %5512 = vdwg.mxu0
        %5513 = vmatprep.subr.mxu0 0.0
        %5514 = vmatpush1.msra.mxu0 %v5200
        %5515 = vmatprep.subr.mxu0 0.0
        %5516 = vmatpush1.msra.mxu0 %v5201
        %5517 = vmatprep.subr.mxu0 0.0
        %5518 = vmatpush1.msra.mxu0 %v5202
        %5519 = vmatprep.subr.mxu0 0.0
        %5520 = vmatpush1.msra.mxu0 %v5203
        %5521 = vmatprep.subr.mxu0 0.0
        %5522 = vmatpush1.msra.mxu0 %v5204
        %5523 = vmatprep.subr.mxu0 0.0
        %5524 = vmatpush1.msra.mxu0 %v5205
        %5525 = vmatprep.subr.mxu0 0.0
        %5526 = vmatpush1.msra.mxu0 %v5206
        %5527 = vmatprep.subr.mxu0 0.0
        %5528 = vmatpush1.msra.mxu0 %v5207
        %5529 = vmatprep.subr.mxu0 0.0
        %5530 = vmatpush1.msra.mxu0 %v5208
        %5531 = vmatprep.subr.mxu0 0.0
        %5532 = vmatpush1.msra.mxu0 %v5209
        %5533 = vmatprep.subr.mxu0 0.0
        %5534 = vmatpush1.msra.mxu0 %v5210
        %5535 = vmatprep.subr.mxu0 0.0
        %5536 = vmatpush1.msra.mxu0 %v5211
        %5537 = vmatprep.subr.mxu0 0.0
        %5538 = vmatpush1.msra.mxu0 %v5212
        %5539 = vmatprep.subr.mxu0 0.0
        %5540 = vmatpush1.msra.mxu0 %v5213
        %5541 = vmatprep.subr.mxu0 0.0
        %5542 = vmatpush1.msra.mxu0 %v5214
        %5543 = vmatprep.subr.mxu0 0.0
        %5544 = vmatpush1.msra.mxu0 %v5215
        %5545 = vmatprep.subr.mxu0 0.0
        %5546 = vmatpush1.msra.mxu0 0.0
        %5547 = vmatprep.subr.mxu0 0.0
        %5548 = vmatpush1.msra.mxu0 0.0
        %5549 = vmatprep.subr.mxu0 0.0
        %5550 = vmatpush1.msra.mxu0 0.0
        %5551 = vmatprep.subr.mxu0 0.0
        %5552 = vmatpush1.msra.mxu0 0.0
        %5553 = vmatprep.subr.mxu0 0.0
        %5554 = vmatpush1.msra.mxu0 0.0
        %5555 = vmatprep.subr.mxu0 0.0
        %5556 = vmatpush1.msra.mxu0 0.0
        %5557 = vmatprep.subr.mxu0 0.0
        %5558 = vmatpush1.msra.mxu0 0.0
        %5559 = vmatprep.subr.mxu0 0.0
        %5560 = vmatpush1.msra.mxu0 0.0
        %5561 = vmatprep.subr.mxu0 0.0
        %5562 = vmatpush1.msra.mxu0 0.0
        %5563 = vmatprep.subr.mxu0 0.0
        %5564 = vmatpush1.msra.mxu0 0.0
        %5565 = vmatprep.subr.mxu0 0.0
        %5566 = vmatpush1.msra.mxu0 0.0
        %5567 = vmatprep.subr.mxu0 0.0
        %5568 = vmatpush1.msra.mxu0 0.0
        %5569 = vmatprep.subr.mxu0 0.0
        %5570 = vmatpush1.msra.mxu0 0.0
        %5571 = vmatprep.subr.mxu0 0.0
        %5572 = vmatpush1.msra.mxu0 0.0
        %5573 = vmatprep.subr.mxu0 0.0
        %5574 = vmatpush1.msra.mxu0 0.0
        %5575 = vmatprep.subr.mxu0 0.0
        %5576 = vmatpush1.msra.mxu0 0.0
        %5577 = vmatprep.mubr.f32.mxu0 0.0
        %5578 = vmatmul.mubr.f32.gmra.mrb[0].mxu0 %v5175
        %v5579 = vpop.f32.mrb[0].mxu0
        %v5580 = vadd.f32 %v5395, %v5579
        %v5581 = vpop.f32.mrb[0].mxu0
        %5582 = vmatprep.mubr.f32.mxu0 0.0
        %5583 = vmatmul.mubr.f32.gmra.mrb[0].mxu0 %v5176
        %v5584 = vpop.f32.mrb[0].mxu0
        %v5585 = vadd.f32 %v5400, %v5584
        %v5586 = vpop.f32.mrb[0].mxu0
        %5587 = vmatprep.mubr.f32.mxu0 0.0
        %5588 = vmatmul.mubr.f32.gmra.mrb[0].mxu0 %v5177
        %v5589 = vpop.f32.mrb[0].mxu0
        %v5590 = vadd.f32 %v5405, %v5589
        %v5591 = vpop.f32.mrb[0].mxu0
        %5592 = vmatprep.mubr.f32.mxu0 0.0
        %5593 = vmatmul.mubr.f32.gmra.mrb[0].mxu0 %v5178
        %v5594 = vpop.f32.mrb[0].mxu0
        %v5595 = vadd.f32 %v5410, %v5594
        %v5596 = vpop.f32.mrb[0].mxu0
        %5597 = vmatprep.mubr.f32.mxu0 0.0
        %5598 = vmatmul.mubr.f32.gmra.mrb[0].mxu0 %v5179
        %v5599 = vpop.f32.mrb[0].mxu0
        %v5600 = vadd.f32 %v5415, %v5599
        %v5601 = vpop.f32.mrb[0].mxu0
        %5602 = vmatprep.mubr.f32.mxu0 0.0
        %5603 = vmatmul.mubr.f32.gmra.mrb[0].mxu0 %v5180
        %v5604 = vpop.f32.mrb[0].mxu0
        %v5605 = vadd.f32 %v5420, %v5604
        %v5606 = vpop.f32.mrb[0].mxu0
        %5607 = vmatprep.mubr.f32.mxu0 0.0
        %5608 = vmatmul.mubr.f32.gmra.mrb[0].mxu0 %v5181
        %v5609 = vpop.f32.mrb[0].mxu0
        %v5610 = vadd.f32 %v5425, %v5609
        %v5611 = vpop.f32.mrb[0].mxu0
        %5612 = vmatprep.mubr.f32.mxu0 0.0
        %5613 = vmatmul.mubr.f32.gmra.mrb[0].mxu0 %v5182
        %v5614 = vpop.f32.mrb[0].mxu0
        %v5615 = vadd.f32 %v5430, %v5614
        %v5616 = vpop.f32.mrb[0].mxu0
        %5617 = vmatprep.mubr.f32.mxu0 0.0
        %5618 = vmatmul.mubr.f32.gmra.mrb[0].mxu0 %v5183
        %v5619 = vpop.f32.mrb[0].mxu0
        %v5620 = vadd.f32 %v5435, %v5619
        %v5621 = vpop.f32.mrb[0].mxu0
        %5622 = vmatprep.mubr.f32.mxu0 0.0
        %5623 = vmatmul.mubr.f32.gmra.mrb[0].mxu0 %v5184
        %v5624 = vpop.f32.mrb[0].mxu0
        %v5625 = vadd.f32 %v5440, %v5624
        %v5626 = vpop.f32.mrb[0].mxu0
        %5627 = vmatprep.mubr.f32.mxu0 0.0
        %5628 = vmatmul.mubr.f32.gmra.mrb[0].mxu0 %v5185
        %v5629 = vpop.f32.mrb[0].mxu0
        %v5630 = vadd.f32 %v5445, %v5629
        %v5631 = vpop.f32.mrb[0].mxu0
        %5632 = vmatprep.mubr.f32.mxu0 0.0
        %5633 = vmatmul.mubr.f32.gmra.mrb[0].mxu0 %v5186
        %v5634 = vpop.f32.mrb[0].mxu0
        %v5635 = vadd.f32 %v5450, %v5634
        %v5636 = vpop.f32.mrb[0].mxu0
        %5637 = vmatprep.mubr.f32.mxu0 0.0
        %5638 = vmatmul.mubr.f32.gmra.mrb[0].mxu0 %v5187
        %v5639 = vpop.f32.mrb[0].mxu0
        %v5640 = vadd.f32 %v5455, %v5639
        %v5641 = vpop.f32.mrb[0].mxu0
        %5642 = vmatprep.mubr.f32.mxu0 0.0
        %5643 = vmatmul.mubr.f32.gmra.mrb[0].mxu0 %v5188
        %v5644 = vpop.f32.mrb[0].mxu0
        %v5645 = vadd.f32 %v5460, %v5644
        %v5646 = vpop.f32.mrb[0].mxu0
        %5647 = vmatprep.mubr.f32.mxu0 0.0
        %5648 = vmatmul.mubr.f32.gmra.mrb[0].mxu0 %v5189
        %v5649 = vpop.f32.mrb[0].mxu0
        %v5650 = vadd.f32 %v5465, %v5649
        %v5651 = vpop.f32.mrb[0].mxu0
        %5652 = vmatprep.mubr.f32.mxu0 0.0
        %5653 = vmatmul.mubr.f32.gmra.mrb[0].mxu0 %v5190
        %v5654 = vpop.f32.mrb[0].mxu0
        %v5655 = vadd.f32 %v5470, %v5654
        %v5656 = vpop.f32.mrb[0].mxu0
        %5657 = vmatprep.mubr.f32.mxu0 0.0
        %5658 = vmatmul.mubr.f32.gmra.mrb[0].mxu0 %v5191
        %v5659 = vpop.f32.mrb[0].mxu0
        %v5660 = vadd.f32 %v5475, %v5659
        %v5661 = vpop.f32.mrb[0].mxu0
        %5662 = vmatprep.mubr.f32.mxu0 0.0
        %5663 = vmatmul.mubr.f32.gmra.mrb[0].mxu0 %v5192
        %v5664 = vpop.f32.mrb[0].mxu0
        %v5665 = vadd.f32 %v5480, %v5664
        %v5666 = vpop.f32.mrb[0].mxu0
        %5667 = vmatprep.mubr.f32.mxu0 0.0
        %5668 = vmatmul.mubr.f32.gmra.mrb[0].mxu0 %v5193
        %v5669 = vpop.f32.mrb[0].mxu0
        %v5670 = vadd.f32 %v5485, %v5669
        %v5671 = vpop.f32.mrb[0].mxu0
        %5672 = vmatprep.mubr.f32.mxu0 0.0
        %5673 = vmatmul.mubr.f32.gmra.mrb[0].mxu0 %v5194
        %v5674 = vpop.f32.mrb[0].mxu0
        %v5675 = vadd.f32 %v5490, %v5674
        %v5676 = vpop.f32.mrb[0].mxu0
        %5677 = vmatprep.mubr.f32.mxu0 0.0
        %5678 = vmatmul.mubr.f32.gmra.mrb[0].mxu0 %v5195
        %v5679 = vpop.f32.mrb[0].mxu0
        %v5680 = vadd.f32 %v5495, %v5679
        %v5681 = vpop.f32.mrb[0].mxu0
        %5682 = vmatprep.mubr.f32.mxu0 0.0
        %5683 = vmatmul.mubr.f32.gmra.mrb[0].mxu0 %v5196
        %v5684 = vpop.f32.mrb[0].mxu0
        %v5685 = vadd.f32 %v5500, %v5684
        %v5686 = vpop.f32.mrb[0].mxu0
        %5687 = vmatprep.mubr.f32.mxu0 0.0
        %5688 = vmatmul.mubr.f32.gmra.mrb[0].mxu0 %v5197
        %v5689 = vpop.f32.mrb[0].mxu0
        %v5690 = vadd.f32 %v5505, %v5689
        %v5691 = vpop.f32.mrb[0].mxu0
        %5692 = vmatprep.mubr.f32.mxu0 0.0
        %5693 = vmatmul.mubr.f32.gmra.mrb[0].mxu0 %v5198
        %v5694 = vpop.f32.mrb[0].mxu0
        %v5695 = vadd.f32 %v5510, %v5694
        %v5696 = vpop.f32.mrb[0].mxu0
        %5697 = vdwg.mxu0
        %s5698 = scalar_lea.vmem %s11, 256
        %v5699 = vld [vmem:[%s5698] sm:$0xff]
        %v5700 = vld [vmem:[%s5698 + $0x8] sm:$0xff]
        %v5701 = vld [vmem:[%s5698 + $0x10] sm:$0xff]
        %v5702 = vld [vmem:[%s5698 + $0x18] sm:$0xff]
        %v5703 = vld [vmem:[%s5698 + $0x20] sm:$0xff]
        %v5704 = vld [vmem:[%s5698 + $0x28] sm:$0xff]
        %v5705 = vld [vmem:[%s5698 + $0x30] sm:$0xff]
        %v5706 = vld [vmem:[%s5698 + $0x38] sm:$0xff]
        %v5707 = vld [vmem:[%s5698 + $0x40] sm:$0xff]
        %v5708 = vld [vmem:[%s5698 + $0x48] sm:$0xff]
        %v5709 = vld [vmem:[%s5698 + $0x50] sm:$0xff]
        %v5710 = vld [vmem:[%s5698 + $0x58] sm:$0xff]
        %v5711 = vld [vmem:[%s5698 + $0x60] sm:$0xff]
        %v5712 = vld [vmem:[%s5698 + $0x68] sm:$0xff]
        %v5713 = vld [vmem:[%s5698 + $0x70] sm:$0xff]
        %v5714 = vld [vmem:[%s5698 + $0x78] sm:$0xff]
        %v5715 = vrot.slane %v5175, 2
        %v5716 = vrot.slane %v5176, 2
        %v5717 = vsel %vm1096, %v5715, %v5716
        %v5718 = vrot.slane %v5177, 2
        %v5719 = vsel %vm1096, %v5716, %v5718
        %v5720 = vrot.slane %v5178, 2
        %v5721 = vsel %vm1096, %v5718, %v5720
        %v5722 = vrot.slane %v5179, 2
        %v5723 = vsel %vm1096, %v5720, %v5722
        %v5724 = vrot.slane %v5180, 2
        %v5725 = vsel %vm1096, %v5722, %v5724
        %v5726 = vrot.slane %v5181, 2
        %v5727 = vsel %vm1096, %v5724, %v5726
        %v5728 = vrot.slane %v5182, 2
        %v5729 = vsel %vm1096, %v5726, %v5728
        %v5730 = vrot.slane %v5183, 2
        %v5731 = vsel %vm1096, %v5728, %v5730
        %v5732 = vrot.slane %v5184, 2
        %v5733 = vsel %vm1096, %v5730, %v5732
        %v5734 = vrot.slane %v5185, 2
        %v5735 = vsel %vm1096, %v5732, %v5734
        %v5736 = vrot.slane %v5186, 2
        %v5737 = vsel %vm1096, %v5734, %v5736
        %v5738 = vrot.slane %v5187, 2
        %v5739 = vsel %vm1096, %v5736, %v5738
        %v5740 = vrot.slane %v5188, 2
        %v5741 = vsel %vm1096, %v5738, %v5740
        %v5742 = vrot.slane %v5189, 2
        %v5743 = vsel %vm1096, %v5740, %v5742
        %v5744 = vrot.slane %v5190, 2
        %v5745 = vsel %vm1096, %v5742, %v5744
        %v5746 = vrot.slane %v5191, 2
        %v5747 = vsel %vm1096, %v5744, %v5746
        %v5748 = vrot.slane %v5192, 2
        %v5749 = vsel %vm1096, %v5746, %v5748
        %v5750 = vrot.slane %v5193, 2
        %v5751 = vsel %vm1096, %v5748, %v5750
        %v5752 = vrot.slane %v5194, 2
        %v5753 = vsel %vm1096, %v5750, %v5752
        %v5754 = vrot.slane %v5195, 2
        %v5755 = vsel %vm1096, %v5752, %v5754
        %v5756 = vrot.slane %v5196, 2
        %v5757 = vsel %vm1096, %v5754, %v5756
        %v5758 = vrot.slane %v5197, 2
        %v5759 = vsel %vm1096, %v5756, %v5758
        %v5760 = vrot.slane %v5198, 2
        %v5761 = vsel %vm1096, %v5758, %v5760
        %5786 = vmatprep.subr.mxu0 0.0
        %5787 = vmatpush1.msra.mxu0 %v5699
        %5788 = vmatprep.subr.mxu0 0.0
        %5789 = vmatpush1.msra.mxu0 %v5700
        %5790 = vmatprep.subr.mxu0 0.0
        %5791 = vmatpush1.msra.mxu0 %v5701
        %5792 = vmatprep.subr.mxu0 0.0
        %5793 = vmatpush1.msra.mxu0 %v5702
        %5794 = vmatprep.subr.mxu0 0.0
        %5795 = vmatpush1.msra.mxu0 %v5703
        %5796 = vmatprep.subr.mxu0 0.0
        %5797 = vmatpush1.msra.mxu0 %v5704
        %5798 = vmatprep.subr.mxu0 0.0
        %5799 = vmatpush1.msra.mxu0 %v5705
        %5800 = vmatprep.subr.mxu0 0.0
        %5801 = vmatpush1.msra.mxu0 %v5706
        %5802 = vmatprep.subr.mxu0 0.0
        %5803 = vmatpush1.msra.mxu0 %v5707
        %5804 = vmatprep.subr.mxu0 0.0
        %5805 = vmatpush1.msra.mxu0 %v5708
        %5806 = vmatprep.subr.mxu0 0.0
        %5807 = vmatpush1.msra.mxu0 %v5709
        %5808 = vmatprep.subr.mxu0 0.0
        %5809 = vmatpush1.msra.mxu0 %v5710
        %5810 = vmatprep.subr.mxu0 0.0
        %5811 = vmatpush1.msra.mxu0 %v5711
        %5812 = vmatprep.subr.mxu0 0.0
        %5813 = vmatpush1.msra.mxu0 %v5712
        %5814 = vmatprep.subr.mxu0 0.0
        %5815 = vmatpush1.msra.mxu0 %v5713
        %5816 = vmatprep.subr.mxu0 0.0
        %5817 = vmatpush1.msra.mxu0 %v5714
        %5818 = vmatprep.subr.mxu0 0.0
        %5819 = vmatpush1.msra.mxu0 0.0
        %5820 = vmatprep.subr.mxu0 0.0
        %5821 = vmatpush1.msra.mxu0 0.0
        %5822 = vmatprep.subr.mxu0 0.0
        %5823 = vmatpush1.msra.mxu0 0.0
        %5824 = vmatprep.subr.mxu0 0.0
        %5825 = vmatpush1.msra.mxu0 0.0
        %5826 = vmatprep.subr.mxu0 0.0
        %5827 = vmatpush1.msra.mxu0 0.0
        %5828 = vmatprep.subr.mxu0 0.0
        %5829 = vmatpush1.msra.mxu0 0.0
        %5830 = vmatprep.subr.mxu0 0.0
        %5831 = vmatpush1.msra.mxu0 0.0
        %5832 = vmatprep.subr.mxu0 0.0
        %5833 = vmatpush1.msra.mxu0 0.0
        %5834 = vmatprep.subr.mxu0 0.0
        %5835 = vmatpush1.msra.mxu0 0.0
        %5836 = vmatprep.subr.mxu0 0.0
        %5837 = vmatpush1.msra.mxu0 0.0
        %5838 = vmatprep.subr.mxu0 0.0
        %5839 = vmatpush1.msra.mxu0 0.0
        %5840 = vmatprep.subr.mxu0 0.0
        %5841 = vmatpush1.msra.mxu0 0.0
        %5842 = vmatprep.subr.mxu0 0.0
        %5843 = vmatpush1.msra.mxu0 0.0
        %5844 = vmatprep.subr.mxu0 0.0
        %5845 = vmatpush1.msra.mxu0 0.0
        %5846 = vmatprep.subr.mxu0 0.0
        %5847 = vmatpush1.msra.mxu0 0.0
        %5848 = vmatprep.subr.mxu0 0.0
        %5849 = vmatpush1.msra.mxu0 0.0
        %5850 = vmatprep.mubr.f32.mxu0 0.0
        %5851 = vmatmul.mubr.f32.gmra.mrb[0].mxu0 %v5717
        %v5852 = vpop.f32.mrb[0].mxu0
        %v5853 = vadd.f32 0.0, %v5852
        %v5854 = vpop.f32.mrb[0].mxu0
        %5855 = vmatprep.mubr.f32.mxu0 0.0
        %5856 = vmatmul.mubr.f32.gmra.mrb[0].mxu0 %v5719
        %v5857 = vpop.f32.mrb[0].mxu0
        %v5858 = vadd.f32 0.0, %v5857
        %v5859 = vpop.f32.mrb[0].mxu0
        %5860 = vmatprep.mubr.f32.mxu0 0.0
        %5861 = vmatmul.mubr.f32.gmra.mrb[0].mxu0 %v5721
        %v5862 = vpop.f32.mrb[0].mxu0
        %v5863 = vadd.f32 0.0, %v5862
        %v5864 = vpop.f32.mrb[0].mxu0
        %5865 = vmatprep.mubr.f32.mxu0 0.0
        %5866 = vmatmul.mubr.f32.gmra.mrb[0].mxu0 %v5723
        %v5867 = vpop.f32.mrb[0].mxu0
        %v5868 = vadd.f32 0.0, %v5867
        %v5869 = vpop.f32.mrb[0].mxu0
        %5870 = vmatprep.mubr.f32.mxu0 0.0
        %5871 = vmatmul.mubr.f32.gmra.mrb[0].mxu0 %v5725
        %v5872 = vpop.f32.mrb[0].mxu0
        %v5873 = vadd.f32 0.0, %v5872
        %v5874 = vpop.f32.mrb[0].mxu0
        %5875 = vmatprep.mubr.f32.mxu0 0.0
        %5876 = vmatmul.mubr.f32.gmra.mrb[0].mxu0 %v5727
        %v5877 = vpop.f32.mrb[0].mxu0
        %v5878 = vadd.f32 0.0, %v5877
        %v5879 = vpop.f32.mrb[0].mxu0
        %5880 = vmatprep.mubr.f32.mxu0 0.0
        %5881 = vmatmul.mubr.f32.gmra.mrb[0].mxu0 %v5729
        %v5882 = vpop.f32.mrb[0].mxu0
        %v5883 = vadd.f32 0.0, %v5882
        %v5884 = vpop.f32.mrb[0].mxu0
        %5885 = vmatprep.mubr.f32.mxu0 0.0
        %5886 = vmatmul.mubr.f32.gmra.mrb[0].mxu0 %v5731
        %v5887 = vpop.f32.mrb[0].mxu0
        %v5888 = vadd.f32 0.0, %v5887
        %v5889 = vpop.f32.mrb[0].mxu0
        %5890 = vmatprep.mubr.f32.mxu0 0.0
        %5891 = vmatmul.mubr.f32.gmra.mrb[0].mxu0 %v5733
        %v5892 = vpop.f32.mrb[0].mxu0
        %v5893 = vadd.f32 0.0, %v5892
        %v5894 = vpop.f32.mrb[0].mxu0
        %5895 = vmatprep.mubr.f32.mxu0 0.0
        %5896 = vmatmul.mubr.f32.gmra.mrb[0].mxu0 %v5735
        %v5897 = vpop.f32.mrb[0].mxu0
        %v5898 = vadd.f32 0.0, %v5897
        %v5899 = vpop.f32.mrb[0].mxu0
        %5900 = vmatprep.mubr.f32.mxu0 0.0
        %5901 = vmatmul.mubr.f32.gmra.mrb[0].mxu0 %v5737
        %v5902 = vpop.f32.mrb[0].mxu0
        %v5903 = vadd.f32 0.0, %v5902
        %v5904 = vpop.f32.mrb[0].mxu0
        %5905 = vmatprep.mubr.f32.mxu0 0.0
        %5906 = vmatmul.mubr.f32.gmra.mrb[0].mxu0 %v5739
        %v5907 = vpop.f32.mrb[0].mxu0
        %v5908 = vadd.f32 0.0, %v5907
        %v5909 = vpop.f32.mrb[0].mxu0
        %5910 = vmatprep.mubr.f32.mxu0 0.0
        %5911 = vmatmul.mubr.f32.gmra.mrb[0].mxu0 %v5741
        %v5912 = vpop.f32.mrb[0].mxu0
        %v5913 = vadd.f32 0.0, %v5912
        %v5914 = vpop.f32.mrb[0].mxu0
        %5915 = vmatprep.mubr.f32.mxu0 0.0
        %5916 = vmatmul.mubr.f32.gmra.mrb[0].mxu0 %v5743
        %v5917 = vpop.f32.mrb[0].mxu0
        %v5918 = vadd.f32 0.0, %v5917
        %v5919 = vpop.f32.mrb[0].mxu0
        %5920 = vmatprep.mubr.f32.mxu0 0.0
        %5921 = vmatmul.mubr.f32.gmra.mrb[0].mxu0 %v5745
        %v5922 = vpop.f32.mrb[0].mxu0
        %v5923 = vadd.f32 0.0, %v5922
        %v5924 = vpop.f32.mrb[0].mxu0
        %5925 = vmatprep.mubr.f32.mxu0 0.0
        %5926 = vmatmul.mubr.f32.gmra.mrb[0].mxu0 %v5747
        %v5927 = vpop.f32.mrb[0].mxu0
        %v5928 = vadd.f32 0.0, %v5927
        %v5929 = vpop.f32.mrb[0].mxu0
        %5930 = vmatprep.mubr.f32.mxu0 0.0
        %5931 = vmatmul.mubr.f32.gmra.mrb[0].mxu0 %v5749
        %v5932 = vpop.f32.mrb[0].mxu0
        %v5933 = vadd.f32 0.0, %v5932
        %v5934 = vpop.f32.mrb[0].mxu0
        %5935 = vmatprep.mubr.f32.mxu0 0.0
        %5936 = vmatmul.mubr.f32.gmra.mrb[0].mxu0 %v5751
        %v5937 = vpop.f32.mrb[0].mxu0
        %v5938 = vadd.f32 0.0, %v5937
        %v5939 = vpop.f32.mrb[0].mxu0
        %5940 = vmatprep.mubr.f32.mxu0 0.0
        %5941 = vmatmul.mubr.f32.gmra.mrb[0].mxu0 %v5753
        %v5942 = vpop.f32.mrb[0].mxu0
        %v5943 = vadd.f32 0.0, %v5942
        %v5944 = vpop.f32.mrb[0].mxu0
        %5945 = vmatprep.mubr.f32.mxu0 0.0
        %5946 = vmatmul.mubr.f32.gmra.mrb[0].mxu0 %v5755
        %v5947 = vpop.f32.mrb[0].mxu0
        %v5948 = vadd.f32 0.0, %v5947
        %v5949 = vpop.f32.mrb[0].mxu0
        %5950 = vmatprep.mubr.f32.mxu0 0.0
        %5951 = vmatmul.mubr.f32.gmra.mrb[0].mxu0 %v5757
        %v5952 = vpop.f32.mrb[0].mxu0
        %v5953 = vadd.f32 0.0, %v5952
        %v5954 = vpop.f32.mrb[0].mxu0
        %5955 = vmatprep.mubr.f32.mxu0 0.0
        %5956 = vmatmul.mubr.f32.gmra.mrb[0].mxu0 %v5759
        %v5957 = vpop.f32.mrb[0].mxu0
        %v5958 = vadd.f32 0.0, %v5957
        %v5959 = vpop.f32.mrb[0].mxu0
        %5960 = vmatprep.mubr.f32.mxu0 0.0
        %5961 = vmatmul.mubr.f32.gmra.mrb[0].mxu0 %v5761
        %v5962 = vpop.f32.mrb[0].mxu0
        %v5963 = vadd.f32 0.0, %v5962
        %v5964 = vpop.f32.mrb[0].mxu0
        %5965 = vmatprep.mubr.f32.mxu0 0.0
        %5966 = vmatmul.mubr.f32.gmra.mrb[0].mxu0 %v5760
        %v5967 = vpop.f32.mrb[0].mxu0
        %v5968 = vadd.f32 0.0, %v5967
        %v5969 = vpop.f32.mrb[0].mxu0
        %5970 = vdwg.mxu0
        %v5971 = vadd.f32 %v5580, %v5853
        %v5972 = vadd.f32 %v5585, %v5858
        %v5973 = vadd.f32 %v5590, %v5863
        %v5974 = vadd.f32 %v5595, %v5868
        %v5975 = vadd.f32 %v5600, %v5873
        %v5976 = vadd.f32 %v5605, %v5878
        %v5977 = vadd.f32 %v5610, %v5883
        %v5978 = vadd.f32 %v5615, %v5888
        %v5979 = vadd.f32 %v5620, %v5893
        %v5980 = vadd.f32 %v5625, %v5898
        %v5981 = vadd.f32 %v5630, %v5903
        %v5982 = vadd.f32 %v5635, %v5908
        %v5983 = vadd.f32 %v5640, %v5913
        %v5984 = vadd.f32 %v5645, %v5918
        %v5985 = vadd.f32 %v5650, %v5923
        %v5986 = vadd.f32 %v5655, %v5928
        %v5987 = vadd.f32 %v5660, %v5933
        %v5988 = vadd.f32 %v5665, %v5938
        %v5989 = vadd.f32 %v5670, %v5943
        %v5990 = vadd.f32 %v5675, %v5948
        %v5991 = vadd.f32 %v5680, %v5953
        %v5992 = vadd.f32 %v5685, %v5958
        %v5993 = vadd.f32 %v5690, %v5963
        %v5994 = vadd.f32 %v5695, %v5968
        %v5996 = vlaneseq
        %v5997 = vshrl.u32 %v5996, 7
        %v5998 = vsub.s32 0, %v5997
        %v5999 = vrot.slane %v5199, %v5998
        %v6001 = vadd.f32 %v5971, %v5999
        %v6002 = vadd.f32 %v5972, %v5999
        %v6003 = vadd.f32 %v5973, %v5999
        %v6004 = vadd.f32 %v5974, %v5999
        %v6005 = vadd.f32 %v5975, %v5999
        %v6006 = vadd.f32 %v5976, %v5999
        %v6007 = vadd.f32 %v5977, %v5999
        %v6008 = vadd.f32 %v5978, %v5999
        %v6009 = vadd.f32 %v5979, %v5999
        %v6010 = vadd.f32 %v5980, %v5999
        %v6011 = vadd.f32 %v5981, %v5999
        %v6012 = vadd.f32 %v5982, %v5999
        %v6013 = vadd.f32 %v5983, %v5999
        %v6014 = vadd.f32 %v5984, %v5999
        %v6015 = vadd.f32 %v5985, %v5999
        %v6016 = vadd.f32 %v5986, %v5999
        %v6017 = vadd.f32 %v5987, %v5999
        %v6018 = vadd.f32 %v5988, %v5999
        %v6019 = vadd.f32 %v5989, %v5999
        %v6020 = vadd.f32 %v5990, %v5999
        %v6021 = vadd.f32 %v5991, %v5999
        %v6022 = vadd.f32 %v5992, %v5999
        %v6023 = vadd.f32 %v5993, %v5999
        %v6024 = vadd.f32 %v5994, %v5999
        %v6025 = vmax.f32 %v6001, 0.0
        %v6026 = vmax.f32 %v6002, 0.0
        %v6027 = vmax.f32 %v6003, 0.0
        %v6028 = vmax.f32 %v6004, 0.0
        %v6029 = vmax.f32 %v6005, 0.0
        %v6030 = vmax.f32 %v6006, 0.0
        %v6031 = vmax.f32 %v6007, 0.0
        %v6032 = vmax.f32 %v6008, 0.0
        %v6033 = vmax.f32 %v6009, 0.0
        %v6034 = vmax.f32 %v6010, 0.0
        %v6035 = vmax.f32 %v6011, 0.0
        %v6036 = vmax.f32 %v6012, 0.0
        %v6037 = vmax.f32 %v6013, 0.0
        %v6038 = vmax.f32 %v6014, 0.0
        %v6039 = vmax.f32 %v6015, 0.0
        %v6040 = vmax.f32 %v6016, 0.0
        %v6041 = vmax.f32 %v6017, 0.0
        %v6042 = vmax.f32 %v6018, 0.0
        %v6043 = vmax.f32 %v6019, 0.0
        %v6044 = vmax.f32 %v6020, 0.0
        %v6045 = vmax.f32 %v6021, 0.0
        %v6046 = vmax.f32 %v6022, 0.0
        %v6047 = vmax.f32 %v6023, 0.0
        %v6048 = vmax.f32 %v6024, 0.0
        %6049 = vst [vmem:[%s501] sm:$0xff] %v6025
        %6050 = vst [vmem:[%s501 + $0x8] sm:$0xff] %v6026
        %6051 = vst [vmem:[%s501 + $0x10] sm:$0xff] %v6027
        %6052 = vst [vmem:[%s501 + $0x18] sm:$0xff] %v6028
        %6053 = vst [vmem:[%s501 + $0x20] sm:$0xff] %v6029
        %6054 = vst [vmem:[%s501 + $0x28] sm:$0xff] %v6030
        %6055 = vst [vmem:[%s501 + $0x30] sm:$0xff] %v6031
        %6056 = vst [vmem:[%s501 + $0x38] sm:$0xff] %v6032
        %6057 = vst [vmem:[%s501 + $0x40] sm:$0xff] %v6033
        %6058 = vst [vmem:[%s501 + $0x48] sm:$0xff] %v6034
        %6059 = vst [vmem:[%s501 + $0x50] sm:$0xff] %v6035
        %6060 = vst [vmem:[%s501 + $0x58] sm:$0xff] %v6036
        %6061 = vst [vmem:[%s501 + $0x60] sm:$0xff] %v6037
        %6062 = vst [vmem:[%s501 + $0x68] sm:$0xff] %v6038
        %6063 = vst [vmem:[%s501 + $0x70] sm:$0xff] %v6039
        %6064 = vst [vmem:[%s501 + $0x78] sm:$0xff] %v6040
        %6065 = vst [vmem:[%s501 + $0x80] sm:$0xff] %v6041
        %6066 = vst [vmem:[%s501 + $0x88] sm:$0xff] %v6042
        %6067 = vst [vmem:[%s501 + $0x90] sm:$0xff] %v6043
        %6068 = vst [vmem:[%s501 + $0x98] sm:$0xff] %v6044
        %6069 = vst [vmem:[%s501 + $0xa0] sm:$0xff] %v6045
        %6070 = vst [vmem:[%s501 + $0xa8] sm:$0xff] %v6046
        %6071 = vst [vmem:[%s501 + $0xb0] sm:$0xff] %v6047
        %6072 = vst [vmem:[%s501 + $0xb8] sm:$0xf] %v6048
        %p6073 = scmp.lt.s32.totalorder %s27, 1
        %s6074 = scalar_select %p6073, %s27, 1
        %s6075 = smul.addr %s6074, 24
        %s6076 = smul.addr %s6075, 8
        %s6077 = scalar_lea.vmem %s13, %s6076
        // Predicated region
        $region89: #{tpu_custom_call.1} parent=71 // pred_check
          %p6078 = pneg %p323
        $region90: #{tpu_custom_call.1} parent=71 // pred_check_branch
          %6080 = sbr.rel (%p6078) target = $region92
        $region91: #{tpu_custom_call.1} parent=71 // pred_region
          _
        $region92: #{tpu_custom_call.1} parent=71 // pred_fallthru
          _
      $region72: #{tpu_custom_call.1} parent=5 // pred_fallthru
        _
      %p6081 = scmp.le.s32.totalorder 2, %s22
      // Predicated region
      $region93: #{tpu_custom_call.1} parent=5 // pred_check
        %p6082 = pneg %p6081
      $region94: #{tpu_custom_call.1} parent=5 // pred_check_branch
        %6084 = sbr.rel (%p6082) target = $region96
      $region95: #{tpu_custom_call.1} parent=5 // pred_region
        %s6085 = ssub.s32 %s22, 2
        // Predicated region
        $region97: #{tpu_custom_call.1} parent=95 // pred_check
          %p6086 = pneg %p329
        $region98: #{tpu_custom_call.1} parent=95 // pred_check_branch
          %6088 = sbr.rel (%p6086) target = $region100
        $region99: #{tpu_custom_call.1} parent=95 // pred_region
          %p6089 = scmp.lt.s32.totalorder %s28, 1
          %s6090 = scalar_select %p6089, %s28, 1
          %s6091 = smul.addr %s6090, 24
          %s6092 = smul.addr %s6091, 8
          %s6093 = scalar_lea.vmem %s13, %s6092
        $region100: #{tpu_custom_call.1} parent=95 // pred_fallthru
          _
      $region96: #{tpu_custom_call.1} parent=5 // pred_fallthru
        _
    $region6: #{tpu_custom_call.1} parent=1 // loop_footer
      %s26 = sadd.s32 1, %s22
    $region7: #{tpu_custom_call.1} parent=1 // loop_footer_branch
      %21 = sbr.rel target = $region3
    $region8: #{tpu_custom_call.1} parent=1 // loop_exit
      _
    %6094 = vsyncpa [#allocation3], 1
    %s6095 = scalar_lea.sflag [#allocation3], 1
    %6096 = vsyncpa %s6095, 1
    %6097 = vsyncpa [#allocation5], 1
    %6098 = vsyncpa [#allocation8], 1

</llo_original>
